<compile_context>
chip_gen: v7x
topology: tpu7x:2x2x1
jax: 0.10.0
libtpu: 0.0.40
codegen_flags: <defaults>
</compile_context>

<pallas_src>
import functools

import jax
import jax.numpy as jnp
import numpy as np
from jax.experimental import pallas as pl
from jax.experimental.pallas import tpu as pltpu

NUM_HEADS = 4


# ----------------------------- kernel helpers (traced inside the kernel) ----------

def _layer_norm(v, g, b):
    mu = jnp.mean(v, axis=-1, keepdims=True)
    var = jnp.mean((v - mu) ** 2, axis=-1, keepdims=True)
    return (v - mu) * jax.lax.rsqrt(var + 1e-5) * g + b


def _fused_mha(xq, xkv, wq_h, bq_h, wk_h, bk_h, wv_h, bv_h, wp_h, bp):
    """Multi-head attention for one batch element with all heads fused.

    xq: (n, C), xkv: (m, D).  Per-head weights are pre-split in the wrapper:
      wq_h/wk_h/wv_h: (H, in, d), bq_h/bk_h/bv_h: (H, 1, d), wp_h: (H, d, C).
    All matmuls are leading-batch-dim dot_generals (batch dim = head).
    """
    H, _, d = wq_h.shape
    scale = float(d) ** -0.5

    xq_b = jnp.broadcast_to(xq[None], (H,) + xq.shape)     # (H, n, C)
    xkv_b = jnp.broadcast_to(xkv[None], (H,) + xkv.shape)  # (H, m, D)

    q = jnp.einsum('hnc,hcd->hnd', xq_b, wq_h,
                   preferred_element_type=jnp.float32) + bq_h   # (H, n, d)
    k = jnp.einsum('hmc,hcd->hmd', xkv_b, wk_h,
                   preferred_element_type=jnp.float32) + bk_h   # (H, m, d)
    v = jnp.einsum('hmc,hcd->hmd', xkv_b, wv_h,
                   preferred_element_type=jnp.float32) + bv_h   # (H, m, d)

    s = jnp.einsum('hnd,hmd->hnm', q, k,
                   preferred_element_type=jnp.float32) * scale  # (H, n, m)
    s = s - jnp.max(s, axis=-1, keepdims=True)
    e = jnp.exp(s)
    denom = jnp.sum(e, axis=-1, keepdims=True)                  # (H, n, 1)
    inv = pl.reciprocal(denom, approx=True)                     # EUP slot
    inv = inv * (2.0 - denom * inv)                             # 1 Newton step -> ~f32 exact
    p = e * inv                                                 # (H, n, m)

    o = jnp.einsum('hnm,hmd->hnd', p, v,
                   preferred_element_type=jnp.float32)          # (H, n, d)
    # Per-head projection + sum over heads replaces the lane concat.
    proj = jnp.sum(jnp.einsum('hnd,hdc->hnc', o, wp_h,
                              preferred_element_type=jnp.float32), axis=0) + bp
    return proj, p


# ----------------------------- the Pallas kernel -----------------------------------

def decoder_layer_kernel(
    x_ref, y_ref, ctx_ref,
    wq_s, bq_s, wk_s, bk_s, wv_s, bv_s, wp_s, bp_s, g_a, b_a,
    wq_c, bq_c, wk_c, bk_c, wv_c, bv_c, wp_c, bp_c, g_c, b_c,
    w1, b1, wg1, bg1, wb1,
    w2, b2, wg2, bg2, wb2,
    g_o, b_o,
    out_ref, attn_ref,
):
    x = x_ref[...]      # (n, C)   (batch dim squeezed by BlockSpec)
    y = y_ref[...]      # (m, Dref)
    ctx = ctx_ref[...]  # (1, Dctx)

    # --- self attention + residual + LayerNorm ---
    sa, _ = _fused_mha(x, x, wq_s[...], bq_s[...], wk_s[...], bk_s[...],
                       wv_s[...], bv_s[...], wp_s[...], bp_s[...])
    x1 = _layer_norm(sa + x, g_a[...], b_a[...])

    # --- cross attention + residual + LayerNorm ---
    ca, probs = _fused_mha(x1, y, wq_c[...], bq_c[...], wk_c[...], bk_c[...],
                           wv_c[...], bv_c[...], wp_c[...], bp_c[...])
    x2 = _layer_norm(ca + x1, g_c[...], b_c[...])

    # --- TimeMLP: two ConcatSquashLinear layers with ReLU, residual + LayerNorm ---
    gate1 = jax.nn.sigmoid(
        jnp.dot(ctx, wg1[...], preferred_element_type=jnp.float32) + bg1[...])
    hbias1 = jnp.dot(ctx, wb1[...], preferred_element_type=jnp.float32)
    h1 = (jnp.dot(x2, w1[...], preferred_element_type=jnp.float32) + b1[...]) * gate1 + hbias1
    h1 = jnp.maximum(h1, 0.0)

    gate2 = jax.nn.sigmoid(
        jnp.dot(ctx, wg2[...], preferred_element_type=jnp.float32) + bg2[...])
    hbias2 = jnp.dot(ctx, wb2[...], preferred_element_type=jnp.float32)
    h2 = (jnp.dot(h1, w2[...], preferred_element_type=jnp.float32) + b2[...]) * gate2 + hbias2

    x3 = _layer_norm(h2 + x2, g_o[...], b_o[...])

    out_ref[...] = x3       # (n, C)
    attn_ref[...] = probs   # (H, n, m) -- single stacked store


# ----------------------------- wrapper ----------------------------------------------

def _split_attn_weights(wq, bq, wkv, bkv, wp, num_heads):
    """Pre-split combined attention weights into per-head slabs (wrapper-side)."""
    C = wq.shape[1]
    d = C // num_heads

    def split_cols(w):   # (in, H*d) -> (H, in, d)
        return jnp.transpose(w.reshape(w.shape[0], num_heads, d), (1, 0, 2))

    wq_h = split_cols(wq)
    bq_h = jnp.transpose(bq.reshape(1, num_heads, d), (1, 0, 2))
    wk_h = split_cols(wkv[:, :C])
    wv_h = split_cols(wkv[:, C:])
    bk_h = jnp.transpose(bkv[:, :C].reshape(1, num_heads, d), (1, 0, 2))
    bv_h = jnp.transpose(bkv[:, C:].reshape(1, num_heads, d), (1, 0, 2))
    wp_h = wp.reshape(num_heads, d, C)   # rows h*d:(h+1)*d -> head h
    return wq_h, bq_h, wk_h, bk_h, wv_h, bv_h, wp_h


@functools.partial(jax.jit, static_argnames=("num_heads",))
def time_transformer_decoder_layer(x, y, ctx, params, num_heads=NUM_HEADS):
    b, n, C = x.shape
    _, m, _ = y.shape

    wq_s, bq_s, wk_s, bk_s, wv_s, bv_s, wp_s = _split_attn_weights(
        params['wq_s'], params['bq_s'], params['wkv_s'], params['bkv_s'],
        params['wp_s'], num_heads)
    wq_c, bq_c, wk_c, bk_c, wv_c, bv_c, wp_c = _split_attn_weights(
        params['wq_c'], params['bq_c'], params['wkv_c'], params['bkv_c'],
        params['wp_c'], num_heads)

    weights = [
        wq_s, bq_s, wk_s, bk_s, wv_s, bv_s, wp_s, params['bp_s'],
        params['g_a'], params['b_a'],
        wq_c, bq_c, wk_c, bk_c, wv_c, bv_c, wp_c, params['bp_c'],
        params['g_c'], params['b_c'],
        params['w1'], params['b1'], params['wg1'], params['bg1'], params['wb1'],
        params['w2'], params['b2'], params['wg2'], params['bg2'], params['wb2'],
        params['g_o'], params['b_o'],
    ]

    def batch_spec(arr):
        nd = arr.ndim
        blk = (None,) + arr.shape[1:]   # squeeze the batch dim out of the kernel ref
        return pl.BlockSpec(blk, lambda i, _nd=nd: (i,) + (0,) * (_nd - 1))

    def full_spec(arr):
        nd = arr.ndim
        return pl.BlockSpec(arr.shape, lambda i, _nd=nd: (0,) * _nd)

    in_specs = [batch_spec(x), batch_spec(y), batch_spec(ctx)]
    in_specs += [full_spec(w) for w in weights]

    out_shapes = (jax.ShapeDtypeStruct((b, n, C), jnp.float32),
                  jax.ShapeDtypeStruct((b, num_heads, n, m), jnp.float32))
    out_specs = [pl.BlockSpec((None, n, C), lambda i: (i, 0, 0)),
                 pl.BlockSpec((None, num_heads, n, m), lambda i: (i, 0, 0, 0))]

    out, attn_hnm = pl.pallas_call(
        decoder_layer_kernel,
        out_shape=out_shapes,
        grid_spec=pltpu.PrefetchScalarGridSpec(
            num_scalar_prefetch=0,
            grid=(b,),
            in_specs=in_specs,
            out_specs=out_specs,
        ),
        compiler_params=pltpu.CompilerParams(
            dimension_semantics=("parallel",)),   # shard batch across v7x's 2 TCs
    )(x, y, ctx, *weights)

    attn = jnp.transpose(attn_hnm, (0, 2, 3, 1))  # -> (B, n, m, H), PyTorch layout
    return out, attn


# ----------------------------- pure-JAX reference ------------------------------------

def ref_forward(x, y, ctx, p, H):
    def mha(xq, xkv, wq, bq, wkv, bkv, wp, bp):
        C = wq.shape[1]
        d = C // H
        q = xq @ wq + bq
        kv = xkv @ wkv + bkv
        k, v = kv[..., :C], kv[..., C:]
        B, n = q.shape[0], q.shape[1]
        m = k.shape[1]
        qh = q.reshape(B, n, H, d)
        kh = k.reshape(B, m, H, d)
        vh = v.reshape(B, m, H, d)
        s = jnp.einsum('bnhd,bmhd->bnmh', qh, kh) * (float(d) ** -0.5)
        a = jax.nn.softmax(s, axis=2)
        o = jnp.einsum('bnmh,bmhd->bnhd', a, vh).reshape(B, n, C)
        return o @ wp + bp, a

    def ln(v, g, bb):
        mu = v.mean(-1, keepdims=True)
        var = ((v - mu) ** 2).mean(-1, keepdims=True)
        return (v - mu) / jnp.sqrt(var + 1e-5) * g + bb

    res = x
    h, _ = mha(x, x, p['wq_s'], p['bq_s'], p['wkv_s'], p['bkv_s'], p['wp_s'], p['bp_s'])
    x1 = ln(h + res, p['g_a'], p['b_a'])
    res = x1
    h, attn = mha(x1, y, p['wq_c'], p['bq_c'], p['wkv_c'], p['bkv_c'], p['wp_c'], p['bp_c'])
    x2 = ln(h + res, p['g_c'], p['b_c'])
    res = x2
    gate1 = jax.nn.sigmoid(ctx @ p['wg1'] + p['bg1'])
    hb1 = ctx @ p['wb1']
    h1 = jnp.maximum((x2 @ p['w1'] + p['b1']) * gate1 + hb1, 0.0)
    gate2 = jax.nn.sigmoid(ctx @ p['wg2'] + p['bg2'])
    hb2 = ctx @ p['wb2']
    h2 = (h1 @ p['w2'] + p['b2']) * gate2 + hb2
    x3 = ln(h2 + res, p['g_o'], p['b_o'])
    return x3, attn


# ----------------------------- deterministic parameter init ---------------------------

def init_params(key, C, Dref, Dctx, Hdim):
    shapes = {
        'wq_s': (C, C), 'bq_s': (1, C), 'wkv_s': (C, 2 * C), 'bkv_s': (1, 2 * C),
        'wp_s': (C, C), 'bp_s': (1, C), 'g_a': (1, C), 'b_a': (1, C),
        'wq_c': (C, C), 'bq_c': (1, C), 'wkv_c': (Dref, 2 * C), 'bkv_c': (1, 2 * C),
        'wp_c': (C, C), 'bp_c': (1, C), 'g_c': (1, C), 'b_c': (1, C),
        'w1': (C, Hdim), 'b1': (1, Hdim), 'wg1': (Dctx, Hdim), 'bg1': (1, Hdim),
        'wb1': (Dctx, Hdim),
        'w2': (Hdim, C), 'b2': (1, C), 'wg2': (Dctx, C), 'bg2': (1, C), 'wb2': (Dctx, C),
        'g_o': (1, C), 'b_o': (1, C),
    }
    params = {}
    keys = jax.random.split(key, len(shapes))
    for k_, (name, shp) in zip(keys, shapes.items()):
        if name.startswith('g_'):
            params[name] = (jnp.ones(shp, jnp.float32)
                            + 0.05 * jax.random.normal(k_, shp, jnp.float32))
        else:
            params[name] = 0.2 * jax.random.normal(k_, shp, jnp.float32)
    return params


# ----------------------------- main ----------------------------------------------------

if __name__ == "__main__":
    B, N, M = 2, 8, 8          # batch, self-seq, cross-seq
    C, DREF, DCTX = 32, 16, 8  # dim_self, dim_ref, dim_ctx
    HDIM = C * 2               # mlp_ratio = 2

    key = jax.random.PRNGKey(0)
    kx, ky, kc, kp = jax.random.split(key, 4)
    x = jax.random.normal(kx, (B, N, C), jnp.float32)
    y = jax.random.normal(ky, (B, M, DREF), jnp.float32)
    ctx = jax.random.normal(kc, (B, 1, DCTX), jnp.float32)
    params = init_params(kp, C, DREF, DCTX, HDIM)

    out, attn = time_transformer_decoder_layer(x, y, ctx, params, num_heads=NUM_HEADS)
    out, attn = jax.block_until_ready((out, attn))

    ref_out, ref_attn = ref_forward(x, y, ctx, params, NUM_HEADS)
    # 5e-4 tolerance: covers the EUP approx-reciprocal (+Newton) softmax path and
    # batched-matmul accumulation-order differences vs. the pure-f32 reference.
    np.testing.assert_allclose(np.asarray(out), np.asarray(ref_out), rtol=5e-4, atol=5e-4)
    np.testing.assert_allclose(np.asarray(attn), np.asarray(ref_attn), rtol=5e-4, atol=5e-4)

    print("KERNEL_OK")
</pallas_src>

<mosaic_0001>
module attributes {stable_mosaic.version = 11 : i64} {
  func.func @decoder_layer_kernel(%arg0: i32, %arg1: memref<1x8x32xf32, #tpu.memory_space<vmem>>, %arg2: memref<1x8x16xf32, #tpu.memory_space<vmem>>, %arg3: memref<1x1x8xf32, #tpu.memory_space<vmem>>, %arg4: memref<4x32x8xf32, #tpu.memory_space<vmem>>, %arg5: memref<4x1x8xf32, #tpu.memory_space<vmem>>, %arg6: memref<4x32x8xf32, #tpu.memory_space<vmem>>, %arg7: memref<4x1x8xf32, #tpu.memory_space<vmem>>, %arg8: memref<4x32x8xf32, #tpu.memory_space<vmem>>, %arg9: memref<4x1x8xf32, #tpu.memory_space<vmem>>, %arg10: memref<4x8x32xf32, #tpu.memory_space<vmem>>, %arg11: memref<1x32xf32, #tpu.memory_space<vmem>>, %arg12: memref<1x32xf32, #tpu.memory_space<vmem>>, %arg13: memref<1x32xf32, #tpu.memory_space<vmem>>, %arg14: memref<4x32x8xf32, #tpu.memory_space<vmem>>, %arg15: memref<4x1x8xf32, #tpu.memory_space<vmem>>, %arg16: memref<4x16x8xf32, #tpu.memory_space<vmem>>, %arg17: memref<4x1x8xf32, #tpu.memory_space<vmem>>, %arg18: memref<4x16x8xf32, #tpu.memory_space<vmem>>, %arg19: memref<4x1x8xf32, #tpu.memory_space<vmem>>, %arg20: memref<4x8x32xf32, #tpu.memory_space<vmem>>, %arg21: memref<1x32xf32, #tpu.memory_space<vmem>>, %arg22: memref<1x32xf32, #tpu.memory_space<vmem>>, %arg23: memref<1x32xf32, #tpu.memory_space<vmem>>, %arg24: memref<32x64xf32, #tpu.memory_space<vmem>>, %arg25: memref<1x64xf32, #tpu.memory_space<vmem>>, %arg26: memref<8x64xf32, #tpu.memory_space<vmem>>, %arg27: memref<1x64xf32, #tpu.memory_space<vmem>>, %arg28: memref<8x64xf32, #tpu.memory_space<vmem>>, %arg29: memref<64x32xf32, #tpu.memory_space<vmem>>, %arg30: memref<1x32xf32, #tpu.memory_space<vmem>>, %arg31: memref<8x32xf32, #tpu.memory_space<vmem>>, %arg32: memref<1x32xf32, #tpu.memory_space<vmem>>, %arg33: memref<8x32xf32, #tpu.memory_space<vmem>>, %arg34: memref<1x32xf32, #tpu.memory_space<vmem>>, %arg35: memref<1x32xf32, #tpu.memory_space<vmem>>, %arg36: memref<1x8x32xf32, #tpu.memory_space<vmem>>, %arg37: memref<1x4x8x8xf32, #tpu.memory_space<vmem>>) attributes {dimension_semantics = [#tpu.dimension_semantics<parallel>], iteration_bounds = array<i64: 2>, scalar_prefetch = 0 : i64, scratch_operands = 0 : i64, tpu.core_type = #tpu.core_type<tc>, window_params = [{transform_indices = @transform_0, window_bounds = array<i64: 1, 8, 32>}, {transform_indices = @transform_1, window_bounds = array<i64: 1, 8, 16>}, {transform_indices = @transform_2, window_bounds = array<i64: 1, 1, 8>}, {pipeline_mode = #tpu.pipeline_mode<synchronous>, transform_indices = @transform_3, window_bounds = array<i64: 4, 32, 8>}, {pipeline_mode = #tpu.pipeline_mode<synchronous>, transform_indices = @transform_4, window_bounds = array<i64: 4, 1, 8>}, {pipeline_mode = #tpu.pipeline_mode<synchronous>, transform_indices = @transform_5, window_bounds = array<i64: 4, 32, 8>}, {pipeline_mode = #tpu.pipeline_mode<synchronous>, transform_indices = @transform_6, window_bounds = array<i64: 4, 1, 8>}, {pipeline_mode = #tpu.pipeline_mode<synchronous>, transform_indices = @transform_7, window_bounds = array<i64: 4, 32, 8>}, {pipeline_mode = #tpu.pipeline_mode<synchronous>, transform_indices = @transform_8, window_bounds = array<i64: 4, 1, 8>}, {pipeline_mode = #tpu.pipeline_mode<synchronous>, transform_indices = @transform_9, window_bounds = array<i64: 4, 8, 32>}, {pipeline_mode = #tpu.pipeline_mode<synchronous>, transform_indices = @transform_10, window_bounds = array<i64: 1, 32>}, {pipeline_mode = #tpu.pipeline_mode<synchronous>, transform_indices = @transform_11, window_bounds = array<i64: 1, 32>}, {pipeline_mode = #tpu.pipeline_mode<synchronous>, transform_indices = @transform_12, window_bounds = array<i64: 1, 32>}, {pipeline_mode = #tpu.pipeline_mode<synchronous>, transform_indices = @transform_13, window_bounds = array<i64: 4, 32, 8>}, {pipeline_mode = #tpu.pipeline_mode<synchronous>, transform_indices = @transform_14, window_bounds = array<i64: 4, 1, 8>}, {pipeline_mode = #tpu.pipeline_mode<synchronous>, transform_indices = @transform_15, window_bounds = array<i64: 4, 16, 8>}, {pipeline_mode = #tpu.pipeline_mode<synchronous>, transform_indices = @transform_16, window_bounds = array<i64: 4, 1, 8>}, {pipeline_mode = #tpu.pipeline_mode<synchronous>, transform_indices = @transform_17, window_bounds = array<i64: 4, 16, 8>}, {pipeline_mode = #tpu.pipeline_mode<synchronous>, transform_indices = @transform_18, window_bounds = array<i64: 4, 1, 8>}, {pipeline_mode = #tpu.pipeline_mode<synchronous>, transform_indices = @transform_19, window_bounds = array<i64: 4, 8, 32>}, {pipeline_mode = #tpu.pipeline_mode<synchronous>, transform_indices = @transform_20, window_bounds = array<i64: 1, 32>}, {pipeline_mode = #tpu.pipeline_mode<synchronous>, transform_indices = @transform_21, window_bounds = array<i64: 1, 32>}, {pipeline_mode = #tpu.pipeline_mode<synchronous>, transform_indices = @transform_22, window_bounds = array<i64: 1, 32>}, {pipeline_mode = #tpu.pipeline_mode<synchronous>, transform_indices = @transform_23, window_bounds = array<i64: 32, 64>}, {pipeline_mode = #tpu.pipeline_mode<synchronous>, transform_indices = @transform_24, window_bounds = array<i64: 1, 64>}, {pipeline_mode = #tpu.pipeline_mode<synchronous>, transform_indices = @transform_25, window_bounds = array<i64: 8, 64>}, {pipeline_mode = #tpu.pipeline_mode<synchronous>, transform_indices = @transform_26, window_bounds = array<i64: 1, 64>}, {pipeline_mode = #tpu.pipeline_mode<synchronous>, transform_indices = @transform_27, window_bounds = array<i64: 8, 64>}, {pipeline_mode = #tpu.pipeline_mode<synchronous>, transform_indices = @transform_28, window_bounds = array<i64: 64, 32>}, {pipeline_mode = #tpu.pipeline_mode<synchronous>, transform_indices = @transform_29, window_bounds = array<i64: 1, 32>}, {pipeline_mode = #tpu.pipeline_mode<synchronous>, transform_indices = @transform_30, window_bounds = array<i64: 8, 32>}, {pipeline_mode = #tpu.pipeline_mode<synchronous>, transform_indices = @transform_31, window_bounds = array<i64: 1, 32>}, {pipeline_mode = #tpu.pipeline_mode<synchronous>, transform_indices = @transform_32, window_bounds = array<i64: 8, 32>}, {pipeline_mode = #tpu.pipeline_mode<synchronous>, transform_indices = @transform_33, window_bounds = array<i64: 1, 32>}, {pipeline_mode = #tpu.pipeline_mode<synchronous>, transform_indices = @transform_34, window_bounds = array<i64: 1, 32>}, {transform_indices = @transform_35, window_bounds = array<i64: 1, 8, 32>}, {transform_indices = @transform_36, window_bounds = array<i64: 1, 4, 8, 8>}]} {
    %c0 = arith.constant 0 : index
    %c0_0 = arith.constant 0 : index
    %c0_1 = arith.constant 0 : index
    %0 = vector.load %arg1[%c0, %c0_0, %c0_1] : memref<1x8x32xf32, #tpu.memory_space<vmem>>, vector<1x8x32xf32>
    %1 = vector.shape_cast %0 : vector<1x8x32xf32> to vector<8x32xf32>
    %c0_2 = arith.constant 0 : index
    %c0_3 = arith.constant 0 : index
    %c0_4 = arith.constant 0 : index
    %2 = vector.load %arg2[%c0_2, %c0_3, %c0_4] : memref<1x8x16xf32, #tpu.memory_space<vmem>>, vector<1x8x16xf32>
    %3 = vector.shape_cast %2 : vector<1x8x16xf32> to vector<8x16xf32>
    %c0_5 = arith.constant 0 : index
    %c0_6 = arith.constant 0 : index
    %c0_7 = arith.constant 0 : index
    %4 = vector.load %arg3[%c0_5, %c0_6, %c0_7] : memref<1x1x8xf32, #tpu.memory_space<vmem>>, vector<1x1x8xf32>
    %5 = vector.shape_cast %4 : vector<1x1x8xf32> to vector<1x8xf32>
    %c0_8 = arith.constant 0 : index
    %c0_9 = arith.constant 0 : index
    %c0_10 = arith.constant 0 : index
    %6 = vector.load %arg4[%c0_8, %c0_9, %c0_10] : memref<4x32x8xf32, #tpu.memory_space<vmem>>, vector<4x32x8xf32>
    %c0_11 = arith.constant 0 : index
    %c0_12 = arith.constant 0 : index
    %c0_13 = arith.constant 0 : index
    %7 = vector.load %arg5[%c0_11, %c0_12, %c0_13] : memref<4x1x8xf32, #tpu.memory_space<vmem>>, vector<4x1x8xf32>
    %c0_14 = arith.constant 0 : index
    %c0_15 = arith.constant 0 : index
    %c0_16 = arith.constant 0 : index
    %8 = vector.load %arg6[%c0_14, %c0_15, %c0_16] : memref<4x32x8xf32, #tpu.memory_space<vmem>>, vector<4x32x8xf32>
    %c0_17 = arith.constant 0 : index
    %c0_18 = arith.constant 0 : index
    %c0_19 = arith.constant 0 : index
    %9 = vector.load %arg7[%c0_17, %c0_18, %c0_19] : memref<4x1x8xf32, #tpu.memory_space<vmem>>, vector<4x1x8xf32>
    %c0_20 = arith.constant 0 : index
    %c0_21 = arith.constant 0 : index
    %c0_22 = arith.constant 0 : index
    %10 = vector.load %arg8[%c0_20, %c0_21, %c0_22] : memref<4x32x8xf32, #tpu.memory_space<vmem>>, vector<4x32x8xf32>
    %c0_23 = arith.constant 0 : index
    %c0_24 = arith.constant 0 : index
    %c0_25 = arith.constant 0 : index
    %11 = vector.load %arg9[%c0_23, %c0_24, %c0_25] : memref<4x1x8xf32, #tpu.memory_space<vmem>>, vector<4x1x8xf32>
    %c0_26 = arith.constant 0 : index
    %c0_27 = arith.constant 0 : index
    %c0_28 = arith.constant 0 : index
    %12 = vector.load %arg10[%c0_26, %c0_27, %c0_28] : memref<4x8x32xf32, #tpu.memory_space<vmem>>, vector<4x8x32xf32>
    %c0_29 = arith.constant 0 : index
    %c0_30 = arith.constant 0 : index
    %13 = vector.load %arg11[%c0_29, %c0_30] : memref<1x32xf32, #tpu.memory_space<vmem>>, vector<1x32xf32>
    %14 = vector.shape_cast %1 : vector<8x32xf32> to vector<1x8x32xf32>
    %15 = vector.shape_cast %14 : vector<1x8x32xf32> to vector<1x8x32xf32>
    %16 = vector.broadcast %15 : vector<1x8x32xf32> to vector<4x8x32xf32>
    %17 = vector.shape_cast %1 : vector<8x32xf32> to vector<1x8x32xf32>
    %18 = vector.shape_cast %17 : vector<1x8x32xf32> to vector<1x8x32xf32>
    %19 = vector.broadcast %18 : vector<1x8x32xf32> to vector<4x8x32xf32>
    "tpu.trace_start"() <{level = 10 : i32, message = "hnc,hcd->hnd"}> : () -> ()
    %cst = arith.constant dense<0.000000e+00> : vector<4x8x8xf32>
    %20 = tpu.matmul %16, %6, %cst {dimension_numbers = #tpu.dot_dimension_numbers<[2], [1], [1], [2], [0, 0, 0, 1, 1, 2], [0], [0]>} : vector<4x8x32xf32>, vector<4x32x8xf32>, vector<4x8x8xf32> -> vector<4x8x8xf32>
    "tpu.trace_stop"() : () -> ()
    %21 = vector.broadcast %7 : vector<4x1x8xf32> to vector<4x8x8xf32>
    %22 = arith.addf %20, %21 : vector<4x8x8xf32>
    "tpu.trace_start"() <{level = 10 : i32, message = "hmc,hcd->hmd"}> : () -> ()
    %cst_31 = arith.constant dense<0.000000e+00> : vector<4x8x8xf32>
    %23 = tpu.matmul %19, %8, %cst_31 {dimension_numbers = #tpu.dot_dimension_numbers<[2], [1], [1], [2], [0, 0, 0, 1, 1, 2], [0], [0]>} : vector<4x8x32xf32>, vector<4x32x8xf32>, vector<4x8x8xf32> -> vector<4x8x8xf32>
    "tpu.trace_stop"() : () -> ()
    %24 = vector.broadcast %9 : vector<4x1x8xf32> to vector<4x8x8xf32>
    %25 = arith.addf %23, %24 : vector<4x8x8xf32>
    "tpu.trace_start"() <{level = 10 : i32, message = "hmc,hcd->hmd"}> : () -> ()
    %cst_32 = arith.constant dense<0.000000e+00> : vector<4x8x8xf32>
    %26 = tpu.matmul %19, %10, %cst_32 {dimension_numbers = #tpu.dot_dimension_numbers<[2], [1], [1], [2], [0, 0, 0, 1, 1, 2], [0], [0]>} : vector<4x8x32xf32>, vector<4x32x8xf32>, vector<4x8x8xf32> -> vector<4x8x8xf32>
    "tpu.trace_stop"() : () -> ()
    %27 = vector.broadcast %11 : vector<4x1x8xf32> to vector<4x8x8xf32>
    %28 = arith.addf %26, %27 : vector<4x8x8xf32>
    "tpu.trace_start"() <{level = 10 : i32, message = "hnd,hmd->hnm"}> : () -> ()
    %cst_33 = arith.constant dense<0.000000e+00> : vector<4x8x8xf32>
    %29 = tpu.matmul %22, %25, %cst_33 {dimension_numbers = #tpu.dot_dimension_numbers<[2], [2], [1], [1], [0, 0, 0, 1, 1, 1], [0], [0]>} : vector<4x8x8xf32>, vector<4x8x8xf32>, vector<4x8x8xf32> -> vector<4x8x8xf32>
    "tpu.trace_stop"() : () -> ()
    %cst_34 = arith.constant 0.353553385 : f32
    %30 = vector.broadcast %cst_34 : f32 to vector<4x8x8xf32>
    %31 = arith.mulf %29, %30 : vector<4x8x8xf32>
    %cst_35 = arith.constant dense<0xFF800000> : vector<4x8xf32>
    %32 = vector.multi_reduction <maximumf>, %31, %cst_35 [2] : vector<4x8x8xf32> to vector<4x8xf32>
    %33 = vector.shape_cast %32 : vector<4x8xf32> to vector<4x8x1xf32>
    %34 = vector.broadcast %33 : vector<4x8x1xf32> to vector<4x8x8xf32>
    %35 = arith.subf %31, %34 : vector<4x8x8xf32>
    %36 = math.exp %35 : vector<4x8x8xf32>
    %cst_36 = arith.constant dense<0.000000e+00> : vector<4x8xf32>
    %37 = vector.multi_reduction <add>, %36, %cst_36 [2] : vector<4x8x8xf32> to vector<4x8xf32>
    %38 = vector.shape_cast %37 : vector<4x8xf32> to vector<4x8x1xf32>
    %39 = tpu.reciprocal %38 {approx = true} : vector<4x8x1xf32> -> vector<4x8x1xf32>
    %40 = arith.mulf %38, %39 : vector<4x8x1xf32>
    %cst_37 = arith.constant 2.000000e+00 : f32
    %41 = vector.broadcast %cst_37 : f32 to vector<4x8x1xf32>
    %42 = arith.subf %41, %40 : vector<4x8x1xf32>
    %43 = arith.mulf %39, %42 : vector<4x8x1xf32>
    %44 = vector.broadcast %43 : vector<4x8x1xf32> to vector<4x8x8xf32>
    %45 = arith.mulf %36, %44 : vector<4x8x8xf32>
    "tpu.trace_start"() <{level = 10 : i32, message = "hnm,hmd->hnd"}> : () -> ()
    %cst_38 = arith.constant dense<0.000000e+00> : vector<4x8x8xf32>
    %46 = tpu.matmul %45, %28, %cst_38 {dimension_numbers = #tpu.dot_dimension_numbers<[2], [1], [1], [2], [0, 0, 0, 1, 1, 2], [0], [0]>} : vector<4x8x8xf32>, vector<4x8x8xf32>, vector<4x8x8xf32> -> vector<4x8x8xf32>
    "tpu.trace_stop"() : () -> ()
    "tpu.trace_start"() <{level = 10 : i32, message = "hnd,hdc->hnc"}> : () -> ()
    %cst_39 = arith.constant dense<0.000000e+00> : vector<4x8x32xf32>
    %47 = tpu.matmul %46, %12, %cst_39 {dimension_numbers = #tpu.dot_dimension_numbers<[2], [1], [1], [2], [0, 0, 0, 1, 1, 2], [0], [0]>} : vector<4x8x8xf32>, vector<4x8x32xf32>, vector<4x8x32xf32> -> vector<4x8x32xf32>
    "tpu.trace_stop"() : () -> ()
    %cst_40 = arith.constant dense<0.000000e+00> : vector<8x32xf32>
    %48 = vector.multi_reduction <add>, %47, %cst_40 [0] : vector<4x8x32xf32> to vector<8x32xf32>
    %49 = vector.broadcast %13 : vector<1x32xf32> to vector<8x32xf32>
    %50 = arith.addf %48, %49 : vector<8x32xf32>
    %51 = arith.addf %50, %1 : vector<8x32xf32>
    %c0_41 = arith.constant 0 : index
    %c0_42 = arith.constant 0 : index
    %52 = vector.load %arg12[%c0_41, %c0_42] : memref<1x32xf32, #tpu.memory_space<vmem>>, vector<1x32xf32>
    %c0_43 = arith.constant 0 : index
    %c0_44 = arith.constant 0 : index
    %53 = vector.load %arg13[%c0_43, %c0_44] : memref<1x32xf32, #tpu.memory_space<vmem>>, vector<1x32xf32>
    %cst_45 = arith.constant dense<0.000000e+00> : vector<8xf32>
    %54 = vector.multi_reduction <add>, %51, %cst_45 [1] : vector<8x32xf32> to vector<8xf32>
    %55 = vector.shape_cast %54 : vector<8xf32> to vector<8x1xf32>
    %cst_46 = arith.constant 3.200000e+01 : f32
    %56 = vector.broadcast %cst_46 : f32 to vector<8x1xf32>
    %57 = arith.divf %55, %56 : vector<8x1xf32>
    %58 = vector.broadcast %57 : vector<8x1xf32> to vector<8x32xf32>
    %59 = arith.subf %51, %58 : vector<8x32xf32>
    %60 = arith.mulf %59, %59 : vector<8x32xf32>
    %cst_47 = arith.constant dense<0.000000e+00> : vector<8xf32>
    %61 = vector.multi_reduction <add>, %60, %cst_47 [1] : vector<8x32xf32> to vector<8xf32>
    %62 = vector.shape_cast %61 : vector<8xf32> to vector<8x1xf32>
    %cst_48 = arith.constant 3.200000e+01 : f32
    %63 = vector.broadcast %cst_48 : f32 to vector<8x1xf32>
    %64 = arith.divf %62, %63 : vector<8x1xf32>
    %65 = vector.broadcast %57 : vector<8x1xf32> to vector<8x32xf32>
    %66 = arith.subf %51, %65 : vector<8x32xf32>
    %cst_49 = arith.constant 9.99999974E-6 : f32
    %67 = vector.broadcast %cst_49 : f32 to vector<8x1xf32>
    %68 = arith.addf %64, %67 : vector<8x1xf32>
    %69 = math.rsqrt %68 : vector<8x1xf32>
    %70 = vector.broadcast %69 : vector<8x1xf32> to vector<8x32xf32>
    %71 = arith.mulf %66, %70 : vector<8x32xf32>
    %72 = vector.broadcast %52 : vector<1x32xf32> to vector<8x32xf32>
    %73 = arith.mulf %71, %72 : vector<8x32xf32>
    %74 = vector.broadcast %53 : vector<1x32xf32> to vector<8x32xf32>
    %75 = arith.addf %73, %74 : vector<8x32xf32>
    %c0_50 = arith.constant 0 : index
    %c0_51 = arith.constant 0 : index
    %c0_52 = arith.constant 0 : index
    %76 = vector.load %arg14[%c0_50, %c0_51, %c0_52] : memref<4x32x8xf32, #tpu.memory_space<vmem>>, vector<4x32x8xf32>
    %c0_53 = arith.constant 0 : index
    %c0_54 = arith.constant 0 : index
    %c0_55 = arith.constant 0 : index
    %77 = vector.load %arg15[%c0_53, %c0_54, %c0_55] : memref<4x1x8xf32, #tpu.memory_space<vmem>>, vector<4x1x8xf32>
    %c0_56 = arith.constant 0 : index
    %c0_57 = arith.constant 0 : index
    %c0_58 = arith.constant 0 : index
    %78 = vector.load %arg16[%c0_56, %c0_57, %c0_58] : memref<4x16x8xf32, #tpu.memory_space<vmem>>, vector<4x16x8xf32>
    %c0_59 = arith.constant 0 : index
    %c0_60 = arith.constant 0 : index
    %c0_61 = arith.constant 0 : index
    %79 = vector.load %arg17[%c0_59, %c0_60, %c0_61] : memref<4x1x8xf32, #tpu.memory_space<vmem>>, vector<4x1x8xf32>
    %c0_62 = arith.constant 0 : index
    %c0_63 = arith.constant 0 : index
    %c0_64 = arith.constant 0 : index
    %80 = vector.load %arg18[%c0_62, %c0_63, %c0_64] : memref<4x16x8xf32, #tpu.memory_space<vmem>>, vector<4x16x8xf32>
    %c0_65 = arith.constant 0 : index
    %c0_66 = arith.constant 0 : index
    %c0_67 = arith.constant 0 : index
    %81 = vector.load %arg19[%c0_65, %c0_66, %c0_67] : memref<4x1x8xf32, #tpu.memory_space<vmem>>, vector<4x1x8xf32>
    %c0_68 = arith.constant 0 : index
    %c0_69 = arith.constant 0 : index
    %c0_70 = arith.constant 0 : index
    %82 = vector.load %arg20[%c0_68, %c0_69, %c0_70] : memref<4x8x32xf32, #tpu.memory_space<vmem>>, vector<4x8x32xf32>
    %c0_71 = arith.constant 0 : index
    %c0_72 = arith.constant 0 : index
    %83 = vector.load %arg21[%c0_71, %c0_72] : memref<1x32xf32, #tpu.memory_space<vmem>>, vector<1x32xf32>
    %84 = vector.shape_cast %75 : vector<8x32xf32> to vector<1x8x32xf32>
    %85 = vector.shape_cast %84 : vector<1x8x32xf32> to vector<1x8x32xf32>
    %86 = vector.broadcast %85 : vector<1x8x32xf32> to vector<4x8x32xf32>
    %87 = vector.shape_cast %3 : vector<8x16xf32> to vector<1x8x16xf32>
    %88 = vector.shape_cast %87 : vector<1x8x16xf32> to vector<1x8x16xf32>
    %89 = vector.broadcast %88 : vector<1x8x16xf32> to vector<4x8x16xf32>
    "tpu.trace_start"() <{level = 10 : i32, message = "hnc,hcd->hnd"}> : () -> ()
    %cst_73 = arith.constant dense<0.000000e+00> : vector<4x8x8xf32>
    %90 = tpu.matmul %86, %76, %cst_73 {dimension_numbers = #tpu.dot_dimension_numbers<[2], [1], [1], [2], [0, 0, 0, 1, 1, 2], [0], [0]>} : vector<4x8x32xf32>, vector<4x32x8xf32>, vector<4x8x8xf32> -> vector<4x8x8xf32>
    "tpu.trace_stop"() : () -> ()
    %91 = vector.broadcast %77 : vector<4x1x8xf32> to vector<4x8x8xf32>
    %92 = arith.addf %90, %91 : vector<4x8x8xf32>
    "tpu.trace_start"() <{level = 10 : i32, message = "hmc,hcd->hmd"}> : () -> ()
    %cst_74 = arith.constant dense<0.000000e+00> : vector<4x8x8xf32>
    %93 = tpu.matmul %89, %78, %cst_74 {dimension_numbers = #tpu.dot_dimension_numbers<[2], [1], [1], [2], [0, 0, 0, 1, 1, 2], [0], [0]>} : vector<4x8x16xf32>, vector<4x16x8xf32>, vector<4x8x8xf32> -> vector<4x8x8xf32>
    "tpu.trace_stop"() : () -> ()
    %94 = vector.broadcast %79 : vector<4x1x8xf32> to vector<4x8x8xf32>
    %95 = arith.addf %93, %94 : vector<4x8x8xf32>
    "tpu.trace_start"() <{level = 10 : i32, message = "hmc,hcd->hmd"}> : () -> ()
    %cst_75 = arith.constant dense<0.000000e+00> : vector<4x8x8xf32>
    %96 = tpu.matmul %89, %80, %cst_75 {dimension_numbers = #tpu.dot_dimension_numbers<[2], [1], [1], [2], [0, 0, 0, 1, 1, 2], [0], [0]>} : vector<4x8x16xf32>, vector<4x16x8xf32>, vector<4x8x8xf32> -> vector<4x8x8xf32>
    "tpu.trace_stop"() : () -> ()
    %97 = vector.broadcast %81 : vector<4x1x8xf32> to vector<4x8x8xf32>
    %98 = arith.addf %96, %97 : vector<4x8x8xf32>
    "tpu.trace_start"() <{level = 10 : i32, message = "hnd,hmd->hnm"}> : () -> ()
    %cst_76 = arith.constant dense<0.000000e+00> : vector<4x8x8xf32>
    %99 = tpu.matmul %92, %95, %cst_76 {dimension_numbers = #tpu.dot_dimension_numbers<[2], [2], [1], [1], [0, 0, 0, 1, 1, 1], [0], [0]>} : vector<4x8x8xf32>, vector<4x8x8xf32>, vector<4x8x8xf32> -> vector<4x8x8xf32>
    "tpu.trace_stop"() : () -> ()
    %cst_77 = arith.constant 0.353553385 : f32
    %100 = vector.broadcast %cst_77 : f32 to vector<4x8x8xf32>
    %101 = arith.mulf %99, %100 : vector<4x8x8xf32>
    %cst_78 = arith.constant dense<0xFF800000> : vector<4x8xf32>
    %102 = vector.multi_reduction <maximumf>, %101, %cst_78 [2] : vector<4x8x8xf32> to vector<4x8xf32>
    %103 = vector.shape_cast %102 : vector<4x8xf32> to vector<4x8x1xf32>
    %104 = vector.broadcast %103 : vector<4x8x1xf32> to vector<4x8x8xf32>
    %105 = arith.subf %101, %104 : vector<4x8x8xf32>
    %106 = math.exp %105 : vector<4x8x8xf32>
    %cst_79 = arith.constant dense<0.000000e+00> : vector<4x8xf32>
    %107 = vector.multi_reduction <add>, %106, %cst_79 [2] : vector<4x8x8xf32> to vector<4x8xf32>
    %108 = vector.shape_cast %107 : vector<4x8xf32> to vector<4x8x1xf32>
    %109 = tpu.reciprocal %108 {approx = true} : vector<4x8x1xf32> -> vector<4x8x1xf32>
    %110 = arith.mulf %108, %109 : vector<4x8x1xf32>
    %cst_80 = arith.constant 2.000000e+00 : f32
    %111 = vector.broadcast %cst_80 : f32 to vector<4x8x1xf32>
    %112 = arith.subf %111, %110 : vector<4x8x1xf32>
    %113 = arith.mulf %109, %112 : vector<4x8x1xf32>
    %114 = vector.broadcast %113 : vector<4x8x1xf32> to vector<4x8x8xf32>
    %115 = arith.mulf %106, %114 : vector<4x8x8xf32>
    "tpu.trace_start"() <{level = 10 : i32, message = "hnm,hmd->hnd"}> : () -> ()
    %cst_81 = arith.constant dense<0.000000e+00> : vector<4x8x8xf32>
    %116 = tpu.matmul %115, %98, %cst_81 {dimension_numbers = #tpu.dot_dimension_numbers<[2], [1], [1], [2], [0, 0, 0, 1, 1, 2], [0], [0]>} : vector<4x8x8xf32>, vector<4x8x8xf32>, vector<4x8x8xf32> -> vector<4x8x8xf32>
    "tpu.trace_stop"() : () -> ()
    "tpu.trace_start"() <{level = 10 : i32, message = "hnd,hdc->hnc"}> : () -> ()
    %cst_82 = arith.constant dense<0.000000e+00> : vector<4x8x32xf32>
    %117 = tpu.matmul %116, %82, %cst_82 {dimension_numbers = #tpu.dot_dimension_numbers<[2], [1], [1], [2], [0, 0, 0, 1, 1, 2], [0], [0]>} : vector<4x8x8xf32>, vector<4x8x32xf32>, vector<4x8x32xf32> -> vector<4x8x32xf32>
    "tpu.trace_stop"() : () -> ()
    %cst_83 = arith.constant dense<0.000000e+00> : vector<8x32xf32>
    %118 = vector.multi_reduction <add>, %117, %cst_83 [0] : vector<4x8x32xf32> to vector<8x32xf32>
    %119 = vector.broadcast %83 : vector<1x32xf32> to vector<8x32xf32>
    %120 = arith.addf %118, %119 : vector<8x32xf32>
    %121 = arith.addf %120, %75 : vector<8x32xf32>
    %c0_84 = arith.constant 0 : index
    %c0_85 = arith.constant 0 : index
    %122 = vector.load %arg22[%c0_84, %c0_85] : memref<1x32xf32, #tpu.memory_space<vmem>>, vector<1x32xf32>
    %c0_86 = arith.constant 0 : index
    %c0_87 = arith.constant 0 : index
    %123 = vector.load %arg23[%c0_86, %c0_87] : memref<1x32xf32, #tpu.memory_space<vmem>>, vector<1x32xf32>
    %cst_88 = arith.constant dense<0.000000e+00> : vector<8xf32>
    %124 = vector.multi_reduction <add>, %121, %cst_88 [1] : vector<8x32xf32> to vector<8xf32>
    %125 = vector.shape_cast %124 : vector<8xf32> to vector<8x1xf32>
    %cst_89 = arith.constant 3.200000e+01 : f32
    %126 = vector.broadcast %cst_89 : f32 to vector<8x1xf32>
    %127 = arith.divf %125, %126 : vector<8x1xf32>
    %128 = vector.broadcast %127 : vector<8x1xf32> to vector<8x32xf32>
    %129 = arith.subf %121, %128 : vector<8x32xf32>
    %130 = arith.mulf %129, %129 : vector<8x32xf32>
    %cst_90 = arith.constant dense<0.000000e+00> : vector<8xf32>
    %131 = vector.multi_reduction <add>, %130, %cst_90 [1] : vector<8x32xf32> to vector<8xf32>
    %132 = vector.shape_cast %131 : vector<8xf32> to vector<8x1xf32>
    %cst_91 = arith.constant 3.200000e+01 : f32
    %133 = vector.broadcast %cst_91 : f32 to vector<8x1xf32>
    %134 = arith.divf %132, %133 : vector<8x1xf32>
    %135 = vector.broadcast %127 : vector<8x1xf32> to vector<8x32xf32>
    %136 = arith.subf %121, %135 : vector<8x32xf32>
    %cst_92 = arith.constant 9.99999974E-6 : f32
    %137 = vector.broadcast %cst_92 : f32 to vector<8x1xf32>
    %138 = arith.addf %134, %137 : vector<8x1xf32>
    %139 = math.rsqrt %138 : vector<8x1xf32>
    %140 = vector.broadcast %139 : vector<8x1xf32> to vector<8x32xf32>
    %141 = arith.mulf %136, %140 : vector<8x32xf32>
    %142 = vector.broadcast %122 : vector<1x32xf32> to vector<8x32xf32>
    %143 = arith.mulf %141, %142 : vector<8x32xf32>
    %144 = vector.broadcast %123 : vector<1x32xf32> to vector<8x32xf32>
    %145 = arith.addf %143, %144 : vector<8x32xf32>
    %c0_93 = arith.constant 0 : index
    %c0_94 = arith.constant 0 : index
    %146 = vector.load %arg26[%c0_93, %c0_94] : memref<8x64xf32, #tpu.memory_space<vmem>>, vector<8x64xf32>
    %cst_95 = arith.constant dense<0.000000e+00> : vector<1x64xf32>
    %147 = tpu.matmul %5, %146, %cst_95 {dimension_numbers = #tpu.dot_dimension_numbers<[1], [0], [0], [1], [0, 0, 1, 1], [], []>} : vector<1x8xf32>, vector<8x64xf32>, vector<1x64xf32> -> vector<1x64xf32>
    %c0_96 = arith.constant 0 : index
    %c0_97 = arith.constant 0 : index
    %148 = vector.load %arg27[%c0_96, %c0_97] : memref<1x64xf32, #tpu.memory_space<vmem>>, vector<1x64xf32>
    %149 = arith.addf %147, %148 : vector<1x64xf32>
    %150 = arith.negf %149 : vector<1x64xf32>
    %151 = math.exp %150 : vector<1x64xf32>
    %cst_98 = arith.constant 1.000000e+00 : f32
    %152 = vector.broadcast %cst_98 : f32 to vector<1x64xf32>
    %153 = arith.addf %152, %151 : vector<1x64xf32>
    %154 = arith.divf %152, %153 : vector<1x64xf32>
    %c0_99 = arith.constant 0 : index
    %c0_100 = arith.constant 0 : index
    %155 = vector.load %arg28[%c0_99, %c0_100] : memref<8x64xf32, #tpu.memory_space<vmem>>, vector<8x64xf32>
    %cst_101 = arith.constant dense<0.000000e+00> : vector<1x64xf32>
    %156 = tpu.matmul %5, %155, %cst_101 {dimension_numbers = #tpu.dot_dimension_numbers<[1], [0], [0], [1], [0, 0, 1, 1], [], []>} : vector<1x8xf32>, vector<8x64xf32>, vector<1x64xf32> -> vector<1x64xf32>
    %c0_102 = arith.constant 0 : index
    %c0_103 = arith.constant 0 : index
    %157 = vector.load %arg24[%c0_102, %c0_103] : memref<32x64xf32, #tpu.memory_space<vmem>>, vector<32x64xf32>
    %cst_104 = arith.constant dense<0.000000e+00> : vector<8x64xf32>
    %158 = tpu.matmul %145, %157, %cst_104 {dimension_numbers = #tpu.dot_dimension_numbers<[1], [0], [0], [1], [0, 0, 1, 1], [], []>} : vector<8x32xf32>, vector<32x64xf32>, vector<8x64xf32> -> vector<8x64xf32>
    %c0_105 = arith.constant 0 : index
    %c0_106 = arith.constant 0 : index
    %159 = vector.load %arg25[%c0_105, %c0_106] : memref<1x64xf32, #tpu.memory_space<vmem>>, vector<1x64xf32>
    %160 = vector.broadcast %159 : vector<1x64xf32> to vector<8x64xf32>
    %161 = arith.addf %158, %160 : vector<8x64xf32>
    %162 = vector.broadcast %154 : vector<1x64xf32> to vector<8x64xf32>
    %163 = arith.mulf %161, %162 : vector<8x64xf32>
    %164 = vector.broadcast %156 : vector<1x64xf32> to vector<8x64xf32>
    %165 = arith.addf %163, %164 : vector<8x64xf32>
    %cst_107 = arith.constant 0.000000e+00 : f32
    %166 = vector.broadcast %cst_107 : f32 to vector<8x64xf32>
    %167 = arith.maximumf %165, %166 : vector<8x64xf32>
    %c0_108 = arith.constant 0 : index
    %c0_109 = arith.constant 0 : index
    %168 = vector.load %arg31[%c0_108, %c0_109] : memref<8x32xf32, #tpu.memory_space<vmem>>, vector<8x32xf32>
    %cst_110 = arith.constant dense<0.000000e+00> : vector<1x32xf32>
    %169 = tpu.matmul %5, %168, %cst_110 {dimension_numbers = #tpu.dot_dimension_numbers<[1], [0], [0], [1], [0, 0, 1, 1], [], []>} : vector<1x8xf32>, vector<8x32xf32>, vector<1x32xf32> -> vector<1x32xf32>
    %c0_111 = arith.constant 0 : index
    %c0_112 = arith.constant 0 : index
    %170 = vector.load %arg32[%c0_111, %c0_112] : memref<1x32xf32, #tpu.memory_space<vmem>>, vector<1x32xf32>
    %171 = arith.addf %169, %170 : vector<1x32xf32>
    %172 = arith.negf %171 : vector<1x32xf32>
    %173 = math.exp %172 : vector<1x32xf32>
    %cst_113 = arith.constant 1.000000e+00 : f32
    %174 = vector.broadcast %cst_113 : f32 to vector<1x32xf32>
    %175 = arith.addf %174, %173 : vector<1x32xf32>
    %176 = arith.divf %174, %175 : vector<1x32xf32>
    %c0_114 = arith.constant 0 : index
    %c0_115 = arith.constant 0 : index
    %177 = vector.load %arg33[%c0_114, %c0_115] : memref<8x32xf32, #tpu.memory_space<vmem>>, vector<8x32xf32>
    %cst_116 = arith.constant dense<0.000000e+00> : vector<1x32xf32>
    %178 = tpu.matmul %5, %177, %cst_116 {dimension_numbers = #tpu.dot_dimension_numbers<[1], [0], [0], [1], [0, 0, 1, 1], [], []>} : vector<1x8xf32>, vector<8x32xf32>, vector<1x32xf32> -> vector<1x32xf32>
    %c0_117 = arith.constant 0 : index
    %c0_118 = arith.constant 0 : index
    %179 = vector.load %arg29[%c0_117, %c0_118] : memref<64x32xf32, #tpu.memory_space<vmem>>, vector<64x32xf32>
    %cst_119 = arith.constant dense<0.000000e+00> : vector<8x32xf32>
    %180 = tpu.matmul %167, %179, %cst_119 {dimension_numbers = #tpu.dot_dimension_numbers<[1], [0], [0], [1], [0, 0, 1, 1], [], []>} : vector<8x64xf32>, vector<64x32xf32>, vector<8x32xf32> -> vector<8x32xf32>
    %c0_120 = arith.constant 0 : index
    %c0_121 = arith.constant 0 : index
    %181 = vector.load %arg30[%c0_120, %c0_121] : memref<1x32xf32, #tpu.memory_space<vmem>>, vector<1x32xf32>
    %182 = vector.broadcast %181 : vector<1x32xf32> to vector<8x32xf32>
    %183 = arith.addf %180, %182 : vector<8x32xf32>
    %184 = vector.broadcast %176 : vector<1x32xf32> to vector<8x32xf32>
    %185 = arith.mulf %183, %184 : vector<8x32xf32>
    %186 = vector.broadcast %178 : vector<1x32xf32> to vector<8x32xf32>
    %187 = arith.addf %185, %186 : vector<8x32xf32>
    %188 = arith.addf %187, %145 : vector<8x32xf32>
    %c0_122 = arith.constant 0 : index
    %c0_123 = arith.constant 0 : index
    %189 = vector.load %arg34[%c0_122, %c0_123] : memref<1x32xf32, #tpu.memory_space<vmem>>, vector<1x32xf32>
    %c0_124 = arith.constant 0 : index
    %c0_125 = arith.constant 0 : index
    %190 = vector.load %arg35[%c0_124, %c0_125] : memref<1x32xf32, #tpu.memory_space<vmem>>, vector<1x32xf32>
    %cst_126 = arith.constant dense<0.000000e+00> : vector<8xf32>
    %191 = vector.multi_reduction <add>, %188, %cst_126 [1] : vector<8x32xf32> to vector<8xf32>
    %192 = vector.shape_cast %191 : vector<8xf32> to vector<8x1xf32>
    %cst_127 = arith.constant 3.200000e+01 : f32
    %193 = vector.broadcast %cst_127 : f32 to vector<8x1xf32>
    %194 = arith.divf %192, %193 : vector<8x1xf32>
    %195 = vector.broadcast %194 : vector<8x1xf32> to vector<8x32xf32>
    %196 = arith.subf %188, %195 : vector<8x32xf32>
    %197 = arith.mulf %196, %196 : vector<8x32xf32>
    %cst_128 = arith.constant dense<0.000000e+00> : vector<8xf32>
    %198 = vector.multi_reduction <add>, %197, %cst_128 [1] : vector<8x32xf32> to vector<8xf32>
    %199 = vector.shape_cast %198 : vector<8xf32> to vector<8x1xf32>
    %cst_129 = arith.constant 3.200000e+01 : f32
    %200 = vector.broadcast %cst_129 : f32 to vector<8x1xf32>
    %201 = arith.divf %199, %200 : vector<8x1xf32>
    %202 = vector.broadcast %194 : vector<8x1xf32> to vector<8x32xf32>
    %203 = arith.subf %188, %202 : vector<8x32xf32>
    %cst_130 = arith.constant 9.99999974E-6 : f32
    %204 = vector.broadcast %cst_130 : f32 to vector<8x1xf32>
    %205 = arith.addf %201, %204 : vector<8x1xf32>
    %206 = math.rsqrt %205 : vector<8x1xf32>
    %207 = vector.broadcast %206 : vector<8x1xf32> to vector<8x32xf32>
    %208 = arith.mulf %203, %207 : vector<8x32xf32>
    %209 = vector.broadcast %189 : vector<1x32xf32> to vector<8x32xf32>
    %210 = arith.mulf %208, %209 : vector<8x32xf32>
    %211 = vector.broadcast %190 : vector<1x32xf32> to vector<8x32xf32>
    %212 = arith.addf %210, %211 : vector<8x32xf32>
    %c0_131 = arith.constant 0 : index
    %c0_132 = arith.constant 0 : index
    %c0_133 = arith.constant 0 : index
    %213 = vector.load %arg36[%c0_131, %c0_132, %c0_133] : memref<1x8x32xf32, #tpu.memory_space<vmem>>, vector<1x8x32xf32>
    %214 = vector.shape_cast %213 : vector<1x8x32xf32> to vector<8x32xf32>
    %215 = vector.shape_cast %212 : vector<8x32xf32> to vector<1x8x32xf32>
    tpu.vector_store %arg36[%c0_131, %c0_132, %c0_133], %215 {strides = array<i32>} : memref<1x8x32xf32, #tpu.memory_space<vmem>>, vector<1x8x32xf32>,
    %c0_134 = arith.constant 0 : index
    %c0_135 = arith.constant 0 : index
    %c0_136 = arith.constant 0 : index
    %c0_137 = arith.constant 0 : index
    %216 = vector.load %arg37[%c0_134, %c0_135, %c0_136, %c0_137] : memref<1x4x8x8xf32, #tpu.memory_space<vmem>>, vector<1x4x8x8xf32>
    %217 = vector.shape_cast %216 : vector<1x4x8x8xf32> to vector<4x8x8xf32>
    %218 = vector.shape_cast %115 : vector<4x8x8xf32> to vector<1x4x8x8xf32>
    tpu.vector_store %arg37[%c0_134, %c0_135, %c0_136, %c0_137], %218 {strides = array<i32>} : memref<1x4x8x8xf32, #tpu.memory_space<vmem>>, vector<1x4x8x8xf32>,
    return
  }
  func.func @transform_0(%arg0: i32) -> (i32, i32, i32) {
    %c0_i32 = arith.constant 0 : i32
    %c0_i32_0 = arith.constant 0 : i32
    %c0_i32_1 = arith.constant 0 : i32
    return %arg0, %c0_i32, %c0_i32_0 : i32, i32, i32
  }
  func.func @transform_1(%arg0: i32) -> (i32, i32, i32) {
    %c0_i32 = arith.constant 0 : i32
    %c0_i32_0 = arith.constant 0 : i32
    %c0_i32_1 = arith.constant 0 : i32
    return %arg0, %c0_i32, %c0_i32_0 : i32, i32, i32
  }
  func.func @transform_2(%arg0: i32) -> (i32, i32, i32) {
    %c0_i32 = arith.constant 0 : i32
    %c0_i32_0 = arith.constant 0 : i32
    %c0_i32_1 = arith.constant 0 : i32
    return %arg0, %c0_i32, %c0_i32_0 : i32, i32, i32
  }
  func.func @transform_3(%arg0: i32) -> (i32, i32, i32) {
    %c0_i32 = arith.constant 0 : i32
    %c0_i32_0 = arith.constant 0 : i32
    %c0_i32_1 = arith.constant 0 : i32
    %c0_i32_2 = arith.constant 0 : i32
    return %c0_i32, %c0_i32_0, %c0_i32_1 : i32, i32, i32
  }
  func.func @transform_4(%arg0: i32) -> (i32, i32, i32) {
    %c0_i32 = arith.constant 0 : i32
    %c0_i32_0 = arith.constant 0 : i32
    %c0_i32_1 = arith.constant 0 : i32
    %c0_i32_2 = arith.constant 0 : i32
    return %c0_i32, %c0_i32_0, %c0_i32_1 : i32, i32, i32
  }
  func.func @transform_5(%arg0: i32) -> (i32, i32, i32) {
    %c0_i32 = arith.constant 0 : i32
    %c0_i32_0 = arith.constant 0 : i32
    %c0_i32_1 = arith.constant 0 : i32
    %c0_i32_2 = arith.constant 0 : i32
    return %c0_i32, %c0_i32_0, %c0_i32_1 : i32, i32, i32
  }
  func.func @transform_6(%arg0: i32) -> (i32, i32, i32) {
    %c0_i32 = arith.constant 0 : i32
    %c0_i32_0 = arith.constant 0 : i32
    %c0_i32_1 = arith.constant 0 : i32
    %c0_i32_2 = arith.constant 0 : i32
    return %c0_i32, %c0_i32_0, %c0_i32_1 : i32, i32, i32
  }
  func.func @transform_7(%arg0: i32) -> (i32, i32, i32) {
    %c0_i32 = arith.constant 0 : i32
    %c0_i32_0 = arith.constant 0 : i32
    %c0_i32_1 = arith.constant 0 : i32
    %c0_i32_2 = arith.constant 0 : i32
    return %c0_i32, %c0_i32_0, %c0_i32_1 : i32, i32, i32
  }
  func.func @transform_8(%arg0: i32) -> (i32, i32, i32) {
    %c0_i32 = arith.constant 0 : i32
    %c0_i32_0 = arith.constant 0 : i32
    %c0_i32_1 = arith.constant 0 : i32
    %c0_i32_2 = arith.constant 0 : i32
    return %c0_i32, %c0_i32_0, %c0_i32_1 : i32, i32, i32
  }
  func.func @transform_9(%arg0: i32) -> (i32, i32, i32) {
    %c0_i32 = arith.constant 0 : i32
    %c0_i32_0 = arith.constant 0 : i32
    %c0_i32_1 = arith.constant 0 : i32
    %c0_i32_2 = arith.constant 0 : i32
    return %c0_i32, %c0_i32_0, %c0_i32_1 : i32, i32, i32
  }
  func.func @transform_10(%arg0: i32) -> (i32, i32) {
    %c0_i32 = arith.constant 0 : i32
    %c0_i32_0 = arith.constant 0 : i32
    %c0_i32_1 = arith.constant 0 : i32
    return %c0_i32, %c0_i32_0 : i32, i32
  }
  func.func @transform_11(%arg0: i32) -> (i32, i32) {
    %c0_i32 = arith.constant 0 : i32
    %c0_i32_0 = arith.constant 0 : i32
    %c0_i32_1 = arith.constant 0 : i32
    return %c0_i32, %c0_i32_0 : i32, i32
  }
  func.func @transform_12(%arg0: i32) -> (i32, i32) {
    %c0_i32 = arith.constant 0 : i32
    %c0_i32_0 = arith.constant 0 : i32
    %c0_i32_1 = arith.constant 0 : i32
    return %c0_i32, %c0_i32_0 : i32, i32
  }
  func.func @transform_13(%arg0: i32) -> (i32, i32, i32) {
    %c0_i32 = arith.constant 0 : i32
    %c0_i32_0 = arith.constant 0 : i32
    %c0_i32_1 = arith.constant 0 : i32
    %c0_i32_2 = arith.constant 0 : i32
    return %c0_i32, %c0_i32_0, %c0_i32_1 : i32, i32, i32
  }
  func.func @transform_14(%arg0: i32) -> (i32, i32, i32) {
    %c0_i32 = arith.constant 0 : i32
    %c0_i32_0 = arith.constant 0 : i32
    %c0_i32_1 = arith.constant 0 : i32
    %c0_i32_2 = arith.constant 0 : i32
    return %c0_i32, %c0_i32_0, %c0_i32_1 : i32, i32, i32
  }
  func.func @transform_15(%arg0: i32) -> (i32, i32, i32) {
    %c0_i32 = arith.constant 0 : i32
    %c0_i32_0 = arith.constant 0 : i32
    %c0_i32_1 = arith.constant 0 : i32
    %c0_i32_2 = arith.constant 0 : i32
    return %c0_i32, %c0_i32_0, %c0_i32_1 : i32, i32, i32
  }
  func.func @transform_16(%arg0: i32) -> (i32, i32, i32) {
    %c0_i32 = arith.constant 0 : i32
    %c0_i32_0 = arith.constant 0 : i32
    %c0_i32_1 = arith.constant 0 : i32
    %c0_i32_2 = arith.constant 0 : i32
    return %c0_i32, %c0_i32_0, %c0_i32_1 : i32, i32, i32
  }
  func.func @transform_17(%arg0: i32) -> (i32, i32, i32) {
    %c0_i32 = arith.constant 0 : i32
    %c0_i32_0 = arith.constant 0 : i32
    %c0_i32_1 = arith.constant 0 : i32
    %c0_i32_2 = arith.constant 0 : i32
    return %c0_i32, %c0_i32_0, %c0_i32_1 : i32, i32, i32
  }
  func.func @transform_18(%arg0: i32) -> (i32, i32, i32) {
    %c0_i32 = arith.constant 0 : i32
    %c0_i32_0 = arith.constant 0 : i32
    %c0_i32_1 = arith.constant 0 : i32
    %c0_i32_2 = arith.constant 0 : i32
    return %c0_i32, %c0_i32_0, %c0_i32_1 : i32, i32, i32
  }
  func.func @transform_19(%arg0: i32) -> (i32, i32, i32) {
    %c0_i32 = arith.constant 0 : i32
    %c0_i32_0 = arith.constant 0 : i32
    %c0_i32_1 = arith.constant 0 : i32
    %c0_i32_2 = arith.constant 0 : i32
    return %c0_i32, %c0_i32_0, %c0_i32_1 : i32, i32, i32
  }
  func.func @transform_20(%arg0: i32) -> (i32, i32) {
    %c0_i32 = arith.constant 0 : i32
    %c0_i32_0 = arith.constant 0 : i32
    %c0_i32_1 = arith.constant 0 : i32
    return %c0_i32, %c0_i32_0 : i32, i32
  }
  func.func @transform_21(%arg0: i32) -> (i32, i32) {
    %c0_i32 = arith.constant 0 : i32
    %c0_i32_0 = arith.constant 0 : i32
    %c0_i32_1 = arith.constant 0 : i32
    return %c0_i32, %c0_i32_0 : i32, i32
  }
  func.func @transform_22(%arg0: i32) -> (i32, i32) {
    %c0_i32 = arith.constant 0 : i32
    %c0_i32_0 = arith.constant 0 : i32
    %c0_i32_1 = arith.constant 0 : i32
    return %c0_i32, %c0_i32_0 : i32, i32
  }
  func.func @transform_23(%arg0: i32) -> (i32, i32) {
    %c0_i32 = arith.constant 0 : i32
    %c0_i32_0 = arith.constant 0 : i32
    %c0_i32_1 = arith.constant 0 : i32
    return %c0_i32, %c0_i32_0 : i32, i32
  }
  func.func @transform_24(%arg0: i32) -> (i32, i32) {
    %c0_i32 = arith.constant 0 : i32
    %c0_i32_0 = arith.constant 0 : i32
    %c0_i32_1 = arith.constant 0 : i32
    return %c0_i32, %c0_i32_0 : i32, i32
  }
  func.func @transform_25(%arg0: i32) -> (i32, i32) {
    %c0_i32 = arith.constant 0 : i32
    %c0_i32_0 = arith.constant 0 : i32
    %c0_i32_1 = arith.constant 0 : i32
    return %c0_i32, %c0_i32_0 : i32, i32
  }
  func.func @transform_26(%arg0: i32) -> (i32, i32) {
    %c0_i32 = arith.constant 0 : i32
    %c0_i32_0 = arith.constant 0 : i32
    %c0_i32_1 = arith.constant 0 : i32
    return %c0_i32, %c0_i32_0 : i32, i32
  }
  func.func @transform_27(%arg0: i32) -> (i32, i32) {
    %c0_i32 = arith.constant 0 : i32
    %c0_i32_0 = arith.constant 0 : i32
    %c0_i32_1 = arith.constant 0 : i32
    return %c0_i32, %c0_i32_0 : i32, i32
  }
  func.func @transform_28(%arg0: i32) -> (i32, i32) {
    %c0_i32 = arith.constant 0 : i32
    %c0_i32_0 = arith.constant 0 : i32
    %c0_i32_1 = arith.constant 0 : i32
    return %c0_i32, %c0_i32_0 : i32, i32
  }
  func.func @transform_29(%arg0: i32) -> (i32, i32) {
    %c0_i32 = arith.constant 0 : i32
    %c0_i32_0 = arith.constant 0 : i32
    %c0_i32_1 = arith.constant 0 : i32
    return %c0_i32, %c0_i32_0 : i32, i32
  }
  func.func @transform_30(%arg0: i32) -> (i32, i32) {
    %c0_i32 = arith.constant 0 : i32
    %c0_i32_0 = arith.constant 0 : i32
    %c0_i32_1 = arith.constant 0 : i32
    return %c0_i32, %c0_i32_0 : i32, i32
  }
  func.func @transform_31(%arg0: i32) -> (i32, i32) {
    %c0_i32 = arith.constant 0 : i32
    %c0_i32_0 = arith.constant 0 : i32
    %c0_i32_1 = arith.constant 0 : i32
    return %c0_i32, %c0_i32_0 : i32, i32
  }
  func.func @transform_32(%arg0: i32) -> (i32, i32) {
    %c0_i32 = arith.constant 0 : i32
    %c0_i32_0 = arith.constant 0 : i32
    %c0_i32_1 = arith.constant 0 : i32
    return %c0_i32, %c0_i32_0 : i32, i32
  }
  func.func @transform_33(%arg0: i32) -> (i32, i32) {
    %c0_i32 = arith.constant 0 : i32
    %c0_i32_0 = arith.constant 0 : i32
    %c0_i32_1 = arith.constant 0 : i32
    return %c0_i32, %c0_i32_0 : i32, i32
  }
  func.func @transform_34(%arg0: i32) -> (i32, i32) {
    %c0_i32 = arith.constant 0 : i32
    %c0_i32_0 = arith.constant 0 : i32
    %c0_i32_1 = arith.constant 0 : i32
    return %c0_i32, %c0_i32_0 : i32, i32
  }
  func.func @transform_35(%arg0: i32) -> (i32, i32, i32) {
    %c0_i32 = arith.constant 0 : i32
    %c0_i32_0 = arith.constant 0 : i32
    %c0_i32_1 = arith.constant 0 : i32
    return %arg0, %c0_i32, %c0_i32_0 : i32, i32, i32
  }
  func.func @transform_36(%arg0: i32) -> (i32, i32, i32, i32) {
    %c0_i32 = arith.constant 0 : i32
    %c0_i32_0 = arith.constant 0 : i32
    %c0_i32_1 = arith.constant 0 : i32
    %c0_i32_2 = arith.constant 0 : i32
    return %arg0, %c0_i32, %c0_i32_0, %c0_i32_1 : i32, i32, i32, i32
  }
}

</mosaic_0001>

<llo_original>
// kernel: time_transformer_decoder_layer.1
$region0: #{time_transformer_decoder_layer.1}
  #allocation0 [shape = 'u32[]', space=smem, size = 0x4, offset = 0x4, fixed_abs, tag = 'smem constant byte address 0x4 - core index']
  #allocation1 [shape = 'u32[144,128]{1,0:T(1,128)}', space=vmem, size = 0x12000, scoped, tag = 'internal scratch']
  %s0 = inlined_call_operand.smem [shape: u32[37], index: -1, kind: input, shape index: {}]
  %s1 = sld [smem:[%s0]]
  %s2 = scalar_lea.smem %s0, 1
  %s3 = sld [smem:[%s2]]
  %s4 = scalar_lea.smem %s0, 2
  %s5 = sld [smem:[%s4]]
  %s6 = scalar_lea.smem %s0, 3
  %s7 = sld [smem:[%s6]]
  %s8 = scalar_lea.smem %s0, 4
  %s9 = sld [smem:[%s8]]
  %s10 = scalar_lea.smem %s0, 5
  %s11 = sld [smem:[%s10]]
  %s12 = scalar_lea.smem %s0, 6
  %s13 = sld [smem:[%s12]]
  %s14 = scalar_lea.smem %s0, 7
  %s15 = sld [smem:[%s14]]
  %s16 = scalar_lea.smem %s0, 8
  %s17 = sld [smem:[%s16]]
  %s18 = scalar_lea.smem %s0, 9
  %s19 = sld [smem:[%s18]]
  %s20 = scalar_lea.smem %s0, 10
  %s21 = sld [smem:[%s20]]
  %s22 = scalar_lea.smem %s0, 11
  %s23 = sld [smem:[%s22]]
  %s24 = scalar_lea.smem %s0, 12
  %s25 = sld [smem:[%s24]]
  %s26 = scalar_lea.smem %s0, 13
  %s27 = sld [smem:[%s26]]
  %s28 = scalar_lea.smem %s0, 14
  %s29 = sld [smem:[%s28]]
  %s30 = scalar_lea.smem %s0, 15
  %s31 = sld [smem:[%s30]]
  %s32 = scalar_lea.smem %s0, 16
  %s33 = sld [smem:[%s32]]
  %s34 = scalar_lea.smem %s0, 17
  %s35 = sld [smem:[%s34]]
  %s36 = scalar_lea.smem %s0, 18
  %s37 = sld [smem:[%s36]]
  %s38 = scalar_lea.smem %s0, 19
  %s39 = sld [smem:[%s38]]
  %s40 = scalar_lea.smem %s0, 20
  %s41 = sld [smem:[%s40]]
  %s42 = scalar_lea.smem %s0, 21
  %s43 = sld [smem:[%s42]]
  %s44 = scalar_lea.smem %s0, 22
  %s45 = sld [smem:[%s44]]
  %s46 = scalar_lea.smem %s0, 23
  %s47 = sld [smem:[%s46]]
  %s48 = scalar_lea.smem %s0, 24
  %s49 = sld [smem:[%s48]]
  %s50 = scalar_lea.smem %s0, 25
  %s51 = sld [smem:[%s50]]
  %s52 = scalar_lea.smem %s0, 26
  %s53 = sld [smem:[%s52]]
  %s54 = scalar_lea.smem %s0, 27
  %s55 = sld [smem:[%s54]]
  %s56 = scalar_lea.smem %s0, 28
  %s57 = sld [smem:[%s56]]
  %s58 = scalar_lea.smem %s0, 29
  %s59 = sld [smem:[%s58]]
  %s60 = scalar_lea.smem %s0, 30
  %s61 = sld [smem:[%s60]]
  %s62 = scalar_lea.smem %s0, 31
  %s63 = sld [smem:[%s62]]
  %s64 = scalar_lea.smem %s0, 32
  %s65 = sld [smem:[%s64]]
  %s66 = scalar_lea.smem %s0, 33
  %s67 = sld [smem:[%s66]]
  %s68 = scalar_lea.smem %s0, 34
  %s69 = sld [smem:[%s68]]
  %s70 = scalar_lea.smem %s0, 35
  %s71 = sld [smem:[%s70]]
  %s72 = scalar_lea.smem %s0, 36
  %s73 = sld [smem:[%s72]]
  %74 = xla_tuple %s71, %s73
  %s75 = sld [smem:[#allocation0]]
  $region181: #{time_transformer_decoder_layer.1} parent=0
    _
  %s77 = ssub.s32 1, %s75
  %s78 = scalar_select 0, %s77, %s75
  $region1: #{time_transformer_decoder_layer.1} parent=0
    #allocation2 [shape = 'u8[8192]{0}', space=vmem, size = 0x2000, scoped, tag = 'output window, operand 0']
    #allocation3 [shape = 's32[2]{0}', space=sflag, size = 0x8, scoped, tag = 'scoped memory for time_transformer_decoder_layer.1']
    %79 = vsyncpa [#allocation3], 0
    %s80 = scalar_lea.sflag [#allocation3], 1
    %81 = vsyncpa %s80, 0
    loop: start=0, step=1, limit=4
    $region2: #{time_transformer_decoder_layer.1} parent=1 // loop_pre_header
      _
    $region3: #{time_transformer_decoder_layer.1} parent=1 // loop_header
      %s83 = sphi 0, %s87
      %p84 = scmp.ge.s32.totalorder %s83, 4
      %s93 = sphi 0, %s95
      %s96 = sphi 0, %s93
      %s97 = sphi 0, %s96
      %s113 = sphi 0, %s97
      %s119 = sphi 0, %s121
      %s122 = sphi 0, %s119
      %s123 = sphi 0, %s122
      %s139 = sphi 0, %s123
      %s145 = sphi 0, %s147
      %s148 = sphi 0, %s145
      %s149 = sphi 0, %s148
      %s165 = sphi 0, %s149
      %s169 = sphi 0, %s169
      %s171 = sphi 0, %s169
      %s172 = sphi 0, %s171
      %s186 = sphi 0, %s172
      %s190 = sphi 0, %s190
      %s192 = sphi 0, %s190
      %s193 = sphi 0, %s192
      %s207 = sphi 0, %s193
      %s211 = sphi 0, %s211
      %s213 = sphi 0, %s211
      %s214 = sphi 0, %s213
      %s228 = sphi 0, %s214
      %s232 = sphi 0, %s232
      %s234 = sphi 0, %s232
      %s235 = sphi 0, %s234
      %s249 = sphi 0, %s235
      %s253 = sphi 0, %s253
      %s255 = sphi 0, %s253
      %s256 = sphi 0, %s255
      %s270 = sphi 0, %s256
      %s274 = sphi 0, %s274
      %s276 = sphi 0, %s274
      %s277 = sphi 0, %s276
      %s291 = sphi 0, %s277
      %s295 = sphi 0, %s295
      %s297 = sphi 0, %s295
      %s298 = sphi 0, %s297
      %s312 = sphi 0, %s298
      %s316 = sphi 0, %s316
      %s318 = sphi 0, %s316
      %s319 = sphi 0, %s318
      %s333 = sphi 0, %s319
      %s337 = sphi 0, %s337
      %s339 = sphi 0, %s337
      %s340 = sphi 0, %s339
      %s354 = sphi 0, %s340
      %s358 = sphi 0, %s358
      %s360 = sphi 0, %s358
      %s361 = sphi 0, %s360
      %s375 = sphi 0, %s361
      %s379 = sphi 0, %s379
      %s381 = sphi 0, %s379
      %s382 = sphi 0, %s381
      %s396 = sphi 0, %s382
      %s400 = sphi 0, %s400
      %s402 = sphi 0, %s400
      %s403 = sphi 0, %s402
      %s417 = sphi 0, %s403
      %s421 = sphi 0, %s421
      %s423 = sphi 0, %s421
      %s424 = sphi 0, %s423
      %s438 = sphi 0, %s424
      %s442 = sphi 0, %s442
      %s444 = sphi 0, %s442
      %s445 = sphi 0, %s444
      %s459 = sphi 0, %s445
      %s463 = sphi 0, %s463
      %s465 = sphi 0, %s463
      %s466 = sphi 0, %s465
      %s480 = sphi 0, %s466
      %s484 = sphi 0, %s484
      %s486 = sphi 0, %s484
      %s487 = sphi 0, %s486
      %s501 = sphi 0, %s487
      %s505 = sphi 0, %s505
      %s507 = sphi 0, %s505
      %s508 = sphi 0, %s507
      %s522 = sphi 0, %s508
      %s526 = sphi 0, %s526
      %s528 = sphi 0, %s526
      %s529 = sphi 0, %s528
      %s543 = sphi 0, %s529
      %s547 = sphi 0, %s547
      %s549 = sphi 0, %s547
      %s550 = sphi 0, %s549
      %s564 = sphi 0, %s550
      %s568 = sphi 0, %s568
      %s570 = sphi 0, %s568
      %s571 = sphi 0, %s570
      %s585 = sphi 0, %s571
      %s589 = sphi 0, %s589
      %s591 = sphi 0, %s589
      %s592 = sphi 0, %s591
      %s606 = sphi 0, %s592
      %s610 = sphi 0, %s610
      %s612 = sphi 0, %s610
      %s613 = sphi 0, %s612
      %s627 = sphi 0, %s613
      %s631 = sphi 0, %s631
      %s633 = sphi 0, %s631
      %s634 = sphi 0, %s633
      %s648 = sphi 0, %s634
      %s652 = sphi 0, %s652
      %s654 = sphi 0, %s652
      %s655 = sphi 0, %s654
      %s669 = sphi 0, %s655
      %s673 = sphi 0, %s673
      %s675 = sphi 0, %s673
      %s676 = sphi 0, %s675
      %s690 = sphi 0, %s676
      %s694 = sphi 0, %s694
      %s696 = sphi 0, %s694
      %s697 = sphi 0, %s696
      %s711 = sphi 0, %s697
      %s715 = sphi 0, %s715
      %s717 = sphi 0, %s715
      %s718 = sphi 0, %s717
      %s732 = sphi 0, %s718
      %s736 = sphi 0, %s736
      %s738 = sphi 0, %s736
      %s739 = sphi 0, %s738
      %s753 = sphi 0, %s739
      %s757 = sphi 0, %s757
      %s759 = sphi 0, %s757
      %s760 = sphi 0, %s759
      %s774 = sphi 0, %s760
      %s778 = sphi 0, %s778
      %s780 = sphi 0, %s778
      %s781 = sphi 0, %s780
      %s795 = sphi 0, %s781
      %s799 = sphi 0, %s799
      %s801 = sphi 0, %s799
      %s802 = sphi 0, %s801
      %s816 = sphi 0, %s802
      %s820 = sphi 0, %s820
      %s822 = sphi 0, %s820
      %s823 = sphi 0, %s822
      %s837 = sphi 0, %s823
      %s843 = sphi 0, %s845
      %s846 = sphi 0, %s843
      %s847 = sphi 0, %s846
      %s863 = sphi 0, %s847
      %s869 = sphi 0, %s871
      %s872 = sphi 0, %s869
      %s873 = sphi 0, %s872
      %s889 = sphi 0, %s873
    $region4: #{time_transformer_decoder_layer.1} parent=1 // loop_header_branch
      %86 = sbr.rel (%p84) target = $region8
    $region5: #{time_transformer_decoder_layer.1} parent=1 // loop_body
      %s88 = ssub.s32 %s83, 1
      %s89 = ssub.s32 %s83, 2
      %s90 = sadd.s32 %s83, 1
      %s91 = ssub.s32 %s83, %s90
      %p92 = scmp.eq.s32.totalorder %s91, 0
      %s94 = sadd.s32 %s93, 1
      %s95 = scalar_select %p92, %s93, %s94
      %p98 = pneg %p92
      %p99 = scmp.eq.s32.totalorder %s83, 1
      %p100 = por %p98, %p99
      %p101 = scmp.ne.s32.totalorder %s93, %s96
      %p102 = scmp.eq.s32.totalorder %s83, 0
      %p103 = por %p101, %p102
      %p104 = scmp.ne.s32.totalorder %s93, %s96
      %p105 = scmp.eq.s32.totalorder %s88, 1
      %p106 = por %p104, %p105
      %p107 = scmp.ne.s32.totalorder %s96, %s97
      %p108 = scmp.eq.s32.totalorder %s88, 0
      %p109 = por %p107, %p108
      %p110 = scmp.ne.s32.totalorder %s96, %s97
      %p111 = scmp.eq.s32.totalorder %s89, 1
      %p112 = por %p110, %p111
      %p114 = scmp.ne.s32.totalorder %s97, %s113
      %p115 = scmp.eq.s32.totalorder %s89, 0
      %p116 = por %p114, %p115
      %s117 = ssub.s32 %s83, %s90
      %p118 = scmp.eq.s32.totalorder %s117, 0
      %s120 = sadd.s32 %s119, 1
      %s121 = scalar_select %p118, %s119, %s120
      %p124 = pneg %p118
      %p125 = scmp.eq.s32.totalorder %s83, 1
      %p126 = por %p124, %p125
      %p127 = scmp.ne.s32.totalorder %s119, %s122
      %p128 = scmp.eq.s32.totalorder %s83, 0
      %p129 = por %p127, %p128
      %p130 = scmp.ne.s32.totalorder %s119, %s122
      %p131 = scmp.eq.s32.totalorder %s88, 1
      %p132 = por %p130, %p131
      %p133 = scmp.ne.s32.totalorder %s122, %s123
      %p134 = scmp.eq.s32.totalorder %s88, 0
      %p135 = por %p133, %p134
      %p136 = scmp.ne.s32.totalorder %s122, %s123
      %p137 = scmp.eq.s32.totalorder %s89, 1
      %p138 = por %p136, %p137
      %p140 = scmp.ne.s32.totalorder %s123, %s139
      %p141 = scmp.eq.s32.totalorder %s89, 0
      %p142 = por %p140, %p141
      %s143 = ssub.s32 %s83, %s90
      %p144 = scmp.eq.s32.totalorder %s143, 0
      %s146 = sadd.s32 %s145, 1
      %s147 = scalar_select %p144, %s145, %s146
      %p150 = pneg %p144
      %p151 = scmp.eq.s32.totalorder %s83, 1
      %p152 = por %p150, %p151
      %p153 = scmp.ne.s32.totalorder %s145, %s148
      %p154 = scmp.eq.s32.totalorder %s83, 0
      %p155 = por %p153, %p154
      %p156 = scmp.ne.s32.totalorder %s145, %s148
      %p157 = scmp.eq.s32.totalorder %s88, 1
      %p158 = por %p156, %p157
      %p159 = scmp.ne.s32.totalorder %s148, %s149
      %p160 = scmp.eq.s32.totalorder %s88, 0
      %p161 = por %p159, %p160
      %p162 = scmp.ne.s32.totalorder %s148, %s149
      %p163 = scmp.eq.s32.totalorder %s89, 1
      %p164 = por %p162, %p163
      %p166 = scmp.ne.s32.totalorder %s149, %s165
      %p167 = scmp.eq.s32.totalorder %s89, 0
      %p168 = por %p166, %p167
      %s170 = sadd.s32 %s169, 1
      %p173 = scmp.eq.s32.totalorder %s83, 1
      %p174 = scmp.ne.s32.totalorder %s169, %s171
      %p175 = scmp.eq.s32.totalorder %s83, 0
      %p176 = por %p174, %p175
      %p177 = scmp.ne.s32.totalorder %s169, %s171
      %p178 = scmp.eq.s32.totalorder %s88, 1
      %p179 = por %p177, %p178
      %p180 = scmp.ne.s32.totalorder %s171, %s172
      %p181 = scmp.eq.s32.totalorder %s88, 0
      %p182 = por %p180, %p181
      %p183 = scmp.ne.s32.totalorder %s171, %s172
      %p184 = scmp.eq.s32.totalorder %s89, 1
      %p185 = por %p183, %p184
      %p187 = scmp.ne.s32.totalorder %s172, %s186
      %p188 = scmp.eq.s32.totalorder %s89, 0
      %p189 = por %p187, %p188
      %s191 = sadd.s32 %s190, 1
      %p194 = scmp.eq.s32.totalorder %s83, 1
      %p195 = scmp.ne.s32.totalorder %s190, %s192
      %p196 = scmp.eq.s32.totalorder %s83, 0
      %p197 = por %p195, %p196
      %p198 = scmp.ne.s32.totalorder %s190, %s192
      %p199 = scmp.eq.s32.totalorder %s88, 1
      %p200 = por %p198, %p199
      %p201 = scmp.ne.s32.totalorder %s192, %s193
      %p202 = scmp.eq.s32.totalorder %s88, 0
      %p203 = por %p201, %p202
      %p204 = scmp.ne.s32.totalorder %s192, %s193
      %p205 = scmp.eq.s32.totalorder %s89, 1
      %p206 = por %p204, %p205
      %p208 = scmp.ne.s32.totalorder %s193, %s207
      %p209 = scmp.eq.s32.totalorder %s89, 0
      %p210 = por %p208, %p209
      %s212 = sadd.s32 %s211, 1
      %p215 = scmp.eq.s32.totalorder %s83, 1
      %p216 = scmp.ne.s32.totalorder %s211, %s213
      %p217 = scmp.eq.s32.totalorder %s83, 0
      %p218 = por %p216, %p217
      %p219 = scmp.ne.s32.totalorder %s211, %s213
      %p220 = scmp.eq.s32.totalorder %s88, 1
      %p221 = por %p219, %p220
      %p222 = scmp.ne.s32.totalorder %s213, %s214
      %p223 = scmp.eq.s32.totalorder %s88, 0
      %p224 = por %p222, %p223
      %p225 = scmp.ne.s32.totalorder %s213, %s214
      %p226 = scmp.eq.s32.totalorder %s89, 1
      %p227 = por %p225, %p226
      %p229 = scmp.ne.s32.totalorder %s214, %s228
      %p230 = scmp.eq.s32.totalorder %s89, 0
      %p231 = por %p229, %p230
      %s233 = sadd.s32 %s232, 1
      %p236 = scmp.eq.s32.totalorder %s83, 1
      %p237 = scmp.ne.s32.totalorder %s232, %s234
      %p238 = scmp.eq.s32.totalorder %s83, 0
      %p239 = por %p237, %p238
      %p240 = scmp.ne.s32.totalorder %s232, %s234
      %p241 = scmp.eq.s32.totalorder %s88, 1
      %p242 = por %p240, %p241
      %p243 = scmp.ne.s32.totalorder %s234, %s235
      %p244 = scmp.eq.s32.totalorder %s88, 0
      %p245 = por %p243, %p244
      %p246 = scmp.ne.s32.totalorder %s234, %s235
      %p247 = scmp.eq.s32.totalorder %s89, 1
      %p248 = por %p246, %p247
      %p250 = scmp.ne.s32.totalorder %s235, %s249
      %p251 = scmp.eq.s32.totalorder %s89, 0
      %p252 = por %p250, %p251
      %s254 = sadd.s32 %s253, 1
      %p257 = scmp.eq.s32.totalorder %s83, 1
      %p258 = scmp.ne.s32.totalorder %s253, %s255
      %p259 = scmp.eq.s32.totalorder %s83, 0
      %p260 = por %p258, %p259
      %p261 = scmp.ne.s32.totalorder %s253, %s255
      %p262 = scmp.eq.s32.totalorder %s88, 1
      %p263 = por %p261, %p262
      %p264 = scmp.ne.s32.totalorder %s255, %s256
      %p265 = scmp.eq.s32.totalorder %s88, 0
      %p266 = por %p264, %p265
      %p267 = scmp.ne.s32.totalorder %s255, %s256
      %p268 = scmp.eq.s32.totalorder %s89, 1
      %p269 = por %p267, %p268
      %p271 = scmp.ne.s32.totalorder %s256, %s270
      %p272 = scmp.eq.s32.totalorder %s89, 0
      %p273 = por %p271, %p272
      %s275 = sadd.s32 %s274, 1
      %p278 = scmp.eq.s32.totalorder %s83, 1
      %p279 = scmp.ne.s32.totalorder %s274, %s276
      %p280 = scmp.eq.s32.totalorder %s83, 0
      %p281 = por %p279, %p280
      %p282 = scmp.ne.s32.totalorder %s274, %s276
      %p283 = scmp.eq.s32.totalorder %s88, 1
      %p284 = por %p282, %p283
      %p285 = scmp.ne.s32.totalorder %s276, %s277
      %p286 = scmp.eq.s32.totalorder %s88, 0
      %p287 = por %p285, %p286
      %p288 = scmp.ne.s32.totalorder %s276, %s277
      %p289 = scmp.eq.s32.totalorder %s89, 1
      %p290 = por %p288, %p289
      %p292 = scmp.ne.s32.totalorder %s277, %s291
      %p293 = scmp.eq.s32.totalorder %s89, 0
      %p294 = por %p292, %p293
      %s296 = sadd.s32 %s295, 1
      %p299 = scmp.eq.s32.totalorder %s83, 1
      %p300 = scmp.ne.s32.totalorder %s295, %s297
      %p301 = scmp.eq.s32.totalorder %s83, 0
      %p302 = por %p300, %p301
      %p303 = scmp.ne.s32.totalorder %s295, %s297
      %p304 = scmp.eq.s32.totalorder %s88, 1
      %p305 = por %p303, %p304
      %p306 = scmp.ne.s32.totalorder %s297, %s298
      %p307 = scmp.eq.s32.totalorder %s88, 0
      %p308 = por %p306, %p307
      %p309 = scmp.ne.s32.totalorder %s297, %s298
      %p310 = scmp.eq.s32.totalorder %s89, 1
      %p311 = por %p309, %p310
      %p313 = scmp.ne.s32.totalorder %s298, %s312
      %p314 = scmp.eq.s32.totalorder %s89, 0
      %p315 = por %p313, %p314
      %s317 = sadd.s32 %s316, 1
      %p320 = scmp.eq.s32.totalorder %s83, 1
      %p321 = scmp.ne.s32.totalorder %s316, %s318
      %p322 = scmp.eq.s32.totalorder %s83, 0
      %p323 = por %p321, %p322
      %p324 = scmp.ne.s32.totalorder %s316, %s318
      %p325 = scmp.eq.s32.totalorder %s88, 1
      %p326 = por %p324, %p325
      %p327 = scmp.ne.s32.totalorder %s318, %s319
      %p328 = scmp.eq.s32.totalorder %s88, 0
      %p329 = por %p327, %p328
      %p330 = scmp.ne.s32.totalorder %s318, %s319
      %p331 = scmp.eq.s32.totalorder %s89, 1
      %p332 = por %p330, %p331
      %p334 = scmp.ne.s32.totalorder %s319, %s333
      %p335 = scmp.eq.s32.totalorder %s89, 0
      %p336 = por %p334, %p335
      %s338 = sadd.s32 %s337, 1
      %p341 = scmp.eq.s32.totalorder %s83, 1
      %p342 = scmp.ne.s32.totalorder %s337, %s339
      %p343 = scmp.eq.s32.totalorder %s83, 0
      %p344 = por %p342, %p343
      %p345 = scmp.ne.s32.totalorder %s337, %s339
      %p346 = scmp.eq.s32.totalorder %s88, 1
      %p347 = por %p345, %p346
      %p348 = scmp.ne.s32.totalorder %s339, %s340
      %p349 = scmp.eq.s32.totalorder %s88, 0
      %p350 = por %p348, %p349
      %p351 = scmp.ne.s32.totalorder %s339, %s340
      %p352 = scmp.eq.s32.totalorder %s89, 1
      %p353 = por %p351, %p352
      %p355 = scmp.ne.s32.totalorder %s340, %s354
      %p356 = scmp.eq.s32.totalorder %s89, 0
      %p357 = por %p355, %p356
      %s359 = sadd.s32 %s358, 1
      %p362 = scmp.eq.s32.totalorder %s83, 1
      %p363 = scmp.ne.s32.totalorder %s358, %s360
      %p364 = scmp.eq.s32.totalorder %s83, 0
      %p365 = por %p363, %p364
      %p366 = scmp.ne.s32.totalorder %s358, %s360
      %p367 = scmp.eq.s32.totalorder %s88, 1
      %p368 = por %p366, %p367
      %p369 = scmp.ne.s32.totalorder %s360, %s361
      %p370 = scmp.eq.s32.totalorder %s88, 0
      %p371 = por %p369, %p370
      %p372 = scmp.ne.s32.totalorder %s360, %s361
      %p373 = scmp.eq.s32.totalorder %s89, 1
      %p374 = por %p372, %p373
      %p376 = scmp.ne.s32.totalorder %s361, %s375
      %p377 = scmp.eq.s32.totalorder %s89, 0
      %p378 = por %p376, %p377
      %s380 = sadd.s32 %s379, 1
      %p383 = scmp.eq.s32.totalorder %s83, 1
      %p384 = scmp.ne.s32.totalorder %s379, %s381
      %p385 = scmp.eq.s32.totalorder %s83, 0
      %p386 = por %p384, %p385
      %p387 = scmp.ne.s32.totalorder %s379, %s381
      %p388 = scmp.eq.s32.totalorder %s88, 1
      %p389 = por %p387, %p388
      %p390 = scmp.ne.s32.totalorder %s381, %s382
      %p391 = scmp.eq.s32.totalorder %s88, 0
      %p392 = por %p390, %p391
      %p393 = scmp.ne.s32.totalorder %s381, %s382
      %p394 = scmp.eq.s32.totalorder %s89, 1
      %p395 = por %p393, %p394
      %p397 = scmp.ne.s32.totalorder %s382, %s396
      %p398 = scmp.eq.s32.totalorder %s89, 0
      %p399 = por %p397, %p398
      %s401 = sadd.s32 %s400, 1
      %p404 = scmp.eq.s32.totalorder %s83, 1
      %p405 = scmp.ne.s32.totalorder %s400, %s402
      %p406 = scmp.eq.s32.totalorder %s83, 0
      %p407 = por %p405, %p406
      %p408 = scmp.ne.s32.totalorder %s400, %s402
      %p409 = scmp.eq.s32.totalorder %s88, 1
      %p410 = por %p408, %p409
      %p411 = scmp.ne.s32.totalorder %s402, %s403
      %p412 = scmp.eq.s32.totalorder %s88, 0
      %p413 = por %p411, %p412
      %p414 = scmp.ne.s32.totalorder %s402, %s403
      %p415 = scmp.eq.s32.totalorder %s89, 1
      %p416 = por %p414, %p415
      %p418 = scmp.ne.s32.totalorder %s403, %s417
      %p419 = scmp.eq.s32.totalorder %s89, 0
      %p420 = por %p418, %p419
      %s422 = sadd.s32 %s421, 1
      %p425 = scmp.eq.s32.totalorder %s83, 1
      %p426 = scmp.ne.s32.totalorder %s421, %s423
      %p427 = scmp.eq.s32.totalorder %s83, 0
      %p428 = por %p426, %p427
      %p429 = scmp.ne.s32.totalorder %s421, %s423
      %p430 = scmp.eq.s32.totalorder %s88, 1
      %p431 = por %p429, %p430
      %p432 = scmp.ne.s32.totalorder %s423, %s424
      %p433 = scmp.eq.s32.totalorder %s88, 0
      %p434 = por %p432, %p433
      %p435 = scmp.ne.s32.totalorder %s423, %s424
      %p436 = scmp.eq.s32.totalorder %s89, 1
      %p437 = por %p435, %p436
      %p439 = scmp.ne.s32.totalorder %s424, %s438
      %p440 = scmp.eq.s32.totalorder %s89, 0
      %p441 = por %p439, %p440
      %s443 = sadd.s32 %s442, 1
      %p446 = scmp.eq.s32.totalorder %s83, 1
      %p447 = scmp.ne.s32.totalorder %s442, %s444
      %p448 = scmp.eq.s32.totalorder %s83, 0
      %p449 = por %p447, %p448
      %p450 = scmp.ne.s32.totalorder %s442, %s444
      %p451 = scmp.eq.s32.totalorder %s88, 1
      %p452 = por %p450, %p451
      %p453 = scmp.ne.s32.totalorder %s444, %s445
      %p454 = scmp.eq.s32.totalorder %s88, 0
      %p455 = por %p453, %p454
      %p456 = scmp.ne.s32.totalorder %s444, %s445
      %p457 = scmp.eq.s32.totalorder %s89, 1
      %p458 = por %p456, %p457
      %p460 = scmp.ne.s32.totalorder %s445, %s459
      %p461 = scmp.eq.s32.totalorder %s89, 0
      %p462 = por %p460, %p461
      %s464 = sadd.s32 %s463, 1
      %p467 = scmp.eq.s32.totalorder %s83, 1
      %p468 = scmp.ne.s32.totalorder %s463, %s465
      %p469 = scmp.eq.s32.totalorder %s83, 0
      %p470 = por %p468, %p469
      %p471 = scmp.ne.s32.totalorder %s463, %s465
      %p472 = scmp.eq.s32.totalorder %s88, 1
      %p473 = por %p471, %p472
      %p474 = scmp.ne.s32.totalorder %s465, %s466
      %p475 = scmp.eq.s32.totalorder %s88, 0
      %p476 = por %p474, %p475
      %p477 = scmp.ne.s32.totalorder %s465, %s466
      %p478 = scmp.eq.s32.totalorder %s89, 1
      %p479 = por %p477, %p478
      %p481 = scmp.ne.s32.totalorder %s466, %s480
      %p482 = scmp.eq.s32.totalorder %s89, 0
      %p483 = por %p481, %p482
      %s485 = sadd.s32 %s484, 1
      %p488 = scmp.eq.s32.totalorder %s83, 1
      %p489 = scmp.ne.s32.totalorder %s484, %s486
      %p490 = scmp.eq.s32.totalorder %s83, 0
      %p491 = por %p489, %p490
      %p492 = scmp.ne.s32.totalorder %s484, %s486
      %p493 = scmp.eq.s32.totalorder %s88, 1
      %p494 = por %p492, %p493
      %p495 = scmp.ne.s32.totalorder %s486, %s487
      %p496 = scmp.eq.s32.totalorder %s88, 0
      %p497 = por %p495, %p496
      %p498 = scmp.ne.s32.totalorder %s486, %s487
      %p499 = scmp.eq.s32.totalorder %s89, 1
      %p500 = por %p498, %p499
      %p502 = scmp.ne.s32.totalorder %s487, %s501
      %p503 = scmp.eq.s32.totalorder %s89, 0
      %p504 = por %p502, %p503
      %s506 = sadd.s32 %s505, 1
      %p509 = scmp.eq.s32.totalorder %s83, 1
      %p510 = scmp.ne.s32.totalorder %s505, %s507
      %p511 = scmp.eq.s32.totalorder %s83, 0
      %p512 = por %p510, %p511
      %p513 = scmp.ne.s32.totalorder %s505, %s507
      %p514 = scmp.eq.s32.totalorder %s88, 1
      %p515 = por %p513, %p514
      %p516 = scmp.ne.s32.totalorder %s507, %s508
      %p517 = scmp.eq.s32.totalorder %s88, 0
      %p518 = por %p516, %p517
      %p519 = scmp.ne.s32.totalorder %s507, %s508
      %p520 = scmp.eq.s32.totalorder %s89, 1
      %p521 = por %p519, %p520
      %p523 = scmp.ne.s32.totalorder %s508, %s522
      %p524 = scmp.eq.s32.totalorder %s89, 0
      %p525 = por %p523, %p524
      %s527 = sadd.s32 %s526, 1
      %p530 = scmp.eq.s32.totalorder %s83, 1
      %p531 = scmp.ne.s32.totalorder %s526, %s528
      %p532 = scmp.eq.s32.totalorder %s83, 0
      %p533 = por %p531, %p532
      %p534 = scmp.ne.s32.totalorder %s526, %s528
      %p535 = scmp.eq.s32.totalorder %s88, 1
      %p536 = por %p534, %p535
      %p537 = scmp.ne.s32.totalorder %s528, %s529
      %p538 = scmp.eq.s32.totalorder %s88, 0
      %p539 = por %p537, %p538
      %p540 = scmp.ne.s32.totalorder %s528, %s529
      %p541 = scmp.eq.s32.totalorder %s89, 1
      %p542 = por %p540, %p541
      %p544 = scmp.ne.s32.totalorder %s529, %s543
      %p545 = scmp.eq.s32.totalorder %s89, 0
      %p546 = por %p544, %p545
      %s548 = sadd.s32 %s547, 1
      %p551 = scmp.eq.s32.totalorder %s83, 1
      %p552 = scmp.ne.s32.totalorder %s547, %s549
      %p553 = scmp.eq.s32.totalorder %s83, 0
      %p554 = por %p552, %p553
      %p555 = scmp.ne.s32.totalorder %s547, %s549
      %p556 = scmp.eq.s32.totalorder %s88, 1
      %p557 = por %p555, %p556
      %p558 = scmp.ne.s32.totalorder %s549, %s550
      %p559 = scmp.eq.s32.totalorder %s88, 0
      %p560 = por %p558, %p559
      %p561 = scmp.ne.s32.totalorder %s549, %s550
      %p562 = scmp.eq.s32.totalorder %s89, 1
      %p563 = por %p561, %p562
      %p565 = scmp.ne.s32.totalorder %s550, %s564
      %p566 = scmp.eq.s32.totalorder %s89, 0
      %p567 = por %p565, %p566
      %s569 = sadd.s32 %s568, 1
      %p572 = scmp.eq.s32.totalorder %s83, 1
      %p573 = scmp.ne.s32.totalorder %s568, %s570
      %p574 = scmp.eq.s32.totalorder %s83, 0
      %p575 = por %p573, %p574
      %p576 = scmp.ne.s32.totalorder %s568, %s570
      %p577 = scmp.eq.s32.totalorder %s88, 1
      %p578 = por %p576, %p577
      %p579 = scmp.ne.s32.totalorder %s570, %s571
      %p580 = scmp.eq.s32.totalorder %s88, 0
      %p581 = por %p579, %p580
      %p582 = scmp.ne.s32.totalorder %s570, %s571
      %p583 = scmp.eq.s32.totalorder %s89, 1
      %p584 = por %p582, %p583
      %p586 = scmp.ne.s32.totalorder %s571, %s585
      %p587 = scmp.eq.s32.totalorder %s89, 0
      %p588 = por %p586, %p587
      %s590 = sadd.s32 %s589, 1
      %p593 = scmp.eq.s32.totalorder %s83, 1
      %p594 = scmp.ne.s32.totalorder %s589, %s591
      %p595 = scmp.eq.s32.totalorder %s83, 0
      %p596 = por %p594, %p595
      %p597 = scmp.ne.s32.totalorder %s589, %s591
      %p598 = scmp.eq.s32.totalorder %s88, 1
      %p599 = por %p597, %p598
      %p600 = scmp.ne.s32.totalorder %s591, %s592
      %p601 = scmp.eq.s32.totalorder %s88, 0
      %p602 = por %p600, %p601
      %p603 = scmp.ne.s32.totalorder %s591, %s592
      %p604 = scmp.eq.s32.totalorder %s89, 1
      %p605 = por %p603, %p604
      %p607 = scmp.ne.s32.totalorder %s592, %s606
      %p608 = scmp.eq.s32.totalorder %s89, 0
      %p609 = por %p607, %p608
      %s611 = sadd.s32 %s610, 1
      %p614 = scmp.eq.s32.totalorder %s83, 1
      %p615 = scmp.ne.s32.totalorder %s610, %s612
      %p616 = scmp.eq.s32.totalorder %s83, 0
      %p617 = por %p615, %p616
      %p618 = scmp.ne.s32.totalorder %s610, %s612
      %p619 = scmp.eq.s32.totalorder %s88, 1
      %p620 = por %p618, %p619
      %p621 = scmp.ne.s32.totalorder %s612, %s613
      %p622 = scmp.eq.s32.totalorder %s88, 0
      %p623 = por %p621, %p622
      %p624 = scmp.ne.s32.totalorder %s612, %s613
      %p625 = scmp.eq.s32.totalorder %s89, 1
      %p626 = por %p624, %p625
      %p628 = scmp.ne.s32.totalorder %s613, %s627
      %p629 = scmp.eq.s32.totalorder %s89, 0
      %p630 = por %p628, %p629
      %s632 = sadd.s32 %s631, 1
      %p635 = scmp.eq.s32.totalorder %s83, 1
      %p636 = scmp.ne.s32.totalorder %s631, %s633
      %p637 = scmp.eq.s32.totalorder %s83, 0
      %p638 = por %p636, %p637
      %p639 = scmp.ne.s32.totalorder %s631, %s633
      %p640 = scmp.eq.s32.totalorder %s88, 1
      %p641 = por %p639, %p640
      %p642 = scmp.ne.s32.totalorder %s633, %s634
      %p643 = scmp.eq.s32.totalorder %s88, 0
      %p644 = por %p642, %p643
      %p645 = scmp.ne.s32.totalorder %s633, %s634
      %p646 = scmp.eq.s32.totalorder %s89, 1
      %p647 = por %p645, %p646
      %p649 = scmp.ne.s32.totalorder %s634, %s648
      %p650 = scmp.eq.s32.totalorder %s89, 0
      %p651 = por %p649, %p650
      %s653 = sadd.s32 %s652, 1
      %p656 = scmp.eq.s32.totalorder %s83, 1
      %p657 = scmp.ne.s32.totalorder %s652, %s654
      %p658 = scmp.eq.s32.totalorder %s83, 0
      %p659 = por %p657, %p658
      %p660 = scmp.ne.s32.totalorder %s652, %s654
      %p661 = scmp.eq.s32.totalorder %s88, 1
      %p662 = por %p660, %p661
      %p663 = scmp.ne.s32.totalorder %s654, %s655
      %p664 = scmp.eq.s32.totalorder %s88, 0
      %p665 = por %p663, %p664
      %p666 = scmp.ne.s32.totalorder %s654, %s655
      %p667 = scmp.eq.s32.totalorder %s89, 1
      %p668 = por %p666, %p667
      %p670 = scmp.ne.s32.totalorder %s655, %s669
      %p671 = scmp.eq.s32.totalorder %s89, 0
      %p672 = por %p670, %p671
      %s674 = sadd.s32 %s673, 1
      %p677 = scmp.eq.s32.totalorder %s83, 1
      %p678 = scmp.ne.s32.totalorder %s673, %s675
      %p679 = scmp.eq.s32.totalorder %s83, 0
      %p680 = por %p678, %p679
      %p681 = scmp.ne.s32.totalorder %s673, %s675
      %p682 = scmp.eq.s32.totalorder %s88, 1
      %p683 = por %p681, %p682
      %p684 = scmp.ne.s32.totalorder %s675, %s676
      %p685 = scmp.eq.s32.totalorder %s88, 0
      %p686 = por %p684, %p685
      %p687 = scmp.ne.s32.totalorder %s675, %s676
      %p688 = scmp.eq.s32.totalorder %s89, 1
      %p689 = por %p687, %p688
      %p691 = scmp.ne.s32.totalorder %s676, %s690
      %p692 = scmp.eq.s32.totalorder %s89, 0
      %p693 = por %p691, %p692
      %s695 = sadd.s32 %s694, 1
      %p698 = scmp.eq.s32.totalorder %s83, 1
      %p699 = scmp.ne.s32.totalorder %s694, %s696
      %p700 = scmp.eq.s32.totalorder %s83, 0
      %p701 = por %p699, %p700
      %p702 = scmp.ne.s32.totalorder %s694, %s696
      %p703 = scmp.eq.s32.totalorder %s88, 1
      %p704 = por %p702, %p703
      %p705 = scmp.ne.s32.totalorder %s696, %s697
      %p706 = scmp.eq.s32.totalorder %s88, 0
      %p707 = por %p705, %p706
      %p708 = scmp.ne.s32.totalorder %s696, %s697
      %p709 = scmp.eq.s32.totalorder %s89, 1
      %p710 = por %p708, %p709
      %p712 = scmp.ne.s32.totalorder %s697, %s711
      %p713 = scmp.eq.s32.totalorder %s89, 0
      %p714 = por %p712, %p713
      %s716 = sadd.s32 %s715, 1
      %p719 = scmp.eq.s32.totalorder %s83, 1
      %p720 = scmp.ne.s32.totalorder %s715, %s717
      %p721 = scmp.eq.s32.totalorder %s83, 0
      %p722 = por %p720, %p721
      %p723 = scmp.ne.s32.totalorder %s715, %s717
      %p724 = scmp.eq.s32.totalorder %s88, 1
      %p725 = por %p723, %p724
      %p726 = scmp.ne.s32.totalorder %s717, %s718
      %p727 = scmp.eq.s32.totalorder %s88, 0
      %p728 = por %p726, %p727
      %p729 = scmp.ne.s32.totalorder %s717, %s718
      %p730 = scmp.eq.s32.totalorder %s89, 1
      %p731 = por %p729, %p730
      %p733 = scmp.ne.s32.totalorder %s718, %s732
      %p734 = scmp.eq.s32.totalorder %s89, 0
      %p735 = por %p733, %p734
      %s737 = sadd.s32 %s736, 1
      %p740 = scmp.eq.s32.totalorder %s83, 1
      %p741 = scmp.ne.s32.totalorder %s736, %s738
      %p742 = scmp.eq.s32.totalorder %s83, 0
      %p743 = por %p741, %p742
      %p744 = scmp.ne.s32.totalorder %s736, %s738
      %p745 = scmp.eq.s32.totalorder %s88, 1
      %p746 = por %p744, %p745
      %p747 = scmp.ne.s32.totalorder %s738, %s739
      %p748 = scmp.eq.s32.totalorder %s88, 0
      %p749 = por %p747, %p748
      %p750 = scmp.ne.s32.totalorder %s738, %s739
      %p751 = scmp.eq.s32.totalorder %s89, 1
      %p752 = por %p750, %p751
      %p754 = scmp.ne.s32.totalorder %s739, %s753
      %p755 = scmp.eq.s32.totalorder %s89, 0
      %p756 = por %p754, %p755
      %s758 = sadd.s32 %s757, 1
      %p761 = scmp.eq.s32.totalorder %s83, 1
      %p762 = scmp.ne.s32.totalorder %s757, %s759
      %p763 = scmp.eq.s32.totalorder %s83, 0
      %p764 = por %p762, %p763
      %p765 = scmp.ne.s32.totalorder %s757, %s759
      %p766 = scmp.eq.s32.totalorder %s88, 1
      %p767 = por %p765, %p766
      %p768 = scmp.ne.s32.totalorder %s759, %s760
      %p769 = scmp.eq.s32.totalorder %s88, 0
      %p770 = por %p768, %p769
      %p771 = scmp.ne.s32.totalorder %s759, %s760
      %p772 = scmp.eq.s32.totalorder %s89, 1
      %p773 = por %p771, %p772
      %p775 = scmp.ne.s32.totalorder %s760, %s774
      %p776 = scmp.eq.s32.totalorder %s89, 0
      %p777 = por %p775, %p776
      %s779 = sadd.s32 %s778, 1
      %p782 = scmp.eq.s32.totalorder %s83, 1
      %p783 = scmp.ne.s32.totalorder %s778, %s780
      %p784 = scmp.eq.s32.totalorder %s83, 0
      %p785 = por %p783, %p784
      %p786 = scmp.ne.s32.totalorder %s778, %s780
      %p787 = scmp.eq.s32.totalorder %s88, 1
      %p788 = por %p786, %p787
      %p789 = scmp.ne.s32.totalorder %s780, %s781
      %p790 = scmp.eq.s32.totalorder %s88, 0
      %p791 = por %p789, %p790
      %p792 = scmp.ne.s32.totalorder %s780, %s781
      %p793 = scmp.eq.s32.totalorder %s89, 1
      %p794 = por %p792, %p793
      %p796 = scmp.ne.s32.totalorder %s781, %s795
      %p797 = scmp.eq.s32.totalorder %s89, 0
      %p798 = por %p796, %p797
      %s800 = sadd.s32 %s799, 1
      %p803 = scmp.eq.s32.totalorder %s83, 1
      %p804 = scmp.ne.s32.totalorder %s799, %s801
      %p805 = scmp.eq.s32.totalorder %s83, 0
      %p806 = por %p804, %p805
      %p807 = scmp.ne.s32.totalorder %s799, %s801
      %p808 = scmp.eq.s32.totalorder %s88, 1
      %p809 = por %p807, %p808
      %p810 = scmp.ne.s32.totalorder %s801, %s802
      %p811 = scmp.eq.s32.totalorder %s88, 0
      %p812 = por %p810, %p811
      %p813 = scmp.ne.s32.totalorder %s801, %s802
      %p814 = scmp.eq.s32.totalorder %s89, 1
      %p815 = por %p813, %p814
      %p817 = scmp.ne.s32.totalorder %s802, %s816
      %p818 = scmp.eq.s32.totalorder %s89, 0
      %p819 = por %p817, %p818
      %s821 = sadd.s32 %s820, 1
      %p824 = scmp.eq.s32.totalorder %s83, 1
      %p825 = scmp.ne.s32.totalorder %s820, %s822
      %p826 = scmp.eq.s32.totalorder %s83, 0
      %p827 = por %p825, %p826
      %p828 = scmp.ne.s32.totalorder %s820, %s822
      %p829 = scmp.eq.s32.totalorder %s88, 1
      %p830 = por %p828, %p829
      %p831 = scmp.ne.s32.totalorder %s822, %s823
      %p832 = scmp.eq.s32.totalorder %s88, 0
      %p833 = por %p831, %p832
      %p834 = scmp.ne.s32.totalorder %s822, %s823
      %p835 = scmp.eq.s32.totalorder %s89, 1
      %p836 = por %p834, %p835
      %p838 = scmp.ne.s32.totalorder %s823, %s837
      %p839 = scmp.eq.s32.totalorder %s89, 0
      %p840 = por %p838, %p839
      %s841 = ssub.s32 %s83, %s90
      %p842 = scmp.eq.s32.totalorder %s841, 0
      %s844 = sadd.s32 %s843, 1
      %s845 = scalar_select %p842, %s843, %s844
      %p848 = pneg %p842
      %p849 = scmp.eq.s32.totalorder %s83, 1
      %p850 = por %p848, %p849
      %p851 = scmp.ne.s32.totalorder %s843, %s846
      %p852 = scmp.eq.s32.totalorder %s83, 0
      %p853 = por %p851, %p852
      %p854 = scmp.ne.s32.totalorder %s843, %s846
      %p855 = scmp.eq.s32.totalorder %s88, 1
      %p856 = por %p854, %p855
      %p857 = scmp.ne.s32.totalorder %s846, %s847
      %p858 = scmp.eq.s32.totalorder %s88, 0
      %p859 = por %p857, %p858
      %p860 = scmp.ne.s32.totalorder %s846, %s847
      %p861 = scmp.eq.s32.totalorder %s89, 1
      %p862 = por %p860, %p861
      %p864 = scmp.ne.s32.totalorder %s847, %s863
      %p865 = scmp.eq.s32.totalorder %s89, 0
      %p866 = por %p864, %p865
      %s867 = ssub.s32 %s83, %s90
      %p868 = scmp.eq.s32.totalorder %s867, 0
      %s870 = sadd.s32 %s869, 1
      %s871 = scalar_select %p868, %s869, %s870
      %p874 = pneg %p868
      %p875 = scmp.eq.s32.totalorder %s83, 1
      %p876 = por %p874, %p875
      %p877 = scmp.ne.s32.totalorder %s869, %s872
      %p878 = scmp.eq.s32.totalorder %s83, 0
      %p879 = por %p877, %p878
      %p880 = scmp.ne.s32.totalorder %s869, %s872
      %p881 = scmp.eq.s32.totalorder %s88, 1
      %p882 = por %p880, %p881
      %p883 = scmp.ne.s32.totalorder %s872, %s873
      %p884 = scmp.eq.s32.totalorder %s88, 0
      %p885 = por %p883, %p884
      %p886 = scmp.ne.s32.totalorder %s872, %s873
      %p887 = scmp.eq.s32.totalorder %s89, 1
      %p888 = por %p886, %p887
      %p890 = scmp.ne.s32.totalorder %s873, %s889
      %p891 = scmp.eq.s32.totalorder %s89, 0
      %p892 = por %p890, %p891
      %p893 = scmp.le.s32.totalorder 1, %s83
      %p894 = scmp.lt.s32.totalorder %s83, 3
      %p895 = pnand %p893, %p894
      %p896 = pneg %p895
      // Predicated region
      $region9: #{time_transformer_decoder_layer.1} parent=5 // pred_check
        _
      $region10: #{time_transformer_decoder_layer.1} parent=5 // pred_check_branch
        %898 = sbr.rel (%p895) target = $region12
      $region11: #{time_transformer_decoder_layer.1} parent=5 // pred_region
        %s899 = ssub.s32 %s83, 1
        // Predicated region
        $region13: #{time_transformer_decoder_layer.1} parent=11 // pred_check
          %p900 = pneg %p182
        $region14: #{time_transformer_decoder_layer.1} parent=11 // pred_check_branch
          %902 = sbr.rel (%p900) target = $region16
        $region15: #{time_transformer_decoder_layer.1} parent=11 // pred_region
          _
        $region16: #{time_transformer_decoder_layer.1} parent=11 // pred_fallthru
          _
        // Predicated region
        $region17: #{time_transformer_decoder_layer.1} parent=11 // pred_check
          %p903 = pneg %p203
        $region18: #{time_transformer_decoder_layer.1} parent=11 // pred_check_branch
          %905 = sbr.rel (%p903) target = $region20
        $region19: #{time_transformer_decoder_layer.1} parent=11 // pred_region
          _
        $region20: #{time_transformer_decoder_layer.1} parent=11 // pred_fallthru
          _
        // Predicated region
        $region21: #{time_transformer_decoder_layer.1} parent=11 // pred_check
          %p906 = pneg %p224
        $region22: #{time_transformer_decoder_layer.1} parent=11 // pred_check_branch
          %908 = sbr.rel (%p906) target = $region24
        $region23: #{time_transformer_decoder_layer.1} parent=11 // pred_region
          _
        $region24: #{time_transformer_decoder_layer.1} parent=11 // pred_fallthru
          _
        // Predicated region
        $region25: #{time_transformer_decoder_layer.1} parent=11 // pred_check
          %p909 = pneg %p245
        $region26: #{time_transformer_decoder_layer.1} parent=11 // pred_check_branch
          %911 = sbr.rel (%p909) target = $region28
        $region27: #{time_transformer_decoder_layer.1} parent=11 // pred_region
          _
        $region28: #{time_transformer_decoder_layer.1} parent=11 // pred_fallthru
          _
        // Predicated region
        $region29: #{time_transformer_decoder_layer.1} parent=11 // pred_check
          %p912 = pneg %p266
        $region30: #{time_transformer_decoder_layer.1} parent=11 // pred_check_branch
          %914 = sbr.rel (%p912) target = $region32
        $region31: #{time_transformer_decoder_layer.1} parent=11 // pred_region
          _
        $region32: #{time_transformer_decoder_layer.1} parent=11 // pred_fallthru
          _
        // Predicated region
        $region33: #{time_transformer_decoder_layer.1} parent=11 // pred_check
          %p915 = pneg %p287
        $region34: #{time_transformer_decoder_layer.1} parent=11 // pred_check_branch
          %917 = sbr.rel (%p915) target = $region36
        $region35: #{time_transformer_decoder_layer.1} parent=11 // pred_region
          _
        $region36: #{time_transformer_decoder_layer.1} parent=11 // pred_fallthru
          _
        // Predicated region
        $region37: #{time_transformer_decoder_layer.1} parent=11 // pred_check
          %p918 = pneg %p308
        $region38: #{time_transformer_decoder_layer.1} parent=11 // pred_check_branch
          %920 = sbr.rel (%p918) target = $region40
        $region39: #{time_transformer_decoder_layer.1} parent=11 // pred_region
          _
        $region40: #{time_transformer_decoder_layer.1} parent=11 // pred_fallthru
          _
        // Predicated region
        $region41: #{time_transformer_decoder_layer.1} parent=11 // pred_check
          %p921 = pneg %p329
        $region42: #{time_transformer_decoder_layer.1} parent=11 // pred_check_branch
          %923 = sbr.rel (%p921) target = $region44
        $region43: #{time_transformer_decoder_layer.1} parent=11 // pred_region
          _
        $region44: #{time_transformer_decoder_layer.1} parent=11 // pred_fallthru
          _
        // Predicated region
        $region45: #{time_transformer_decoder_layer.1} parent=11 // pred_check
          %p924 = pneg %p350
        $region46: #{time_transformer_decoder_layer.1} parent=11 // pred_check_branch
          %926 = sbr.rel (%p924) target = $region48
        $region47: #{time_transformer_decoder_layer.1} parent=11 // pred_region
          _
        $region48: #{time_transformer_decoder_layer.1} parent=11 // pred_fallthru
          _
        // Predicated region
        $region49: #{time_transformer_decoder_layer.1} parent=11 // pred_check
          %p927 = pneg %p371
        $region50: #{time_transformer_decoder_layer.1} parent=11 // pred_check_branch
          %929 = sbr.rel (%p927) target = $region52
        $region51: #{time_transformer_decoder_layer.1} parent=11 // pred_region
          _
        $region52: #{time_transformer_decoder_layer.1} parent=11 // pred_fallthru
          _
        // Predicated region
        $region53: #{time_transformer_decoder_layer.1} parent=11 // pred_check
          %p930 = pneg %p392
        $region54: #{time_transformer_decoder_layer.1} parent=11 // pred_check_branch
          %932 = sbr.rel (%p930) target = $region56
        $region55: #{time_transformer_decoder_layer.1} parent=11 // pred_region
          _
        $region56: #{time_transformer_decoder_layer.1} parent=11 // pred_fallthru
          _
        // Predicated region
        $region57: #{time_transformer_decoder_layer.1} parent=11 // pred_check
          %p933 = pneg %p413
        $region58: #{time_transformer_decoder_layer.1} parent=11 // pred_check_branch
          %935 = sbr.rel (%p933) target = $region60
        $region59: #{time_transformer_decoder_layer.1} parent=11 // pred_region
          _
        $region60: #{time_transformer_decoder_layer.1} parent=11 // pred_fallthru
          _
        // Predicated region
        $region61: #{time_transformer_decoder_layer.1} parent=11 // pred_check
          %p936 = pneg %p434
        $region62: #{time_transformer_decoder_layer.1} parent=11 // pred_check_branch
          %938 = sbr.rel (%p936) target = $region64
        $region63: #{time_transformer_decoder_layer.1} parent=11 // pred_region
          _
        $region64: #{time_transformer_decoder_layer.1} parent=11 // pred_fallthru
          _
        // Predicated region
        $region65: #{time_transformer_decoder_layer.1} parent=11 // pred_check
          %p939 = pneg %p455
        $region66: #{time_transformer_decoder_layer.1} parent=11 // pred_check_branch
          %941 = sbr.rel (%p939) target = $region68
        $region67: #{time_transformer_decoder_layer.1} parent=11 // pred_region
          _
        $region68: #{time_transformer_decoder_layer.1} parent=11 // pred_fallthru
          _
        // Predicated region
        $region69: #{time_transformer_decoder_layer.1} parent=11 // pred_check
          %p942 = pneg %p476
        $region70: #{time_transformer_decoder_layer.1} parent=11 // pred_check_branch
          %944 = sbr.rel (%p942) target = $region72
        $region71: #{time_transformer_decoder_layer.1} parent=11 // pred_region
          _
        $region72: #{time_transformer_decoder_layer.1} parent=11 // pred_fallthru
          _
        // Predicated region
        $region73: #{time_transformer_decoder_layer.1} parent=11 // pred_check
          %p945 = pneg %p497
        $region74: #{time_transformer_decoder_layer.1} parent=11 // pred_check_branch
          %947 = sbr.rel (%p945) target = $region76
        $region75: #{time_transformer_decoder_layer.1} parent=11 // pred_region
          _
        $region76: #{time_transformer_decoder_layer.1} parent=11 // pred_fallthru
          _
        // Predicated region
        $region77: #{time_transformer_decoder_layer.1} parent=11 // pred_check
          %p948 = pneg %p518
        $region78: #{time_transformer_decoder_layer.1} parent=11 // pred_check_branch
          %950 = sbr.rel (%p948) target = $region80
        $region79: #{time_transformer_decoder_layer.1} parent=11 // pred_region
          _
        $region80: #{time_transformer_decoder_layer.1} parent=11 // pred_fallthru
          _
        // Predicated region
        $region81: #{time_transformer_decoder_layer.1} parent=11 // pred_check
          %p951 = pneg %p539
        $region82: #{time_transformer_decoder_layer.1} parent=11 // pred_check_branch
          %953 = sbr.rel (%p951) target = $region84
        $region83: #{time_transformer_decoder_layer.1} parent=11 // pred_region
          _
        $region84: #{time_transformer_decoder_layer.1} parent=11 // pred_fallthru
          _
        // Predicated region
        $region85: #{time_transformer_decoder_layer.1} parent=11 // pred_check
          %p954 = pneg %p560
        $region86: #{time_transformer_decoder_layer.1} parent=11 // pred_check_branch
          %956 = sbr.rel (%p954) target = $region88
        $region87: #{time_transformer_decoder_layer.1} parent=11 // pred_region
          _
        $region88: #{time_transformer_decoder_layer.1} parent=11 // pred_fallthru
          _
        // Predicated region
        $region89: #{time_transformer_decoder_layer.1} parent=11 // pred_check
          %p957 = pneg %p581
        $region90: #{time_transformer_decoder_layer.1} parent=11 // pred_check_branch
          %959 = sbr.rel (%p957) target = $region92
        $region91: #{time_transformer_decoder_layer.1} parent=11 // pred_region
          _
        $region92: #{time_transformer_decoder_layer.1} parent=11 // pred_fallthru
          _
        // Predicated region
        $region93: #{time_transformer_decoder_layer.1} parent=11 // pred_check
          %p960 = pneg %p602
        $region94: #{time_transformer_decoder_layer.1} parent=11 // pred_check_branch
          %962 = sbr.rel (%p960) target = $region96
        $region95: #{time_transformer_decoder_layer.1} parent=11 // pred_region
          _
        $region96: #{time_transformer_decoder_layer.1} parent=11 // pred_fallthru
          _
        // Predicated region
        $region97: #{time_transformer_decoder_layer.1} parent=11 // pred_check
          %p963 = pneg %p623
        $region98: #{time_transformer_decoder_layer.1} parent=11 // pred_check_branch
          %965 = sbr.rel (%p963) target = $region100
        $region99: #{time_transformer_decoder_layer.1} parent=11 // pred_region
          _
        $region100: #{time_transformer_decoder_layer.1} parent=11 // pred_fallthru
          _
        // Predicated region
        $region101: #{time_transformer_decoder_layer.1} parent=11 // pred_check
          %p966 = pneg %p644
        $region102: #{time_transformer_decoder_layer.1} parent=11 // pred_check_branch
          %968 = sbr.rel (%p966) target = $region104
        $region103: #{time_transformer_decoder_layer.1} parent=11 // pred_region
          _
        $region104: #{time_transformer_decoder_layer.1} parent=11 // pred_fallthru
          _
        // Predicated region
        $region105: #{time_transformer_decoder_layer.1} parent=11 // pred_check
          %p969 = pneg %p665
        $region106: #{time_transformer_decoder_layer.1} parent=11 // pred_check_branch
          %971 = sbr.rel (%p969) target = $region108
        $region107: #{time_transformer_decoder_layer.1} parent=11 // pred_region
          _
        $region108: #{time_transformer_decoder_layer.1} parent=11 // pred_fallthru
          _
        // Predicated region
        $region109: #{time_transformer_decoder_layer.1} parent=11 // pred_check
          %p972 = pneg %p686
        $region110: #{time_transformer_decoder_layer.1} parent=11 // pred_check_branch
          %974 = sbr.rel (%p972) target = $region112
        $region111: #{time_transformer_decoder_layer.1} parent=11 // pred_region
          _
        $region112: #{time_transformer_decoder_layer.1} parent=11 // pred_fallthru
          _
        // Predicated region
        $region113: #{time_transformer_decoder_layer.1} parent=11 // pred_check
          %p975 = pneg %p707
        $region114: #{time_transformer_decoder_layer.1} parent=11 // pred_check_branch
          %977 = sbr.rel (%p975) target = $region116
        $region115: #{time_transformer_decoder_layer.1} parent=11 // pred_region
          _
        $region116: #{time_transformer_decoder_layer.1} parent=11 // pred_fallthru
          _
        // Predicated region
        $region117: #{time_transformer_decoder_layer.1} parent=11 // pred_check
          %p978 = pneg %p728
        $region118: #{time_transformer_decoder_layer.1} parent=11 // pred_check_branch
          %980 = sbr.rel (%p978) target = $region120
        $region119: #{time_transformer_decoder_layer.1} parent=11 // pred_region
          _
        $region120: #{time_transformer_decoder_layer.1} parent=11 // pred_fallthru
          _
        // Predicated region
        $region121: #{time_transformer_decoder_layer.1} parent=11 // pred_check
          %p981 = pneg %p749
        $region122: #{time_transformer_decoder_layer.1} parent=11 // pred_check_branch
          %983 = sbr.rel (%p981) target = $region124
        $region123: #{time_transformer_decoder_layer.1} parent=11 // pred_region
          _
        $region124: #{time_transformer_decoder_layer.1} parent=11 // pred_fallthru
          _
        // Predicated region
        $region125: #{time_transformer_decoder_layer.1} parent=11 // pred_check
          %p984 = pneg %p770
        $region126: #{time_transformer_decoder_layer.1} parent=11 // pred_check_branch
          %986 = sbr.rel (%p984) target = $region128
        $region127: #{time_transformer_decoder_layer.1} parent=11 // pred_region
          _
        $region128: #{time_transformer_decoder_layer.1} parent=11 // pred_fallthru
          _
        // Predicated region
        $region129: #{time_transformer_decoder_layer.1} parent=11 // pred_check
          %p987 = pneg %p791
        $region130: #{time_transformer_decoder_layer.1} parent=11 // pred_check_branch
          %989 = sbr.rel (%p987) target = $region132
        $region131: #{time_transformer_decoder_layer.1} parent=11 // pred_region
          _
        $region132: #{time_transformer_decoder_layer.1} parent=11 // pred_fallthru
          _
        // Predicated region
        $region133: #{time_transformer_decoder_layer.1} parent=11 // pred_check
          %p990 = pneg %p812
        $region134: #{time_transformer_decoder_layer.1} parent=11 // pred_check_branch
          %992 = sbr.rel (%p990) target = $region136
        $region135: #{time_transformer_decoder_layer.1} parent=11 // pred_region
          _
        $region136: #{time_transformer_decoder_layer.1} parent=11 // pred_fallthru
          _
        // Predicated region
        $region137: #{time_transformer_decoder_layer.1} parent=11 // pred_check
          %p993 = pneg %p833
        $region138: #{time_transformer_decoder_layer.1} parent=11 // pred_check_branch
          %995 = sbr.rel (%p993) target = $region140
        $region139: #{time_transformer_decoder_layer.1} parent=11 // pred_region
          _
        $region140: #{time_transformer_decoder_layer.1} parent=11 // pred_fallthru
          _
      $region12: #{time_transformer_decoder_layer.1} parent=5 // pred_fallthru
        _
      %p996 = scmp.lt.s32.totalorder %s83, 2
      // Predicated region
      $region141: #{time_transformer_decoder_layer.1} parent=5 // pred_check
        %p997 = pneg %p996
      $region142: #{time_transformer_decoder_layer.1} parent=5 // pred_check_branch
        %999 = sbr.rel (%p997) target = $region144
      $region143: #{time_transformer_decoder_layer.1} parent=5 // pred_region
        // Predicated region
        $region145: #{time_transformer_decoder_layer.1} parent=143 // pred_check
          %p1000 = pneg %p103
        $region146: #{time_transformer_decoder_layer.1} parent=143 // pred_check_branch
          %1002 = sbr.rel (%p1000) target = $region148
        $region147: #{time_transformer_decoder_layer.1} parent=143 // pred_region
          %p1003 = scmp.lt.s32.totalorder %s83, 1
          %s1004 = scalar_select %p1003, %s83, 1
          %s1005 = smul.addr %s1004, 8
          %s1006 = scalar_lea.vmem %s1, %s1005
        $region148: #{time_transformer_decoder_layer.1} parent=143 // pred_fallthru
          _
        // Predicated region
        $region149: #{time_transformer_decoder_layer.1} parent=143 // pred_check
          %p1007 = pneg %p129
        $region150: #{time_transformer_decoder_layer.1} parent=143 // pred_check_branch
          %1009 = sbr.rel (%p1007) target = $region152
        $region151: #{time_transformer_decoder_layer.1} parent=143 // pred_region
          %p1010 = scmp.lt.s32.totalorder %s83, 1
          %s1011 = scalar_select %p1010, %s83, 1
          %s1012 = smul.addr %s1011, 8
          %s1013 = scalar_lea.vmem %s3, %s1012
        $region152: #{time_transformer_decoder_layer.1} parent=143 // pred_fallthru
          _
        // Predicated region
        $region153: #{time_transformer_decoder_layer.1} parent=143 // pred_check
          %p1014 = pneg %p155
        $region154: #{time_transformer_decoder_layer.1} parent=143 // pred_check_branch
          %1016 = sbr.rel (%p1014) target = $region156
        $region155: #{time_transformer_decoder_layer.1} parent=143 // pred_region
          %p1017 = scmp.lt.s32.totalorder %s83, 1
          %s1018 = scalar_select %p1017, %s83, 1
          %s1019 = scalar_lea.vmem %s5, %s1018
        $region156: #{time_transformer_decoder_layer.1} parent=143 // pred_fallthru
          _
      $region144: #{time_transformer_decoder_layer.1} parent=5 // pred_fallthru
        _
      %p1020 = scmp.le.s32.totalorder 1, %s83
      %p1021 = scmp.lt.s32.totalorder %s83, 3
      %p1022 = pnand %p1020, %p1021
      %p1023 = pneg %p1022
      // Predicated region
      $region157: #{time_transformer_decoder_layer.1} parent=5 // pred_check
        _
      $region158: #{time_transformer_decoder_layer.1} parent=5 // pred_check_branch
        %1025 = sbr.rel (%p1022) target = $region160
      $region159: #{time_transformer_decoder_layer.1} parent=5 // pred_region
        %s1026 = ssub.s32 %s83, 1
        %p1027 = scmp.lt.s32.totalorder %s88, 1
        %s1028 = scalar_select %p1027, %s88, 1
        %s1029 = smul.addr %s1028, 8
        %s1030 = scalar_lea.vmem %s1, %s1029
        %p1031 = pneg %p109
        %p1032 = pneg %p106
        %p1033 = scmp.lt.s32.totalorder %s88, 1
        %s1034 = scalar_select %p1033, %s88, 1
        %s1035 = smul.addr %s1034, 8
        %s1036 = scalar_lea.vmem %s3, %s1035
        %p1037 = pneg %p135
        %p1038 = pneg %p132
        %p1039 = scmp.lt.s32.totalorder %s88, 1
        %s1040 = scalar_select %p1039, %s88, 1
        %s1041 = scalar_lea.vmem %s5, %s1040
        %p1042 = pneg %p161
        %p1043 = pneg %p158
        %p1044 = pneg %p182
        %p1045 = pneg %p179
        %p1046 = pneg %p203
        %p1047 = pneg %p200
        %p1048 = pneg %p224
        %p1049 = pneg %p221
        %p1050 = pneg %p245
        %p1051 = pneg %p242
        %p1052 = pneg %p266
        %p1053 = pneg %p263
        %p1054 = pneg %p287
        %p1055 = pneg %p284
        %p1056 = pneg %p308
        %p1057 = pneg %p305
        %p1058 = pneg %p329
        %p1059 = pneg %p326
        %p1060 = pneg %p350
        %p1061 = pneg %p347
        %p1062 = pneg %p371
        %p1063 = pneg %p368
        %p1064 = pneg %p392
        %p1065 = pneg %p389
        %p1066 = pneg %p413
        %p1067 = pneg %p410
        %p1068 = pneg %p434
        %p1069 = pneg %p431
        %p1070 = pneg %p455
        %p1071 = pneg %p452
        %p1072 = pneg %p476
        %p1073 = pneg %p473
        %p1074 = pneg %p497
        %p1075 = pneg %p494
        %p1076 = pneg %p518
        %p1077 = pneg %p515
        %p1078 = pneg %p539
        %p1079 = pneg %p536
        %p1080 = pneg %p560
        %p1081 = pneg %p557
        %p1082 = pneg %p581
        %p1083 = pneg %p578
        %p1084 = pneg %p602
        %p1085 = pneg %p599
        %p1086 = pneg %p623
        %p1087 = pneg %p620
        %p1088 = pneg %p644
        %p1089 = pneg %p641
        %p1090 = pneg %p665
        %p1091 = pneg %p662
        %p1092 = pneg %p686
        %p1093 = pneg %p683
        %p1094 = pneg %p707
        %p1095 = pneg %p704
        %p1096 = pneg %p728
        %p1097 = pneg %p725
        %p1098 = pneg %p749
        %p1099 = pneg %p746
        %p1100 = pneg %p770
        %p1101 = pneg %p767
        %p1102 = pneg %p791
        %p1103 = pneg %p788
        %p1104 = pneg %p812
        %p1105 = pneg %p809
        %p1106 = pneg %p833
        %p1107 = pneg %p830
        %p1108 = pneg %p859
        %p1109 = pneg %p856
        %s1110 = sand.u32 %s846, 1
        %s1111 = scalar_lea.sflag [#allocation3], %s1110
        %s1112 = sand.u32 %s846, 1
        %s1113 = smul.addr %s1112, 8
        %s1114 = scalar_lea.vmem [#allocation2], %s1113
        %p1115 = pneg %p885
        %p1116 = pneg %p882
        %p1117 = scmp.lt.s32.totalorder %s88, 1
        %s1118 = scalar_select %p1117, %s88, 1
        %s1119 = smul.addr %s1118, 4
        %s1120 = smul.addr %s1119, 8
        %s1121 = scalar_lea.vmem %s73, %s1120
        %p1122 = scmp.lt.s32.totalorder %s88, 1
        %s1123 = scalar_select %p1122, %s88, 1
        %s1124 = smul.addr %s1123, 8
        %s1125 = scalar_lea.vmem %s1, %s1124
        %p1126 = scmp.lt.s32.totalorder %s88, 1
        %s1127 = scalar_select %p1126, %s88, 1
        %s1128 = smul.addr %s1127, 8
        %s1129 = scalar_lea.vmem %s3, %s1128
        %p1130 = scmp.lt.s32.totalorder %s88, 1
        %s1131 = scalar_select %p1130, %s88, 1
        %s1132 = scalar_lea.vmem %s5, %s1131
        %p1133 = scmp.lt.s32.totalorder %s88, 1
        %s1134 = scalar_select %p1133, %s88, 1
        %s1135 = smul.addr %s1134, 4
        %s1136 = smul.addr %s1135, 8
        %s1137 = scalar_lea.vmem %s73, %s1136
        %v1138 = vld [vmem:[%s1125] sm:$0xff]
        %v1139 = vld [vmem:[%s1129] sm:$0xff]
        %v1140 = vld [vmem:[%s1132] sm:$0x1]
        %v1141 = vld [vmem:[%s7] sm:$0xff]
        %v1142 = vld [vmem:[%s7 + $0x8] sm:$0xff]
        %v1143 = vld [vmem:[%s7 + $0x10] sm:$0xff]
        %v1144 = vld [vmem:[%s7 + $0x18] sm:$0xff]
        %v1145 = vld [vmem:[%s7 + $0x20] sm:$0xff]
        %v1146 = vld [vmem:[%s7 + $0x28] sm:$0xff]
        %v1147 = vld [vmem:[%s7 + $0x30] sm:$0xff]
        %v1148 = vld [vmem:[%s7 + $0x38] sm:$0xff]
        %v1149 = vld [vmem:[%s7 + $0x40] sm:$0xff]
        %v1150 = vld [vmem:[%s7 + $0x48] sm:$0xff]
        %v1151 = vld [vmem:[%s7 + $0x50] sm:$0xff]
        %v1152 = vld [vmem:[%s7 + $0x58] sm:$0xff]
        %v1153 = vld [vmem:[%s7 + $0x60] sm:$0xff]
        %v1154 = vld [vmem:[%s7 + $0x68] sm:$0xff]
        %v1155 = vld [vmem:[%s7 + $0x70] sm:$0xff]
        %v1156 = vld [vmem:[%s7 + $0x78] sm:$0xff]
        %v1157 = vld [vmem:[%s9] sm:$0x1]
        %v1158 = vld [vmem:[%s9 + $0x1] sm:$0x1]
        %v1159 = vld [vmem:[%s9 + $0x2] sm:$0x1]
        %v1160 = vld [vmem:[%s9 + $0x3] sm:$0x1]
        %v1161 = vld [vmem:[%s11] sm:$0xff]
        %v1162 = vld [vmem:[%s11 + $0x8] sm:$0xff]
        %v1163 = vld [vmem:[%s11 + $0x10] sm:$0xff]
        %v1164 = vld [vmem:[%s11 + $0x18] sm:$0xff]
        %v1165 = vld [vmem:[%s11 + $0x20] sm:$0xff]
        %v1166 = vld [vmem:[%s11 + $0x28] sm:$0xff]
        %v1167 = vld [vmem:[%s11 + $0x30] sm:$0xff]
        %v1168 = vld [vmem:[%s11 + $0x38] sm:$0xff]
        %v1169 = vld [vmem:[%s11 + $0x40] sm:$0xff]
        %v1170 = vld [vmem:[%s11 + $0x48] sm:$0xff]
        %v1171 = vld [vmem:[%s11 + $0x50] sm:$0xff]
        %v1172 = vld [vmem:[%s11 + $0x58] sm:$0xff]
        %v1173 = vld [vmem:[%s11 + $0x60] sm:$0xff]
        %v1174 = vld [vmem:[%s11 + $0x68] sm:$0xff]
        %v1175 = vld [vmem:[%s11 + $0x70] sm:$0xff]
        %v1176 = vld [vmem:[%s11 + $0x78] sm:$0xff]
        %v1177 = vld [vmem:[%s13] sm:$0x1]
        %v1178 = vld [vmem:[%s13 + $0x1] sm:$0x1]
        %v1179 = vld [vmem:[%s13 + $0x2] sm:$0x1]
        %v1180 = vld [vmem:[%s13 + $0x3] sm:$0x1]
        %v1181 = vld [vmem:[%s15] sm:$0xff]
        %v1182 = vld [vmem:[%s15 + $0x8] sm:$0xff]
        %v1183 = vld [vmem:[%s15 + $0x10] sm:$0xff]
        %v1184 = vld [vmem:[%s15 + $0x18] sm:$0xff]
        %v1185 = vld [vmem:[%s15 + $0x20] sm:$0xff]
        %v1186 = vld [vmem:[%s15 + $0x28] sm:$0xff]
        %v1187 = vld [vmem:[%s15 + $0x30] sm:$0xff]
        %v1188 = vld [vmem:[%s15 + $0x38] sm:$0xff]
        %v1189 = vld [vmem:[%s15 + $0x40] sm:$0xff]
        %v1190 = vld [vmem:[%s15 + $0x48] sm:$0xff]
        %v1191 = vld [vmem:[%s15 + $0x50] sm:$0xff]
        %v1192 = vld [vmem:[%s15 + $0x58] sm:$0xff]
        %v1193 = vld [vmem:[%s15 + $0x60] sm:$0xff]
        %v1194 = vld [vmem:[%s15 + $0x68] sm:$0xff]
        %v1195 = vld [vmem:[%s15 + $0x70] sm:$0xff]
        %v1196 = vld [vmem:[%s15 + $0x78] sm:$0xff]
        %v1197 = vld [vmem:[%s17] sm:$0x1]
        %v1198 = vld [vmem:[%s17 + $0x1] sm:$0x1]
        %v1199 = vld [vmem:[%s17 + $0x2] sm:$0x1]
        %v1200 = vld [vmem:[%s17 + $0x3] sm:$0x1]
        %v1201 = vld [vmem:[%s19] sm:$0xff]
        %v1202 = vld [vmem:[%s19 + $0x8] sm:$0xff]
        %v1203 = vld [vmem:[%s19 + $0x10] sm:$0xff]
        %v1204 = vld [vmem:[%s19 + $0x18] sm:$0xff]
        %v1205 = vld [vmem:[%s21] sm:$0x1]
        %v1210 = vlaneseq
        %v1211 = vshrl.u32 %v1210, 7
        %v1212 = vsub.s32 0, %v1211
        %v1213 = vrot.slane %v1157, %v1212
        %v1214 = vlaneseq
        %v1215 = vshrl.u32 %v1214, 7
        %v1216 = vsub.s32 0, %v1215
        %v1217 = vrot.slane %v1158, %v1216
        %v1218 = vlaneseq
        %v1219 = vshrl.u32 %v1218, 7
        %v1220 = vsub.s32 0, %v1219
        %v1221 = vrot.slane %v1159, %v1220
        %v1222 = vlaneseq
        %v1223 = vshrl.u32 %v1222, 7
        %v1224 = vsub.s32 0, %v1223
        %v1225 = vrot.slane %v1160, %v1224
        %vm1230 = vcmask 261120
        %v1232 = vsel %vm1230, %v1138, 0
        %1234 = vmatprep.subr.mxu0 0.0
        %1235 = vmatpush1.msra.mxu0 %v1141
        %1236 = vmatprep.subr.mxu0 0.0
        %1237 = vmatpush1.msra.mxu0 %v1142
        %1238 = vmatprep.subr.mxu0 0.0
        %1239 = vmatpush1.msra.mxu0 %v1143
        %1240 = vmatprep.subr.mxu0 0.0
        %1241 = vmatpush1.msra.mxu0 %v1144
        %1242 = vmatprep.subr.mxu0 0.0
        %1243 = vmatpush1.msra.mxu0 0.0
        %1244 = vmatprep.subr.mxu0 0.0
        %1245 = vmatpush1.msra.mxu0 0.0
        %1246 = vmatprep.subr.mxu0 0.0
        %1247 = vmatpush1.msra.mxu0 0.0
        %1248 = vmatprep.subr.mxu0 0.0
        %1249 = vmatpush1.msra.mxu0 0.0
        %1250 = vmatprep.subr.mxu0 0.0
        %1251 = vmatpush1.msra.mxu0 0.0
        %1252 = vmatprep.subr.mxu0 0.0
        %1253 = vmatpush1.msra.mxu0 0.0
        %1254 = vmatprep.subr.mxu0 0.0
        %1255 = vmatpush1.msra.mxu0 0.0
        %1256 = vmatprep.subr.mxu0 0.0
        %1257 = vmatpush1.msra.mxu0 0.0
        %1258 = vmatprep.subr.mxu0 0.0
        %1259 = vmatpush1.msra.mxu0 0.0
        %1260 = vmatprep.subr.mxu0 0.0
        %1261 = vmatpush1.msra.mxu0 0.0
        %1262 = vmatprep.subr.mxu0 0.0
        %1263 = vmatpush1.msra.mxu0 0.0
        %1264 = vmatprep.subr.mxu0 0.0
        %1265 = vmatpush1.msra.mxu0 0.0
        %1266 = vmatprep.subr.mxu0 0.0
        %1267 = vmatpush1.msra.mxu0 0.0
        %1268 = vmatprep.subr.mxu0 0.0
        %1269 = vmatpush1.msra.mxu0 0.0
        %1270 = vmatprep.subr.mxu0 0.0
        %1271 = vmatpush1.msra.mxu0 0.0
        %1272 = vmatprep.subr.mxu0 0.0
        %1273 = vmatpush1.msra.mxu0 0.0
        %1274 = vmatprep.subr.mxu0 0.0
        %1275 = vmatpush1.msra.mxu0 0.0
        %1276 = vmatprep.subr.mxu0 0.0
        %1277 = vmatpush1.msra.mxu0 0.0
        %1278 = vmatprep.subr.mxu0 0.0
        %1279 = vmatpush1.msra.mxu0 0.0
        %1280 = vmatprep.subr.mxu0 0.0
        %1281 = vmatpush1.msra.mxu0 0.0
        %1282 = vmatprep.subr.mxu0 0.0
        %1283 = vmatpush1.msra.mxu0 0.0
        %1284 = vmatprep.subr.mxu0 0.0
        %1285 = vmatpush1.msra.mxu0 0.0
        %1286 = vmatprep.subr.mxu0 0.0
        %1287 = vmatpush1.msra.mxu0 0.0
        %1288 = vmatprep.subr.mxu0 0.0
        %1289 = vmatpush1.msra.mxu0 0.0
        %1290 = vmatprep.subr.mxu0 0.0
        %1291 = vmatpush1.msra.mxu0 0.0
        %1292 = vmatprep.subr.mxu0 0.0
        %1293 = vmatpush1.msra.mxu0 0.0
        %1294 = vmatprep.subr.mxu0 0.0
        %1295 = vmatpush1.msra.mxu0 0.0
        %1296 = vmatprep.subr.mxu0 0.0
        %1297 = vmatpush1.msra.mxu0 0.0
        %1298 = vmatprep.mubr.f32.mxu0 0.0
        %1299 = vmatmul.mubr.f32.gmra.mrb[0].mxu0 %v1232
        %v1300 = vpop.f32.mrb[0].mxu0
        %v1301 = vadd.f32 %v1213, %v1300
        %v1302 = vpop.f32.mrb[0].mxu0
        %1303 = vdwg.mxu0
        %1304 = vmatprep.subr.mxu0 0.0
        %1305 = vmatpush1.msra.mxu0 %v1145
        %1306 = vmatprep.subr.mxu0 0.0
        %1307 = vmatpush1.msra.mxu0 %v1146
        %1308 = vmatprep.subr.mxu0 0.0
        %1309 = vmatpush1.msra.mxu0 %v1147
        %1310 = vmatprep.subr.mxu0 0.0
        %1311 = vmatpush1.msra.mxu0 %v1148
        %1312 = vmatprep.subr.mxu0 0.0
        %1313 = vmatpush1.msra.mxu0 0.0
        %1314 = vmatprep.subr.mxu0 0.0
        %1315 = vmatpush1.msra.mxu0 0.0
        %1316 = vmatprep.subr.mxu0 0.0
        %1317 = vmatpush1.msra.mxu0 0.0
        %1318 = vmatprep.subr.mxu0 0.0
        %1319 = vmatpush1.msra.mxu0 0.0
        %1320 = vmatprep.subr.mxu0 0.0
        %1321 = vmatpush1.msra.mxu0 0.0
        %1322 = vmatprep.subr.mxu0 0.0
        %1323 = vmatpush1.msra.mxu0 0.0
        %1324 = vmatprep.subr.mxu0 0.0
        %1325 = vmatpush1.msra.mxu0 0.0
        %1326 = vmatprep.subr.mxu0 0.0
        %1327 = vmatpush1.msra.mxu0 0.0
        %1328 = vmatprep.subr.mxu0 0.0
        %1329 = vmatpush1.msra.mxu0 0.0
        %1330 = vmatprep.subr.mxu0 0.0
        %1331 = vmatpush1.msra.mxu0 0.0
        %1332 = vmatprep.subr.mxu0 0.0
        %1333 = vmatpush1.msra.mxu0 0.0
        %1334 = vmatprep.subr.mxu0 0.0
        %1335 = vmatpush1.msra.mxu0 0.0
        %1336 = vmatprep.subr.mxu0 0.0
        %1337 = vmatpush1.msra.mxu0 0.0
        %1338 = vmatprep.subr.mxu0 0.0
        %1339 = vmatpush1.msra.mxu0 0.0
        %1340 = vmatprep.subr.mxu0 0.0
        %1341 = vmatpush1.msra.mxu0 0.0
        %1342 = vmatprep.subr.mxu0 0.0
        %1343 = vmatpush1.msra.mxu0 0.0
        %1344 = vmatprep.subr.mxu0 0.0
        %1345 = vmatpush1.msra.mxu0 0.0
        %1346 = vmatprep.subr.mxu0 0.0
        %1347 = vmatpush1.msra.mxu0 0.0
        %1348 = vmatprep.subr.mxu0 0.0
        %1349 = vmatpush1.msra.mxu0 0.0
        %1350 = vmatprep.subr.mxu0 0.0
        %1351 = vmatpush1.msra.mxu0 0.0
        %1352 = vmatprep.subr.mxu0 0.0
        %1353 = vmatpush1.msra.mxu0 0.0
        %1354 = vmatprep.subr.mxu0 0.0
        %1355 = vmatpush1.msra.mxu0 0.0
        %1356 = vmatprep.subr.mxu0 0.0
        %1357 = vmatpush1.msra.mxu0 0.0
        %1358 = vmatprep.subr.mxu0 0.0
        %1359 = vmatpush1.msra.mxu0 0.0
        %1360 = vmatprep.subr.mxu0 0.0
        %1361 = vmatpush1.msra.mxu0 0.0
        %1362 = vmatprep.subr.mxu0 0.0
        %1363 = vmatpush1.msra.mxu0 0.0
        %1364 = vmatprep.subr.mxu0 0.0
        %1365 = vmatpush1.msra.mxu0 0.0
        %1366 = vmatprep.subr.mxu0 0.0
        %1367 = vmatpush1.msra.mxu0 0.0
        %1368 = vmatprep.mubr.f32.mxu0 0.0
        %1369 = vmatmul.mubr.f32.gmra.mrb[0].mxu0 %v1232
        %v1370 = vpop.f32.mrb[0].mxu0
        %v1371 = vadd.f32 %v1217, %v1370
        %v1372 = vpop.f32.mrb[0].mxu0
        %1373 = vdwg.mxu0
        %1374 = vmatprep.subr.mxu0 0.0
        %1375 = vmatpush1.msra.mxu0 %v1149
        %1376 = vmatprep.subr.mxu0 0.0
        %1377 = vmatpush1.msra.mxu0 %v1150
        %1378 = vmatprep.subr.mxu0 0.0
        %1379 = vmatpush1.msra.mxu0 %v1151
        %1380 = vmatprep.subr.mxu0 0.0
        %1381 = vmatpush1.msra.mxu0 %v1152
        %1382 = vmatprep.subr.mxu0 0.0
        %1383 = vmatpush1.msra.mxu0 0.0
        %1384 = vmatprep.subr.mxu0 0.0
        %1385 = vmatpush1.msra.mxu0 0.0
        %1386 = vmatprep.subr.mxu0 0.0
        %1387 = vmatpush1.msra.mxu0 0.0
        %1388 = vmatprep.subr.mxu0 0.0
        %1389 = vmatpush1.msra.mxu0 0.0
        %1390 = vmatprep.subr.mxu0 0.0
        %1391 = vmatpush1.msra.mxu0 0.0
        %1392 = vmatprep.subr.mxu0 0.0
        %1393 = vmatpush1.msra.mxu0 0.0
        %1394 = vmatprep.subr.mxu0 0.0
        %1395 = vmatpush1.msra.mxu0 0.0
        %1396 = vmatprep.subr.mxu0 0.0
        %1397 = vmatpush1.msra.mxu0 0.0
        %1398 = vmatprep.subr.mxu0 0.0
        %1399 = vmatpush1.msra.mxu0 0.0
        %1400 = vmatprep.subr.mxu0 0.0
        %1401 = vmatpush1.msra.mxu0 0.0
        %1402 = vmatprep.subr.mxu0 0.0
        %1403 = vmatpush1.msra.mxu0 0.0
        %1404 = vmatprep.subr.mxu0 0.0
        %1405 = vmatpush1.msra.mxu0 0.0
        %1406 = vmatprep.subr.mxu0 0.0
        %1407 = vmatpush1.msra.mxu0 0.0
        %1408 = vmatprep.subr.mxu0 0.0
        %1409 = vmatpush1.msra.mxu0 0.0
        %1410 = vmatprep.subr.mxu0 0.0
        %1411 = vmatpush1.msra.mxu0 0.0
        %1412 = vmatprep.subr.mxu0 0.0
        %1413 = vmatpush1.msra.mxu0 0.0
        %1414 = vmatprep.subr.mxu0 0.0
        %1415 = vmatpush1.msra.mxu0 0.0
        %1416 = vmatprep.subr.mxu0 0.0
        %1417 = vmatpush1.msra.mxu0 0.0
        %1418 = vmatprep.subr.mxu0 0.0
        %1419 = vmatpush1.msra.mxu0 0.0
        %1420 = vmatprep.subr.mxu0 0.0
        %1421 = vmatpush1.msra.mxu0 0.0
        %1422 = vmatprep.subr.mxu0 0.0
        %1423 = vmatpush1.msra.mxu0 0.0
        %1424 = vmatprep.subr.mxu0 0.0
        %1425 = vmatpush1.msra.mxu0 0.0
        %1426 = vmatprep.subr.mxu0 0.0
        %1427 = vmatpush1.msra.mxu0 0.0
        %1428 = vmatprep.subr.mxu0 0.0
        %1429 = vmatpush1.msra.mxu0 0.0
        %1430 = vmatprep.subr.mxu0 0.0
        %1431 = vmatpush1.msra.mxu0 0.0
        %1432 = vmatprep.subr.mxu0 0.0
        %1433 = vmatpush1.msra.mxu0 0.0
        %1434 = vmatprep.subr.mxu0 0.0
        %1435 = vmatpush1.msra.mxu0 0.0
        %1436 = vmatprep.subr.mxu0 0.0
        %1437 = vmatpush1.msra.mxu0 0.0
        %1438 = vmatprep.mubr.f32.mxu0 0.0
        %1439 = vmatmul.mubr.f32.gmra.mrb[0].mxu0 %v1232
        %v1440 = vpop.f32.mrb[0].mxu0
        %v1441 = vadd.f32 %v1221, %v1440
        %v1442 = vpop.f32.mrb[0].mxu0
        %1443 = vdwg.mxu0
        %1444 = vmatprep.subr.mxu0 0.0
        %1445 = vmatpush1.msra.mxu0 %v1153
        %1446 = vmatprep.subr.mxu0 0.0
        %1447 = vmatpush1.msra.mxu0 %v1154
        %1448 = vmatprep.subr.mxu0 0.0
        %1449 = vmatpush1.msra.mxu0 %v1155
        %1450 = vmatprep.subr.mxu0 0.0
        %1451 = vmatpush1.msra.mxu0 %v1156
        %1452 = vmatprep.subr.mxu0 0.0
        %1453 = vmatpush1.msra.mxu0 0.0
        %1454 = vmatprep.subr.mxu0 0.0
        %1455 = vmatpush1.msra.mxu0 0.0
        %1456 = vmatprep.subr.mxu0 0.0
        %1457 = vmatpush1.msra.mxu0 0.0
        %1458 = vmatprep.subr.mxu0 0.0
        %1459 = vmatpush1.msra.mxu0 0.0
        %1460 = vmatprep.subr.mxu0 0.0
        %1461 = vmatpush1.msra.mxu0 0.0
        %1462 = vmatprep.subr.mxu0 0.0
        %1463 = vmatpush1.msra.mxu0 0.0
        %1464 = vmatprep.subr.mxu0 0.0
        %1465 = vmatpush1.msra.mxu0 0.0
        %1466 = vmatprep.subr.mxu0 0.0
        %1467 = vmatpush1.msra.mxu0 0.0
        %1468 = vmatprep.subr.mxu0 0.0
        %1469 = vmatpush1.msra.mxu0 0.0
        %1470 = vmatprep.subr.mxu0 0.0
        %1471 = vmatpush1.msra.mxu0 0.0
        %1472 = vmatprep.subr.mxu0 0.0
        %1473 = vmatpush1.msra.mxu0 0.0
        %1474 = vmatprep.subr.mxu0 0.0
        %1475 = vmatpush1.msra.mxu0 0.0
        %1476 = vmatprep.subr.mxu0 0.0
        %1477 = vmatpush1.msra.mxu0 0.0
        %1478 = vmatprep.subr.mxu0 0.0
        %1479 = vmatpush1.msra.mxu0 0.0
        %1480 = vmatprep.subr.mxu0 0.0
        %1481 = vmatpush1.msra.mxu0 0.0
        %1482 = vmatprep.subr.mxu0 0.0
        %1483 = vmatpush1.msra.mxu0 0.0
        %1484 = vmatprep.subr.mxu0 0.0
        %1485 = vmatpush1.msra.mxu0 0.0
        %1486 = vmatprep.subr.mxu0 0.0
        %1487 = vmatpush1.msra.mxu0 0.0
        %1488 = vmatprep.subr.mxu0 0.0
        %1489 = vmatpush1.msra.mxu0 0.0
        %1490 = vmatprep.subr.mxu0 0.0
        %1491 = vmatpush1.msra.mxu0 0.0
        %1492 = vmatprep.subr.mxu0 0.0
        %1493 = vmatpush1.msra.mxu0 0.0
        %1494 = vmatprep.subr.mxu0 0.0
        %1495 = vmatpush1.msra.mxu0 0.0
        %1496 = vmatprep.subr.mxu0 0.0
        %1497 = vmatpush1.msra.mxu0 0.0
        %1498 = vmatprep.subr.mxu0 0.0
        %1499 = vmatpush1.msra.mxu0 0.0
        %1500 = vmatprep.subr.mxu0 0.0
        %1501 = vmatpush1.msra.mxu0 0.0
        %1502 = vmatprep.subr.mxu0 0.0
        %1503 = vmatpush1.msra.mxu0 0.0
        %1504 = vmatprep.subr.mxu0 0.0
        %1505 = vmatpush1.msra.mxu0 0.0
        %1506 = vmatprep.subr.mxu0 0.0
        %1507 = vmatpush1.msra.mxu0 0.0
        %1508 = vmatprep.mubr.f32.mxu0 0.0
        %1509 = vmatmul.mubr.f32.gmra.mrb[0].mxu0 %v1232
        %v1510 = vpop.f32.mrb[0].mxu0
        %v1511 = vadd.f32 %v1225, %v1510
        %v1512 = vpop.f32.mrb[0].mxu0
        %1513 = vdwg.mxu0
        %v1518 = vlaneseq
        %v1519 = vshrl.u32 %v1518, 7
        %v1520 = vsub.s32 0, %v1519
        %v1521 = vrot.slane %v1177, %v1520
        %v1522 = vlaneseq
        %v1523 = vshrl.u32 %v1522, 7
        %v1524 = vsub.s32 0, %v1523
        %v1525 = vrot.slane %v1178, %v1524
        %v1526 = vlaneseq
        %v1527 = vshrl.u32 %v1526, 7
        %v1528 = vsub.s32 0, %v1527
        %v1529 = vrot.slane %v1179, %v1528
        %v1530 = vlaneseq
        %v1531 = vshrl.u32 %v1530, 7
        %v1532 = vsub.s32 0, %v1531
        %v1533 = vrot.slane %v1180, %v1532
        %1538 = vmatprep.subr.mxu0 0.0
        %1539 = vmatpush1.msra.mxu0 %v1161
        %1540 = vmatprep.subr.mxu0 0.0
        %1541 = vmatpush1.msra.mxu0 %v1162
        %1542 = vmatprep.subr.mxu0 0.0
        %1543 = vmatpush1.msra.mxu0 %v1163
        %1544 = vmatprep.subr.mxu0 0.0
        %1545 = vmatpush1.msra.mxu0 %v1164
        %1546 = vmatprep.subr.mxu0 0.0
        %1547 = vmatpush1.msra.mxu0 0.0
        %1548 = vmatprep.subr.mxu0 0.0
        %1549 = vmatpush1.msra.mxu0 0.0
        %1550 = vmatprep.subr.mxu0 0.0
        %1551 = vmatpush1.msra.mxu0 0.0
        %1552 = vmatprep.subr.mxu0 0.0
        %1553 = vmatpush1.msra.mxu0 0.0
        %1554 = vmatprep.subr.mxu0 0.0
        %1555 = vmatpush1.msra.mxu0 0.0
        %1556 = vmatprep.subr.mxu0 0.0
        %1557 = vmatpush1.msra.mxu0 0.0
        %1558 = vmatprep.subr.mxu0 0.0
        %1559 = vmatpush1.msra.mxu0 0.0
        %1560 = vmatprep.subr.mxu0 0.0
        %1561 = vmatpush1.msra.mxu0 0.0
        %1562 = vmatprep.subr.mxu0 0.0
        %1563 = vmatpush1.msra.mxu0 0.0
        %1564 = vmatprep.subr.mxu0 0.0
        %1565 = vmatpush1.msra.mxu0 0.0
        %1566 = vmatprep.subr.mxu0 0.0
        %1567 = vmatpush1.msra.mxu0 0.0
        %1568 = vmatprep.subr.mxu0 0.0
        %1569 = vmatpush1.msra.mxu0 0.0
        %1570 = vmatprep.subr.mxu0 0.0
        %1571 = vmatpush1.msra.mxu0 0.0
        %1572 = vmatprep.subr.mxu0 0.0
        %1573 = vmatpush1.msra.mxu0 0.0
        %1574 = vmatprep.subr.mxu0 0.0
        %1575 = vmatpush1.msra.mxu0 0.0
        %1576 = vmatprep.subr.mxu0 0.0
        %1577 = vmatpush1.msra.mxu0 0.0
        %1578 = vmatprep.subr.mxu0 0.0
        %1579 = vmatpush1.msra.mxu0 0.0
        %1580 = vmatprep.subr.mxu0 0.0
        %1581 = vmatpush1.msra.mxu0 0.0
        %1582 = vmatprep.subr.mxu0 0.0
        %1583 = vmatpush1.msra.mxu0 0.0
        %1584 = vmatprep.subr.mxu0 0.0
        %1585 = vmatpush1.msra.mxu0 0.0
        %1586 = vmatprep.subr.mxu0 0.0
        %1587 = vmatpush1.msra.mxu0 0.0
        %1588 = vmatprep.subr.mxu0 0.0
        %1589 = vmatpush1.msra.mxu0 0.0
        %1590 = vmatprep.subr.mxu0 0.0
        %1591 = vmatpush1.msra.mxu0 0.0
        %1592 = vmatprep.subr.mxu0 0.0
        %1593 = vmatpush1.msra.mxu0 0.0
        %1594 = vmatprep.subr.mxu0 0.0
        %1595 = vmatpush1.msra.mxu0 0.0
        %1596 = vmatprep.subr.mxu0 0.0
        %1597 = vmatpush1.msra.mxu0 0.0
        %1598 = vmatprep.subr.mxu0 0.0
        %1599 = vmatpush1.msra.mxu0 0.0
        %1600 = vmatprep.subr.mxu0 0.0
        %1601 = vmatpush1.msra.mxu0 0.0
        %1602 = vmatprep.mubr.f32.mxu0 0.0
        %1603 = vmatmul.mubr.f32.gmra.mrb[0].mxu0 %v1232
        %v1604 = vpop.f32.mrb[0].mxu0
        %v1605 = vadd.f32 %v1521, %v1604
        %v1606 = vpop.f32.mrb[0].mxu0
        %1607 = vdwg.mxu0
        %1608 = vmatprep.subr.mxu0 0.0
        %1609 = vmatpush1.msra.mxu0 %v1165
        %1610 = vmatprep.subr.mxu0 0.0
        %1611 = vmatpush1.msra.mxu0 %v1166
        %1612 = vmatprep.subr.mxu0 0.0
        %1613 = vmatpush1.msra.mxu0 %v1167
        %1614 = vmatprep.subr.mxu0 0.0
        %1615 = vmatpush1.msra.mxu0 %v1168
        %1616 = vmatprep.subr.mxu0 0.0
        %1617 = vmatpush1.msra.mxu0 0.0
        %1618 = vmatprep.subr.mxu0 0.0
        %1619 = vmatpush1.msra.mxu0 0.0
        %1620 = vmatprep.subr.mxu0 0.0
        %1621 = vmatpush1.msra.mxu0 0.0
        %1622 = vmatprep.subr.mxu0 0.0
        %1623 = vmatpush1.msra.mxu0 0.0
        %1624 = vmatprep.subr.mxu0 0.0
        %1625 = vmatpush1.msra.mxu0 0.0
        %1626 = vmatprep.subr.mxu0 0.0
        %1627 = vmatpush1.msra.mxu0 0.0
        %1628 = vmatprep.subr.mxu0 0.0
        %1629 = vmatpush1.msra.mxu0 0.0
        %1630 = vmatprep.subr.mxu0 0.0
        %1631 = vmatpush1.msra.mxu0 0.0
        %1632 = vmatprep.subr.mxu0 0.0
        %1633 = vmatpush1.msra.mxu0 0.0
        %1634 = vmatprep.subr.mxu0 0.0
        %1635 = vmatpush1.msra.mxu0 0.0
        %1636 = vmatprep.subr.mxu0 0.0
        %1637 = vmatpush1.msra.mxu0 0.0
        %1638 = vmatprep.subr.mxu0 0.0
        %1639 = vmatpush1.msra.mxu0 0.0
        %1640 = vmatprep.subr.mxu0 0.0
        %1641 = vmatpush1.msra.mxu0 0.0
        %1642 = vmatprep.subr.mxu0 0.0
        %1643 = vmatpush1.msra.mxu0 0.0
        %1644 = vmatprep.subr.mxu0 0.0
        %1645 = vmatpush1.msra.mxu0 0.0
        %1646 = vmatprep.subr.mxu0 0.0
        %1647 = vmatpush1.msra.mxu0 0.0
        %1648 = vmatprep.subr.mxu0 0.0
        %1649 = vmatpush1.msra.mxu0 0.0
        %1650 = vmatprep.subr.mxu0 0.0
        %1651 = vmatpush1.msra.mxu0 0.0
        %1652 = vmatprep.subr.mxu0 0.0
        %1653 = vmatpush1.msra.mxu0 0.0
        %1654 = vmatprep.subr.mxu0 0.0
        %1655 = vmatpush1.msra.mxu0 0.0
        %1656 = vmatprep.subr.mxu0 0.0
        %1657 = vmatpush1.msra.mxu0 0.0
        %1658 = vmatprep.subr.mxu0 0.0
        %1659 = vmatpush1.msra.mxu0 0.0
        %1660 = vmatprep.subr.mxu0 0.0
        %1661 = vmatpush1.msra.mxu0 0.0
        %1662 = vmatprep.subr.mxu0 0.0
        %1663 = vmatpush1.msra.mxu0 0.0
        %1664 = vmatprep.subr.mxu0 0.0
        %1665 = vmatpush1.msra.mxu0 0.0
        %1666 = vmatprep.subr.mxu0 0.0
        %1667 = vmatpush1.msra.mxu0 0.0
        %1668 = vmatprep.subr.mxu0 0.0
        %1669 = vmatpush1.msra.mxu0 0.0
        %1670 = vmatprep.subr.mxu0 0.0
        %1671 = vmatpush1.msra.mxu0 0.0
        %1672 = vmatprep.mubr.f32.mxu0 0.0
        %1673 = vmatmul.mubr.f32.gmra.mrb[0].mxu0 %v1232
        %v1674 = vpop.f32.mrb[0].mxu0
        %v1675 = vadd.f32 %v1525, %v1674
        %v1676 = vpop.f32.mrb[0].mxu0
        %1677 = vdwg.mxu0
        %1678 = vmatprep.subr.mxu0 0.0
        %1679 = vmatpush1.msra.mxu0 %v1169
        %1680 = vmatprep.subr.mxu0 0.0
        %1681 = vmatpush1.msra.mxu0 %v1170
        %1682 = vmatprep.subr.mxu0 0.0
        %1683 = vmatpush1.msra.mxu0 %v1171
        %1684 = vmatprep.subr.mxu0 0.0
        %1685 = vmatpush1.msra.mxu0 %v1172
        %1686 = vmatprep.subr.mxu0 0.0
        %1687 = vmatpush1.msra.mxu0 0.0
        %1688 = vmatprep.subr.mxu0 0.0
        %1689 = vmatpush1.msra.mxu0 0.0
        %1690 = vmatprep.subr.mxu0 0.0
        %1691 = vmatpush1.msra.mxu0 0.0
        %1692 = vmatprep.subr.mxu0 0.0
        %1693 = vmatpush1.msra.mxu0 0.0
        %1694 = vmatprep.subr.mxu0 0.0
        %1695 = vmatpush1.msra.mxu0 0.0
        %1696 = vmatprep.subr.mxu0 0.0
        %1697 = vmatpush1.msra.mxu0 0.0
        %1698 = vmatprep.subr.mxu0 0.0
        %1699 = vmatpush1.msra.mxu0 0.0
        %1700 = vmatprep.subr.mxu0 0.0
        %1701 = vmatpush1.msra.mxu0 0.0
        %1702 = vmatprep.subr.mxu0 0.0
        %1703 = vmatpush1.msra.mxu0 0.0
        %1704 = vmatprep.subr.mxu0 0.0
        %1705 = vmatpush1.msra.mxu0 0.0
        %1706 = vmatprep.subr.mxu0 0.0
        %1707 = vmatpush1.msra.mxu0 0.0
        %1708 = vmatprep.subr.mxu0 0.0
        %1709 = vmatpush1.msra.mxu0 0.0
        %1710 = vmatprep.subr.mxu0 0.0
        %1711 = vmatpush1.msra.mxu0 0.0
        %1712 = vmatprep.subr.mxu0 0.0
        %1713 = vmatpush1.msra.mxu0 0.0
        %1714 = vmatprep.subr.mxu0 0.0
        %1715 = vmatpush1.msra.mxu0 0.0
        %1716 = vmatprep.subr.mxu0 0.0
        %1717 = vmatpush1.msra.mxu0 0.0
        %1718 = vmatprep.subr.mxu0 0.0
        %1719 = vmatpush1.msra.mxu0 0.0
        %1720 = vmatprep.subr.mxu0 0.0
        %1721 = vmatpush1.msra.mxu0 0.0
        %1722 = vmatprep.subr.mxu0 0.0
        %1723 = vmatpush1.msra.mxu0 0.0
        %1724 = vmatprep.subr.mxu0 0.0
        %1725 = vmatpush1.msra.mxu0 0.0
        %1726 = vmatprep.subr.mxu0 0.0
        %1727 = vmatpush1.msra.mxu0 0.0
        %1728 = vmatprep.subr.mxu0 0.0
        %1729 = vmatpush1.msra.mxu0 0.0
        %1730 = vmatprep.subr.mxu0 0.0
        %1731 = vmatpush1.msra.mxu0 0.0
        %1732 = vmatprep.subr.mxu0 0.0
        %1733 = vmatpush1.msra.mxu0 0.0
        %1734 = vmatprep.subr.mxu0 0.0
        %1735 = vmatpush1.msra.mxu0 0.0
        %1736 = vmatprep.subr.mxu0 0.0
        %1737 = vmatpush1.msra.mxu0 0.0
        %1738 = vmatprep.subr.mxu0 0.0
        %1739 = vmatpush1.msra.mxu0 0.0
        %1740 = vmatprep.subr.mxu0 0.0
        %1741 = vmatpush1.msra.mxu0 0.0
        %1742 = vmatprep.mubr.f32.mxu0 0.0
        %1743 = vmatmul.mubr.f32.gmra.mrb[0].mxu0 %v1232
        %v1744 = vpop.f32.mrb[0].mxu0
        %v1745 = vadd.f32 %v1529, %v1744
        %v1746 = vpop.f32.mrb[0].mxu0
        %1747 = vdwg.mxu0
        %1748 = vmatprep.subr.mxu0 0.0
        %1749 = vmatpush1.msra.mxu0 %v1173
        %1750 = vmatprep.subr.mxu0 0.0
        %1751 = vmatpush1.msra.mxu0 %v1174
        %1752 = vmatprep.subr.mxu0 0.0
        %1753 = vmatpush1.msra.mxu0 %v1175
        %1754 = vmatprep.subr.mxu0 0.0
        %1755 = vmatpush1.msra.mxu0 %v1176
        %1756 = vmatprep.subr.mxu0 0.0
        %1757 = vmatpush1.msra.mxu0 0.0
        %1758 = vmatprep.subr.mxu0 0.0
        %1759 = vmatpush1.msra.mxu0 0.0
        %1760 = vmatprep.subr.mxu0 0.0
        %1761 = vmatpush1.msra.mxu0 0.0
        %1762 = vmatprep.subr.mxu0 0.0
        %1763 = vmatpush1.msra.mxu0 0.0
        %1764 = vmatprep.subr.mxu0 0.0
        %1765 = vmatpush1.msra.mxu0 0.0
        %1766 = vmatprep.subr.mxu0 0.0
        %1767 = vmatpush1.msra.mxu0 0.0
        %1768 = vmatprep.subr.mxu0 0.0
        %1769 = vmatpush1.msra.mxu0 0.0
        %1770 = vmatprep.subr.mxu0 0.0
        %1771 = vmatpush1.msra.mxu0 0.0
        %1772 = vmatprep.subr.mxu0 0.0
        %1773 = vmatpush1.msra.mxu0 0.0
        %1774 = vmatprep.subr.mxu0 0.0
        %1775 = vmatpush1.msra.mxu0 0.0
        %1776 = vmatprep.subr.mxu0 0.0
        %1777 = vmatpush1.msra.mxu0 0.0
        %1778 = vmatprep.subr.mxu0 0.0
        %1779 = vmatpush1.msra.mxu0 0.0
        %1780 = vmatprep.subr.mxu0 0.0
        %1781 = vmatpush1.msra.mxu0 0.0
        %1782 = vmatprep.subr.mxu0 0.0
        %1783 = vmatpush1.msra.mxu0 0.0
        %1784 = vmatprep.subr.mxu0 0.0
        %1785 = vmatpush1.msra.mxu0 0.0
        %1786 = vmatprep.subr.mxu0 0.0
        %1787 = vmatpush1.msra.mxu0 0.0
        %1788 = vmatprep.subr.mxu0 0.0
        %1789 = vmatpush1.msra.mxu0 0.0
        %1790 = vmatprep.subr.mxu0 0.0
        %1791 = vmatpush1.msra.mxu0 0.0
        %1792 = vmatprep.subr.mxu0 0.0
        %1793 = vmatpush1.msra.mxu0 0.0
        %1794 = vmatprep.subr.mxu0 0.0
        %1795 = vmatpush1.msra.mxu0 0.0
        %1796 = vmatprep.subr.mxu0 0.0
        %1797 = vmatpush1.msra.mxu0 0.0
        %1798 = vmatprep.subr.mxu0 0.0
        %1799 = vmatpush1.msra.mxu0 0.0
        %1800 = vmatprep.subr.mxu0 0.0
        %1801 = vmatpush1.msra.mxu0 0.0
        %1802 = vmatprep.subr.mxu0 0.0
        %1803 = vmatpush1.msra.mxu0 0.0
        %1804 = vmatprep.subr.mxu0 0.0
        %1805 = vmatpush1.msra.mxu0 0.0
        %1806 = vmatprep.subr.mxu0 0.0
        %1807 = vmatpush1.msra.mxu0 0.0
        %1808 = vmatprep.subr.mxu0 0.0
        %1809 = vmatpush1.msra.mxu0 0.0
        %1810 = vmatprep.subr.mxu0 0.0
        %1811 = vmatpush1.msra.mxu0 0.0
        %1812 = vmatprep.mubr.f32.mxu0 0.0
        %1813 = vmatmul.mubr.f32.gmra.mrb[0].mxu0 %v1232
        %v1814 = vpop.f32.mrb[0].mxu0
        %v1815 = vadd.f32 %v1533, %v1814
        %v1816 = vpop.f32.mrb[0].mxu0
        %1817 = vdwg.mxu0
        %v1822 = vlaneseq
        %v1823 = vshrl.u32 %v1822, 7
        %v1824 = vsub.s32 0, %v1823
        %v1825 = vrot.slane %v1197, %v1824
        %v1826 = vlaneseq
        %v1827 = vshrl.u32 %v1826, 7
        %v1828 = vsub.s32 0, %v1827
        %v1829 = vrot.slane %v1198, %v1828
        %v1830 = vlaneseq
        %v1831 = vshrl.u32 %v1830, 7
        %v1832 = vsub.s32 0, %v1831
        %v1833 = vrot.slane %v1199, %v1832
        %v1834 = vlaneseq
        %v1835 = vshrl.u32 %v1834, 7
        %v1836 = vsub.s32 0, %v1835
        %v1837 = vrot.slane %v1200, %v1836
        %1842 = vmatprep.subr.mxu0 0.0
        %1843 = vmatpush1.msra.mxu0 %v1181
        %1844 = vmatprep.subr.mxu0 0.0
        %1845 = vmatpush1.msra.mxu0 %v1182
        %1846 = vmatprep.subr.mxu0 0.0
        %1847 = vmatpush1.msra.mxu0 %v1183
        %1848 = vmatprep.subr.mxu0 0.0
        %1849 = vmatpush1.msra.mxu0 %v1184
        %1850 = vmatprep.subr.mxu0 0.0
        %1851 = vmatpush1.msra.mxu0 0.0
        %1852 = vmatprep.subr.mxu0 0.0
        %1853 = vmatpush1.msra.mxu0 0.0
        %1854 = vmatprep.subr.mxu0 0.0
        %1855 = vmatpush1.msra.mxu0 0.0
        %1856 = vmatprep.subr.mxu0 0.0
        %1857 = vmatpush1.msra.mxu0 0.0
        %1858 = vmatprep.subr.mxu0 0.0
        %1859 = vmatpush1.msra.mxu0 0.0
        %1860 = vmatprep.subr.mxu0 0.0
        %1861 = vmatpush1.msra.mxu0 0.0
        %1862 = vmatprep.subr.mxu0 0.0
        %1863 = vmatpush1.msra.mxu0 0.0
        %1864 = vmatprep.subr.mxu0 0.0
        %1865 = vmatpush1.msra.mxu0 0.0
        %1866 = vmatprep.subr.mxu0 0.0
        %1867 = vmatpush1.msra.mxu0 0.0
        %1868 = vmatprep.subr.mxu0 0.0
        %1869 = vmatpush1.msra.mxu0 0.0
        %1870 = vmatprep.subr.mxu0 0.0
        %1871 = vmatpush1.msra.mxu0 0.0
        %1872 = vmatprep.subr.mxu0 0.0
        %1873 = vmatpush1.msra.mxu0 0.0
        %1874 = vmatprep.subr.mxu0 0.0
        %1875 = vmatpush1.msra.mxu0 0.0
        %1876 = vmatprep.subr.mxu0 0.0
        %1877 = vmatpush1.msra.mxu0 0.0
        %1878 = vmatprep.subr.mxu0 0.0
        %1879 = vmatpush1.msra.mxu0 0.0
        %1880 = vmatprep.subr.mxu0 0.0
        %1881 = vmatpush1.msra.mxu0 0.0
        %1882 = vmatprep.subr.mxu0 0.0
        %1883 = vmatpush1.msra.mxu0 0.0
        %1884 = vmatprep.subr.mxu0 0.0
        %1885 = vmatpush1.msra.mxu0 0.0
        %1886 = vmatprep.subr.mxu0 0.0
        %1887 = vmatpush1.msra.mxu0 0.0
        %1888 = vmatprep.subr.mxu0 0.0
        %1889 = vmatpush1.msra.mxu0 0.0
        %1890 = vmatprep.subr.mxu0 0.0
        %1891 = vmatpush1.msra.mxu0 0.0
        %1892 = vmatprep.subr.mxu0 0.0
        %1893 = vmatpush1.msra.mxu0 0.0
        %1894 = vmatprep.subr.mxu0 0.0
        %1895 = vmatpush1.msra.mxu0 0.0
        %1896 = vmatprep.subr.mxu0 0.0
        %1897 = vmatpush1.msra.mxu0 0.0
        %1898 = vmatprep.subr.mxu0 0.0
        %1899 = vmatpush1.msra.mxu0 0.0
        %1900 = vmatprep.subr.mxu0 0.0
        %1901 = vmatpush1.msra.mxu0 0.0
        %1902 = vmatprep.subr.mxu0 0.0
        %1903 = vmatpush1.msra.mxu0 0.0
        %1904 = vmatprep.subr.mxu0 0.0
        %1905 = vmatpush1.msra.mxu0 0.0
        %1906 = vmatprep.mubr.f32.mxu0 0.0
        %1907 = vmatmul.mubr.f32.gmra.mrb[0].mxu0 %v1232
        %v1908 = vpop.f32.mrb[0].mxu0
        %v1909 = vadd.f32 %v1825, %v1908
        %v1910 = vpop.f32.mrb[0].mxu0
        %1911 = vdwg.mxu0
        %1912 = vmatprep.subr.mxu0 0.0
        %1913 = vmatpush1.msra.mxu0 %v1185
        %1914 = vmatprep.subr.mxu0 0.0
        %1915 = vmatpush1.msra.mxu0 %v1186
        %1916 = vmatprep.subr.mxu0 0.0
        %1917 = vmatpush1.msra.mxu0 %v1187
        %1918 = vmatprep.subr.mxu0 0.0
        %1919 = vmatpush1.msra.mxu0 %v1188
        %1920 = vmatprep.subr.mxu0 0.0
        %1921 = vmatpush1.msra.mxu0 0.0
        %1922 = vmatprep.subr.mxu0 0.0
        %1923 = vmatpush1.msra.mxu0 0.0
        %1924 = vmatprep.subr.mxu0 0.0
        %1925 = vmatpush1.msra.mxu0 0.0
        %1926 = vmatprep.subr.mxu0 0.0
        %1927 = vmatpush1.msra.mxu0 0.0
        %1928 = vmatprep.subr.mxu0 0.0
        %1929 = vmatpush1.msra.mxu0 0.0
        %1930 = vmatprep.subr.mxu0 0.0
        %1931 = vmatpush1.msra.mxu0 0.0
        %1932 = vmatprep.subr.mxu0 0.0
        %1933 = vmatpush1.msra.mxu0 0.0
        %1934 = vmatprep.subr.mxu0 0.0
        %1935 = vmatpush1.msra.mxu0 0.0
        %1936 = vmatprep.subr.mxu0 0.0
        %1937 = vmatpush1.msra.mxu0 0.0
        %1938 = vmatprep.subr.mxu0 0.0
        %1939 = vmatpush1.msra.mxu0 0.0
        %1940 = vmatprep.subr.mxu0 0.0
        %1941 = vmatpush1.msra.mxu0 0.0
        %1942 = vmatprep.subr.mxu0 0.0
        %1943 = vmatpush1.msra.mxu0 0.0
        %1944 = vmatprep.subr.mxu0 0.0
        %1945 = vmatpush1.msra.mxu0 0.0
        %1946 = vmatprep.subr.mxu0 0.0
        %1947 = vmatpush1.msra.mxu0 0.0
        %1948 = vmatprep.subr.mxu0 0.0
        %1949 = vmatpush1.msra.mxu0 0.0
        %1950 = vmatprep.subr.mxu0 0.0
        %1951 = vmatpush1.msra.mxu0 0.0
        %1952 = vmatprep.subr.mxu0 0.0
        %1953 = vmatpush1.msra.mxu0 0.0
        %1954 = vmatprep.subr.mxu0 0.0
        %1955 = vmatpush1.msra.mxu0 0.0
        %1956 = vmatprep.subr.mxu0 0.0
        %1957 = vmatpush1.msra.mxu0 0.0
        %1958 = vmatprep.subr.mxu0 0.0
        %1959 = vmatpush1.msra.mxu0 0.0
        %1960 = vmatprep.subr.mxu0 0.0
        %1961 = vmatpush1.msra.mxu0 0.0
        %1962 = vmatprep.subr.mxu0 0.0
        %1963 = vmatpush1.msra.mxu0 0.0
        %1964 = vmatprep.subr.mxu0 0.0
        %1965 = vmatpush1.msra.mxu0 0.0
        %1966 = vmatprep.subr.mxu0 0.0
        %1967 = vmatpush1.msra.mxu0 0.0
        %1968 = vmatprep.subr.mxu0 0.0
        %1969 = vmatpush1.msra.mxu0 0.0
        %1970 = vmatprep.subr.mxu0 0.0
        %1971 = vmatpush1.msra.mxu0 0.0
        %1972 = vmatprep.subr.mxu0 0.0
        %1973 = vmatpush1.msra.mxu0 0.0
        %1974 = vmatprep.subr.mxu0 0.0
        %1975 = vmatpush1.msra.mxu0 0.0
        %1976 = vmatprep.mubr.f32.mxu0 0.0
        %1977 = vmatmul.mubr.f32.gmra.mrb[0].mxu0 %v1232
        %v1978 = vpop.f32.mrb[0].mxu0
        %v1979 = vadd.f32 %v1829, %v1978
        %v1980 = vpop.f32.mrb[0].mxu0
        %1981 = vdwg.mxu0
        %1982 = vmatprep.subr.mxu0 0.0
        %1983 = vmatpush1.msra.mxu0 %v1189
        %1984 = vmatprep.subr.mxu0 0.0
        %1985 = vmatpush1.msra.mxu0 %v1190
        %1986 = vmatprep.subr.mxu0 0.0
        %1987 = vmatpush1.msra.mxu0 %v1191
        %1988 = vmatprep.subr.mxu0 0.0
        %1989 = vmatpush1.msra.mxu0 %v1192
        %1990 = vmatprep.subr.mxu0 0.0
        %1991 = vmatpush1.msra.mxu0 0.0
        %1992 = vmatprep.subr.mxu0 0.0
        %1993 = vmatpush1.msra.mxu0 0.0
        %1994 = vmatprep.subr.mxu0 0.0
        %1995 = vmatpush1.msra.mxu0 0.0
        %1996 = vmatprep.subr.mxu0 0.0
        %1997 = vmatpush1.msra.mxu0 0.0
        %1998 = vmatprep.subr.mxu0 0.0
        %1999 = vmatpush1.msra.mxu0 0.0
        %2000 = vmatprep.subr.mxu0 0.0
        %2001 = vmatpush1.msra.mxu0 0.0
        %2002 = vmatprep.subr.mxu0 0.0
        %2003 = vmatpush1.msra.mxu0 0.0
        %2004 = vmatprep.subr.mxu0 0.0
        %2005 = vmatpush1.msra.mxu0 0.0
        %2006 = vmatprep.subr.mxu0 0.0
        %2007 = vmatpush1.msra.mxu0 0.0
        %2008 = vmatprep.subr.mxu0 0.0
        %2009 = vmatpush1.msra.mxu0 0.0
        %2010 = vmatprep.subr.mxu0 0.0
        %2011 = vmatpush1.msra.mxu0 0.0
        %2012 = vmatprep.subr.mxu0 0.0
        %2013 = vmatpush1.msra.mxu0 0.0
        %2014 = vmatprep.subr.mxu0 0.0
        %2015 = vmatpush1.msra.mxu0 0.0
        %2016 = vmatprep.subr.mxu0 0.0
        %2017 = vmatpush1.msra.mxu0 0.0
        %2018 = vmatprep.subr.mxu0 0.0
        %2019 = vmatpush1.msra.mxu0 0.0
        %2020 = vmatprep.subr.mxu0 0.0
        %2021 = vmatpush1.msra.mxu0 0.0
        %2022 = vmatprep.subr.mxu0 0.0
        %2023 = vmatpush1.msra.mxu0 0.0
        %2024 = vmatprep.subr.mxu0 0.0
        %2025 = vmatpush1.msra.mxu0 0.0
        %2026 = vmatprep.subr.mxu0 0.0
        %2027 = vmatpush1.msra.mxu0 0.0
        %2028 = vmatprep.subr.mxu0 0.0
        %2029 = vmatpush1.msra.mxu0 0.0
        %2030 = vmatprep.subr.mxu0 0.0
        %2031 = vmatpush1.msra.mxu0 0.0
        %2032 = vmatprep.subr.mxu0 0.0
        %2033 = vmatpush1.msra.mxu0 0.0
        %2034 = vmatprep.subr.mxu0 0.0
        %2035 = vmatpush1.msra.mxu0 0.0
        %2036 = vmatprep.subr.mxu0 0.0
        %2037 = vmatpush1.msra.mxu0 0.0
        %2038 = vmatprep.subr.mxu0 0.0
        %2039 = vmatpush1.msra.mxu0 0.0
        %2040 = vmatprep.subr.mxu0 0.0
        %2041 = vmatpush1.msra.mxu0 0.0
        %2042 = vmatprep.subr.mxu0 0.0
        %2043 = vmatpush1.msra.mxu0 0.0
        %2044 = vmatprep.subr.mxu0 0.0
        %2045 = vmatpush1.msra.mxu0 0.0
        %2046 = vmatprep.mubr.f32.mxu0 0.0
        %2047 = vmatmul.mubr.f32.gmra.mrb[0].mxu0 %v1232
        %v2048 = vpop.f32.mrb[0].mxu0
        %v2049 = vadd.f32 %v1833, %v2048
        %v2050 = vpop.f32.mrb[0].mxu0
        %2051 = vdwg.mxu0
        %2052 = vmatprep.subr.mxu0 0.0
        %2053 = vmatpush1.msra.mxu0 %v1193
        %2054 = vmatprep.subr.mxu0 0.0
        %2055 = vmatpush1.msra.mxu0 %v1194
        %2056 = vmatprep.subr.mxu0 0.0
        %2057 = vmatpush1.msra.mxu0 %v1195
        %2058 = vmatprep.subr.mxu0 0.0
        %2059 = vmatpush1.msra.mxu0 %v1196
        %2060 = vmatprep.subr.mxu0 0.0
        %2061 = vmatpush1.msra.mxu0 0.0
        %2062 = vmatprep.subr.mxu0 0.0
        %2063 = vmatpush1.msra.mxu0 0.0
        %2064 = vmatprep.subr.mxu0 0.0
        %2065 = vmatpush1.msra.mxu0 0.0
        %2066 = vmatprep.subr.mxu0 0.0
        %2067 = vmatpush1.msra.mxu0 0.0
        %2068 = vmatprep.subr.mxu0 0.0
        %2069 = vmatpush1.msra.mxu0 0.0
        %2070 = vmatprep.subr.mxu0 0.0
        %2071 = vmatpush1.msra.mxu0 0.0
        %2072 = vmatprep.subr.mxu0 0.0
        %2073 = vmatpush1.msra.mxu0 0.0
        %2074 = vmatprep.subr.mxu0 0.0
        %2075 = vmatpush1.msra.mxu0 0.0
        %2076 = vmatprep.subr.mxu0 0.0
        %2077 = vmatpush1.msra.mxu0 0.0
        %2078 = vmatprep.subr.mxu0 0.0
        %2079 = vmatpush1.msra.mxu0 0.0
        %2080 = vmatprep.subr.mxu0 0.0
        %2081 = vmatpush1.msra.mxu0 0.0
        %2082 = vmatprep.subr.mxu0 0.0
        %2083 = vmatpush1.msra.mxu0 0.0
        %2084 = vmatprep.subr.mxu0 0.0
        %2085 = vmatpush1.msra.mxu0 0.0
        %2086 = vmatprep.subr.mxu0 0.0
        %2087 = vmatpush1.msra.mxu0 0.0
        %2088 = vmatprep.subr.mxu0 0.0
        %2089 = vmatpush1.msra.mxu0 0.0
        %2090 = vmatprep.subr.mxu0 0.0
        %2091 = vmatpush1.msra.mxu0 0.0
        %2092 = vmatprep.subr.mxu0 0.0
        %2093 = vmatpush1.msra.mxu0 0.0
        %2094 = vmatprep.subr.mxu0 0.0
        %2095 = vmatpush1.msra.mxu0 0.0
        %2096 = vmatprep.subr.mxu0 0.0
        %2097 = vmatpush1.msra.mxu0 0.0
        %2098 = vmatprep.subr.mxu0 0.0
        %2099 = vmatpush1.msra.mxu0 0.0
        %2100 = vmatprep.subr.mxu0 0.0
        %2101 = vmatpush1.msra.mxu0 0.0
        %2102 = vmatprep.subr.mxu0 0.0
        %2103 = vmatpush1.msra.mxu0 0.0
        %2104 = vmatprep.subr.mxu0 0.0
        %2105 = vmatpush1.msra.mxu0 0.0
        %2106 = vmatprep.subr.mxu0 0.0
        %2107 = vmatpush1.msra.mxu0 0.0
        %2108 = vmatprep.subr.mxu0 0.0
        %2109 = vmatpush1.msra.mxu0 0.0
        %2110 = vmatprep.subr.mxu0 0.0
        %2111 = vmatpush1.msra.mxu0 0.0
        %2112 = vmatprep.subr.mxu0 0.0
        %2113 = vmatpush1.msra.mxu0 0.0
        %2114 = vmatprep.subr.mxu0 0.0
        %2115 = vmatpush1.msra.mxu0 0.0
        %2116 = vmatprep.mubr.f32.mxu0 0.0
        %2117 = vmatmul.mubr.f32.gmra.mrb[0].mxu0 %v1232
        %v2118 = vpop.f32.mrb[0].mxu0
        %v2119 = vadd.f32 %v1837, %v2118
        %v2120 = vpop.f32.mrb[0].mxu0
        %2121 = vdwg.mxu0
        %vm2122 = vcmask 64512
        %v2124 = vsel %vm2122, %v1301, 0
        %v2127 = vsel %vm2122, %v1605, 0
        %2129 = vmatprep.subr.mxu0 0.0
        %2130 = vmatpush1.xpose.msra.mxu0 %v2127
        %2131 = vmatprep.subr.mxu0 0.0
        %2132 = vmatpush1.xpose.msra.mxu0 0.0
        %2133 = vmatprep.subr.mxu0 0.0
        %2134 = vmatpush1.xpose.msra.mxu0 0.0
        %2135 = vmatprep.subr.mxu0 0.0
        %2136 = vmatpush1.xpose.msra.mxu0 0.0
        %2137 = vmatprep.subr.mxu0 0.0
        %2138 = vmatpush1.xpose.msra.mxu0 0.0
        %2139 = vmatprep.subr.mxu0 0.0
        %2140 = vmatpush1.xpose.msra.mxu0 0.0
        %2141 = vmatprep.subr.mxu0 0.0
        %2142 = vmatpush1.xpose.msra.mxu0 0.0
        %2143 = vmatprep.subr.mxu0 0.0
        %2144 = vmatpush1.xpose.msra.mxu0 0.0
        %2145 = vmatprep.subr.mxu0 0.0
        %2146 = vmatpush1.xpose.msra.mxu0 0.0
        %2147 = vmatprep.subr.mxu0 0.0
        %2148 = vmatpush1.xpose.msra.mxu0 0.0
        %2149 = vmatprep.subr.mxu0 0.0
        %2150 = vmatpush1.xpose.msra.mxu0 0.0
        %2151 = vmatprep.subr.mxu0 0.0
        %2152 = vmatpush1.xpose.msra.mxu0 0.0
        %2153 = vmatprep.subr.mxu0 0.0
        %2154 = vmatpush1.xpose.msra.mxu0 0.0
        %2155 = vmatprep.subr.mxu0 0.0
        %2156 = vmatpush1.xpose.msra.mxu0 0.0
        %2157 = vmatprep.subr.mxu0 0.0
        %2158 = vmatpush1.xpose.msra.mxu0 0.0
        %2159 = vmatprep.subr.mxu0 0.0
        %2160 = vmatpush1.xpose.msra.mxu0 0.0
        %2161 = vmatprep.subr.mxu0 0.0
        %2162 = vmatpush1.xpose.msra.mxu0 0.0
        %2163 = vmatprep.subr.mxu0 0.0
        %2164 = vmatpush1.xpose.msra.mxu0 0.0
        %2165 = vmatprep.subr.mxu0 0.0
        %2166 = vmatpush1.xpose.msra.mxu0 0.0
        %2167 = vmatprep.subr.mxu0 0.0
        %2168 = vmatpush1.xpose.msra.mxu0 0.0
        %2169 = vmatprep.subr.mxu0 0.0
        %2170 = vmatpush1.xpose.msra.mxu0 0.0
        %2171 = vmatprep.subr.mxu0 0.0
        %2172 = vmatpush1.xpose.msra.mxu0 0.0
        %2173 = vmatprep.subr.mxu0 0.0
        %2174 = vmatpush1.xpose.msra.mxu0 0.0
        %2175 = vmatprep.subr.mxu0 0.0
        %2176 = vmatpush1.xpose.msra.mxu0 0.0
        %2177 = vmatprep.subr.mxu0 0.0
        %2178 = vmatpush1.xpose.msra.mxu0 0.0
        %2179 = vmatprep.subr.mxu0 0.0
        %2180 = vmatpush1.xpose.msra.mxu0 0.0
        %2181 = vmatprep.subr.mxu0 0.0
        %2182 = vmatpush1.xpose.msra.mxu0 0.0
        %2183 = vmatprep.subr.mxu0 0.0
        %2184 = vmatpush1.xpose.msra.mxu0 0.0
        %2185 = vmatprep.subr.mxu0 0.0
        %2186 = vmatpush1.xpose.msra.mxu0 0.0
        %2187 = vmatprep.subr.mxu0 0.0
        %2188 = vmatpush1.xpose.msra.mxu0 0.0
        %2189 = vmatprep.subr.mxu0 0.0
        %2190 = vmatpush1.xpose.msra.mxu0 0.0
        %2191 = vmatprep.subr.mxu0 0.0
        %2192 = vmatpush1.xpose.msra.mxu0 0.0
        %2193 = vmatprep.mubr.f32.mxu0 0.0
        %2194 = vmatmul.mubr.f32.gmra.mrb[0].mxu0 %v2124
        %v2195 = vpop.f32.mrb[0].mxu0
        %v2196 = vadd.f32 0.0, %v2195
        %v2197 = vpop.f32.mrb[0].mxu0
        %2198 = vdwg.mxu0
        %v2200 = vsel %vm2122, %v1371, 0
        %v2203 = vsel %vm2122, %v1675, 0
        %2205 = vmatprep.subr.mxu0 0.0
        %2206 = vmatpush1.xpose.msra.mxu0 %v2203
        %2207 = vmatprep.subr.mxu0 0.0
        %2208 = vmatpush1.xpose.msra.mxu0 0.0
        %2209 = vmatprep.subr.mxu0 0.0
        %2210 = vmatpush1.xpose.msra.mxu0 0.0
        %2211 = vmatprep.subr.mxu0 0.0
        %2212 = vmatpush1.xpose.msra.mxu0 0.0
        %2213 = vmatprep.subr.mxu0 0.0
        %2214 = vmatpush1.xpose.msra.mxu0 0.0
        %2215 = vmatprep.subr.mxu0 0.0
        %2216 = vmatpush1.xpose.msra.mxu0 0.0
        %2217 = vmatprep.subr.mxu0 0.0
        %2218 = vmatpush1.xpose.msra.mxu0 0.0
        %2219 = vmatprep.subr.mxu0 0.0
        %2220 = vmatpush1.xpose.msra.mxu0 0.0
        %2221 = vmatprep.subr.mxu0 0.0
        %2222 = vmatpush1.xpose.msra.mxu0 0.0
        %2223 = vmatprep.subr.mxu0 0.0
        %2224 = vmatpush1.xpose.msra.mxu0 0.0
        %2225 = vmatprep.subr.mxu0 0.0
        %2226 = vmatpush1.xpose.msra.mxu0 0.0
        %2227 = vmatprep.subr.mxu0 0.0
        %2228 = vmatpush1.xpose.msra.mxu0 0.0
        %2229 = vmatprep.subr.mxu0 0.0
        %2230 = vmatpush1.xpose.msra.mxu0 0.0
        %2231 = vmatprep.subr.mxu0 0.0
        %2232 = vmatpush1.xpose.msra.mxu0 0.0
        %2233 = vmatprep.subr.mxu0 0.0
        %2234 = vmatpush1.xpose.msra.mxu0 0.0
        %2235 = vmatprep.subr.mxu0 0.0
        %2236 = vmatpush1.xpose.msra.mxu0 0.0
        %2237 = vmatprep.subr.mxu0 0.0
        %2238 = vmatpush1.xpose.msra.mxu0 0.0
        %2239 = vmatprep.subr.mxu0 0.0
        %2240 = vmatpush1.xpose.msra.mxu0 0.0
        %2241 = vmatprep.subr.mxu0 0.0
        %2242 = vmatpush1.xpose.msra.mxu0 0.0
        %2243 = vmatprep.subr.mxu0 0.0
        %2244 = vmatpush1.xpose.msra.mxu0 0.0
        %2245 = vmatprep.subr.mxu0 0.0
        %2246 = vmatpush1.xpose.msra.mxu0 0.0
        %2247 = vmatprep.subr.mxu0 0.0
        %2248 = vmatpush1.xpose.msra.mxu0 0.0
        %2249 = vmatprep.subr.mxu0 0.0
        %2250 = vmatpush1.xpose.msra.mxu0 0.0
        %2251 = vmatprep.subr.mxu0 0.0
        %2252 = vmatpush1.xpose.msra.mxu0 0.0
        %2253 = vmatprep.subr.mxu0 0.0
        %2254 = vmatpush1.xpose.msra.mxu0 0.0
        %2255 = vmatprep.subr.mxu0 0.0
        %2256 = vmatpush1.xpose.msra.mxu0 0.0
        %2257 = vmatprep.subr.mxu0 0.0
        %2258 = vmatpush1.xpose.msra.mxu0 0.0
        %2259 = vmatprep.subr.mxu0 0.0
        %2260 = vmatpush1.xpose.msra.mxu0 0.0
        %2261 = vmatprep.subr.mxu0 0.0
        %2262 = vmatpush1.xpose.msra.mxu0 0.0
        %2263 = vmatprep.subr.mxu0 0.0
        %2264 = vmatpush1.xpose.msra.mxu0 0.0
        %2265 = vmatprep.subr.mxu0 0.0
        %2266 = vmatpush1.xpose.msra.mxu0 0.0
        %2267 = vmatprep.subr.mxu0 0.0
        %2268 = vmatpush1.xpose.msra.mxu0 0.0
        %2269 = vmatprep.mubr.f32.mxu0 0.0
        %2270 = vmatmul.mubr.f32.gmra.mrb[0].mxu0 %v2200
        %v2271 = vpop.f32.mrb[0].mxu0
        %v2272 = vadd.f32 0.0, %v2271
        %v2273 = vpop.f32.mrb[0].mxu0
        %2274 = vdwg.mxu0
        %v2276 = vsel %vm2122, %v1441, 0
        %v2279 = vsel %vm2122, %v1745, 0
        %2281 = vmatprep.subr.mxu0 0.0
        %2282 = vmatpush1.xpose.msra.mxu0 %v2279
        %2283 = vmatprep.subr.mxu0 0.0
        %2284 = vmatpush1.xpose.msra.mxu0 0.0
        %2285 = vmatprep.subr.mxu0 0.0
        %2286 = vmatpush1.xpose.msra.mxu0 0.0
        %2287 = vmatprep.subr.mxu0 0.0
        %2288 = vmatpush1.xpose.msra.mxu0 0.0
        %2289 = vmatprep.subr.mxu0 0.0
        %2290 = vmatpush1.xpose.msra.mxu0 0.0
        %2291 = vmatprep.subr.mxu0 0.0
        %2292 = vmatpush1.xpose.msra.mxu0 0.0
        %2293 = vmatprep.subr.mxu0 0.0
        %2294 = vmatpush1.xpose.msra.mxu0 0.0
        %2295 = vmatprep.subr.mxu0 0.0
        %2296 = vmatpush1.xpose.msra.mxu0 0.0
        %2297 = vmatprep.subr.mxu0 0.0
        %2298 = vmatpush1.xpose.msra.mxu0 0.0
        %2299 = vmatprep.subr.mxu0 0.0
        %2300 = vmatpush1.xpose.msra.mxu0 0.0
        %2301 = vmatprep.subr.mxu0 0.0
        %2302 = vmatpush1.xpose.msra.mxu0 0.0
        %2303 = vmatprep.subr.mxu0 0.0
        %2304 = vmatpush1.xpose.msra.mxu0 0.0
        %2305 = vmatprep.subr.mxu0 0.0
        %2306 = vmatpush1.xpose.msra.mxu0 0.0
        %2307 = vmatprep.subr.mxu0 0.0
        %2308 = vmatpush1.xpose.msra.mxu0 0.0
        %2309 = vmatprep.subr.mxu0 0.0
        %2310 = vmatpush1.xpose.msra.mxu0 0.0
        %2311 = vmatprep.subr.mxu0 0.0
        %2312 = vmatpush1.xpose.msra.mxu0 0.0
        %2313 = vmatprep.subr.mxu0 0.0
        %2314 = vmatpush1.xpose.msra.mxu0 0.0
        %2315 = vmatprep.subr.mxu0 0.0
        %2316 = vmatpush1.xpose.msra.mxu0 0.0
        %2317 = vmatprep.subr.mxu0 0.0
        %2318 = vmatpush1.xpose.msra.mxu0 0.0
        %2319 = vmatprep.subr.mxu0 0.0
        %2320 = vmatpush1.xpose.msra.mxu0 0.0
        %2321 = vmatprep.subr.mxu0 0.0
        %2322 = vmatpush1.xpose.msra.mxu0 0.0
        %2323 = vmatprep.subr.mxu0 0.0
        %2324 = vmatpush1.xpose.msra.mxu0 0.0
        %2325 = vmatprep.subr.mxu0 0.0
        %2326 = vmatpush1.xpose.msra.mxu0 0.0
        %2327 = vmatprep.subr.mxu0 0.0
        %2328 = vmatpush1.xpose.msra.mxu0 0.0
        %2329 = vmatprep.subr.mxu0 0.0
        %2330 = vmatpush1.xpose.msra.mxu0 0.0
        %2331 = vmatprep.subr.mxu0 0.0
        %2332 = vmatpush1.xpose.msra.mxu0 0.0
        %2333 = vmatprep.subr.mxu0 0.0
        %2334 = vmatpush1.xpose.msra.mxu0 0.0
        %2335 = vmatprep.subr.mxu0 0.0
        %2336 = vmatpush1.xpose.msra.mxu0 0.0
        %2337 = vmatprep.subr.mxu0 0.0
        %2338 = vmatpush1.xpose.msra.mxu0 0.0
        %2339 = vmatprep.subr.mxu0 0.0
        %2340 = vmatpush1.xpose.msra.mxu0 0.0
        %2341 = vmatprep.subr.mxu0 0.0
        %2342 = vmatpush1.xpose.msra.mxu0 0.0
        %2343 = vmatprep.subr.mxu0 0.0
        %2344 = vmatpush1.xpose.msra.mxu0 0.0
        %2345 = vmatprep.mubr.f32.mxu0 0.0
        %2346 = vmatmul.mubr.f32.gmra.mrb[0].mxu0 %v2276
        %v2347 = vpop.f32.mrb[0].mxu0
        %v2348 = vadd.f32 0.0, %v2347
        %v2349 = vpop.f32.mrb[0].mxu0
        %2350 = vdwg.mxu0
        %v2352 = vsel %vm2122, %v1511, 0
        %v2355 = vsel %vm2122, %v1815, 0
        %2357 = vmatprep.subr.mxu0 0.0
        %2358 = vmatpush1.xpose.msra.mxu0 %v2355
        %2359 = vmatprep.subr.mxu0 0.0
        %2360 = vmatpush1.xpose.msra.mxu0 0.0
        %2361 = vmatprep.subr.mxu0 0.0
        %2362 = vmatpush1.xpose.msra.mxu0 0.0
        %2363 = vmatprep.subr.mxu0 0.0
        %2364 = vmatpush1.xpose.msra.mxu0 0.0
        %2365 = vmatprep.subr.mxu0 0.0
        %2366 = vmatpush1.xpose.msra.mxu0 0.0
        %2367 = vmatprep.subr.mxu0 0.0
        %2368 = vmatpush1.xpose.msra.mxu0 0.0
        %2369 = vmatprep.subr.mxu0 0.0
        %2370 = vmatpush1.xpose.msra.mxu0 0.0
        %2371 = vmatprep.subr.mxu0 0.0
        %2372 = vmatpush1.xpose.msra.mxu0 0.0
        %2373 = vmatprep.subr.mxu0 0.0
        %2374 = vmatpush1.xpose.msra.mxu0 0.0
        %2375 = vmatprep.subr.mxu0 0.0
        %2376 = vmatpush1.xpose.msra.mxu0 0.0
        %2377 = vmatprep.subr.mxu0 0.0
        %2378 = vmatpush1.xpose.msra.mxu0 0.0
        %2379 = vmatprep.subr.mxu0 0.0
        %2380 = vmatpush1.xpose.msra.mxu0 0.0
        %2381 = vmatprep.subr.mxu0 0.0
        %2382 = vmatpush1.xpose.msra.mxu0 0.0
        %2383 = vmatprep.subr.mxu0 0.0
        %2384 = vmatpush1.xpose.msra.mxu0 0.0
        %2385 = vmatprep.subr.mxu0 0.0
        %2386 = vmatpush1.xpose.msra.mxu0 0.0
        %2387 = vmatprep.subr.mxu0 0.0
        %2388 = vmatpush1.xpose.msra.mxu0 0.0
        %2389 = vmatprep.subr.mxu0 0.0
        %2390 = vmatpush1.xpose.msra.mxu0 0.0
        %2391 = vmatprep.subr.mxu0 0.0
        %2392 = vmatpush1.xpose.msra.mxu0 0.0
        %2393 = vmatprep.subr.mxu0 0.0
        %2394 = vmatpush1.xpose.msra.mxu0 0.0
        %2395 = vmatprep.subr.mxu0 0.0
        %2396 = vmatpush1.xpose.msra.mxu0 0.0
        %2397 = vmatprep.subr.mxu0 0.0
        %2398 = vmatpush1.xpose.msra.mxu0 0.0
        %2399 = vmatprep.subr.mxu0 0.0
        %2400 = vmatpush1.xpose.msra.mxu0 0.0
        %2401 = vmatprep.subr.mxu0 0.0
        %2402 = vmatpush1.xpose.msra.mxu0 0.0
        %2403 = vmatprep.subr.mxu0 0.0
        %2404 = vmatpush1.xpose.msra.mxu0 0.0
        %2405 = vmatprep.subr.mxu0 0.0
        %2406 = vmatpush1.xpose.msra.mxu0 0.0
        %2407 = vmatprep.subr.mxu0 0.0
        %2408 = vmatpush1.xpose.msra.mxu0 0.0
        %2409 = vmatprep.subr.mxu0 0.0
        %2410 = vmatpush1.xpose.msra.mxu0 0.0
        %2411 = vmatprep.subr.mxu0 0.0
        %2412 = vmatpush1.xpose.msra.mxu0 0.0
        %2413 = vmatprep.subr.mxu0 0.0
        %2414 = vmatpush1.xpose.msra.mxu0 0.0
        %2415 = vmatprep.subr.mxu0 0.0
        %2416 = vmatpush1.xpose.msra.mxu0 0.0
        %2417 = vmatprep.subr.mxu0 0.0
        %2418 = vmatpush1.xpose.msra.mxu0 0.0
        %2419 = vmatprep.subr.mxu0 0.0
        %2420 = vmatpush1.xpose.msra.mxu0 0.0
        %2421 = vmatprep.mubr.f32.mxu0 0.0
        %2422 = vmatmul.mubr.f32.gmra.mrb[0].mxu0 %v2352
        %v2423 = vpop.f32.mrb[0].mxu0
        %v2424 = vadd.f32 0.0, %v2423
        %v2425 = vpop.f32.mrb[0].mxu0
        %2426 = vdwg.mxu0
        %v2427 = vmul.f32 %v2196, 0.35355338
        %v2428 = vmul.f32 %v2272, 0.35355338
        %v2429 = vmul.f32 %v2348, 0.35355338
        %v2430 = vmul.f32 %v2424, 0.35355338
        %v2431 = vsel %vm2122, %v2427, -inf
        %2432 = vmax.xlane.f32.xlu0 %v2431
        %v2433 = vpop.xlane.xlu0 %2432
        %v2434 = vsel %vm2122, %v2428, -inf
        %2435 = vmax.xlane.f32.xlu0 %v2434
        %v2436 = vpop.xlane.xlu0 %2435
        %v2437 = vsel %vm2122, %v2429, -inf
        %2438 = vmax.xlane.f32.xlu0 %v2437
        %v2439 = vpop.xlane.xlu0 %2438
        %v2440 = vsel %vm2122, %v2430, -inf
        %2441 = vmax.xlane.f32.xlu0 %v2440
        %v2442 = vpop.xlane.xlu0 %2441
        %v2443 = vsub.f32 %v2427, %v2433
        %v2444 = vsub.f32 %v2428, %v2436
        %v2445 = vsub.f32 %v2429, %v2439
        %v2446 = vsub.f32 %v2430, %v2442
        %v2447 = vmul.f32 %v2443, 1.442695
        %v2448 = vpow.pop %v2447
        %v2449 = vmul.f32 %v2444, 1.442695
        %v2450 = vpow.pop %v2449
        %v2451 = vmul.f32 %v2445, 1.442695
        %v2452 = vpow.pop %v2451
        %v2453 = vmul.f32 %v2446, 1.442695
        %v2454 = vpow.pop %v2453
        %v2455 = vsel %vm2122, %v2448, 0.0
        %2456 = vadd.xlane.f32.xlu0 %v2455
        %v2457 = vpop.xlane.xlu0 %2456
        %v2458 = vsel %vm2122, %v2450, 0.0
        %2459 = vadd.xlane.f32.xlu0 %v2458
        %v2460 = vpop.xlane.xlu0 %2459
        %v2461 = vsel %vm2122, %v2452, 0.0
        %2462 = vadd.xlane.f32.xlu0 %v2461
        %v2463 = vpop.xlane.xlu0 %2462
        %v2464 = vsel %vm2122, %v2454, 0.0
        %2465 = vadd.xlane.f32.xlu0 %v2464
        %v2466 = vpop.xlane.xlu0 %2465
        %v2467 = vrcp.pop %v2457
        %v2468 = vrcp.pop %v2460
        %v2469 = vrcp.pop %v2463
        %v2470 = vrcp.pop %v2466
        %v2471 = vmul.f32 %v2457, %v2467
        %v2472 = vmul.f32 %v2460, %v2468
        %v2473 = vmul.f32 %v2463, %v2469
        %v2474 = vmul.f32 %v2466, %v2470
        %v2475 = vsub.f32 2.0, %v2471
        %v2476 = vsub.f32 2.0, %v2472
        %v2477 = vsub.f32 2.0, %v2473
        %v2478 = vsub.f32 2.0, %v2474
        %v2479 = vmul.f32 %v2467, %v2475
        %v2480 = vmul.f32 %v2468, %v2476
        %v2481 = vmul.f32 %v2469, %v2477
        %v2482 = vmul.f32 %v2470, %v2478
        %v2483 = vmul.f32 %v2448, %v2479
        %v2484 = vmul.f32 %v2450, %v2480
        %v2485 = vmul.f32 %v2452, %v2481
        %v2486 = vmul.f32 %v2454, %v2482
        %v2488 = vsel %vm2122, %v2483, 0
        %2490 = vmatprep.subr.mxu0 0.0
        %2491 = vmatpush1.msra.mxu0 %v1909
        %2492 = vmatprep.subr.mxu0 0.0
        %2493 = vmatpush1.msra.mxu0 0.0
        %2494 = vmatprep.subr.mxu0 0.0
        %2495 = vmatpush1.msra.mxu0 0.0
        %2496 = vmatprep.subr.mxu0 0.0
        %2497 = vmatpush1.msra.mxu0 0.0
        %2498 = vmatprep.subr.mxu0 0.0
        %2499 = vmatpush1.msra.mxu0 0.0
        %2500 = vmatprep.subr.mxu0 0.0
        %2501 = vmatpush1.msra.mxu0 0.0
        %2502 = vmatprep.subr.mxu0 0.0
        %2503 = vmatpush1.msra.mxu0 0.0
        %2504 = vmatprep.subr.mxu0 0.0
        %2505 = vmatpush1.msra.mxu0 0.0
        %2506 = vmatprep.subr.mxu0 0.0
        %2507 = vmatpush1.msra.mxu0 0.0
        %2508 = vmatprep.subr.mxu0 0.0
        %2509 = vmatpush1.msra.mxu0 0.0
        %2510 = vmatprep.subr.mxu0 0.0
        %2511 = vmatpush1.msra.mxu0 0.0
        %2512 = vmatprep.subr.mxu0 0.0
        %2513 = vmatpush1.msra.mxu0 0.0
        %2514 = vmatprep.subr.mxu0 0.0
        %2515 = vmatpush1.msra.mxu0 0.0
        %2516 = vmatprep.subr.mxu0 0.0
        %2517 = vmatpush1.msra.mxu0 0.0
        %2518 = vmatprep.subr.mxu0 0.0
        %2519 = vmatpush1.msra.mxu0 0.0
        %2520 = vmatprep.subr.mxu0 0.0
        %2521 = vmatpush1.msra.mxu0 0.0
        %2522 = vmatprep.subr.mxu0 0.0
        %2523 = vmatpush1.msra.mxu0 0.0
        %2524 = vmatprep.subr.mxu0 0.0
        %2525 = vmatpush1.msra.mxu0 0.0
        %2526 = vmatprep.subr.mxu0 0.0
        %2527 = vmatpush1.msra.mxu0 0.0
        %2528 = vmatprep.subr.mxu0 0.0
        %2529 = vmatpush1.msra.mxu0 0.0
        %2530 = vmatprep.subr.mxu0 0.0
        %2531 = vmatpush1.msra.mxu0 0.0
        %2532 = vmatprep.subr.mxu0 0.0
        %2533 = vmatpush1.msra.mxu0 0.0
        %2534 = vmatprep.subr.mxu0 0.0
        %2535 = vmatpush1.msra.mxu0 0.0
        %2536 = vmatprep.subr.mxu0 0.0
        %2537 = vmatpush1.msra.mxu0 0.0
        %2538 = vmatprep.subr.mxu0 0.0
        %2539 = vmatpush1.msra.mxu0 0.0
        %2540 = vmatprep.subr.mxu0 0.0
        %2541 = vmatpush1.msra.mxu0 0.0
        %2542 = vmatprep.subr.mxu0 0.0
        %2543 = vmatpush1.msra.mxu0 0.0
        %2544 = vmatprep.subr.mxu0 0.0
        %2545 = vmatpush1.msra.mxu0 0.0
        %2546 = vmatprep.subr.mxu0 0.0
        %2547 = vmatpush1.msra.mxu0 0.0
        %2548 = vmatprep.subr.mxu0 0.0
        %2549 = vmatpush1.msra.mxu0 0.0
        %2550 = vmatprep.subr.mxu0 0.0
        %2551 = vmatpush1.msra.mxu0 0.0
        %2552 = vmatprep.subr.mxu0 0.0
        %2553 = vmatpush1.msra.mxu0 0.0
        %2554 = vmatprep.mubr.f32.mxu0 0.0
        %2555 = vmatmul.mubr.f32.gmra.mrb[0].mxu0 %v2488
        %v2556 = vpop.f32.mrb[0].mxu0
        %v2557 = vadd.f32 0.0, %v2556
        %v2558 = vpop.f32.mrb[0].mxu0
        %2559 = vdwg.mxu0
        %v2561 = vsel %vm2122, %v2484, 0
        %2563 = vmatprep.subr.mxu0 0.0
        %2564 = vmatpush1.msra.mxu0 %v1979
        %2565 = vmatprep.subr.mxu0 0.0
        %2566 = vmatpush1.msra.mxu0 0.0
        %2567 = vmatprep.subr.mxu0 0.0
        %2568 = vmatpush1.msra.mxu0 0.0
        %2569 = vmatprep.subr.mxu0 0.0
        %2570 = vmatpush1.msra.mxu0 0.0
        %2571 = vmatprep.subr.mxu0 0.0
        %2572 = vmatpush1.msra.mxu0 0.0
        %2573 = vmatprep.subr.mxu0 0.0
        %2574 = vmatpush1.msra.mxu0 0.0
        %2575 = vmatprep.subr.mxu0 0.0
        %2576 = vmatpush1.msra.mxu0 0.0
        %2577 = vmatprep.subr.mxu0 0.0
        %2578 = vmatpush1.msra.mxu0 0.0
        %2579 = vmatprep.subr.mxu0 0.0
        %2580 = vmatpush1.msra.mxu0 0.0
        %2581 = vmatprep.subr.mxu0 0.0
        %2582 = vmatpush1.msra.mxu0 0.0
        %2583 = vmatprep.subr.mxu0 0.0
        %2584 = vmatpush1.msra.mxu0 0.0
        %2585 = vmatprep.subr.mxu0 0.0
        %2586 = vmatpush1.msra.mxu0 0.0
        %2587 = vmatprep.subr.mxu0 0.0
        %2588 = vmatpush1.msra.mxu0 0.0
        %2589 = vmatprep.subr.mxu0 0.0
        %2590 = vmatpush1.msra.mxu0 0.0
        %2591 = vmatprep.subr.mxu0 0.0
        %2592 = vmatpush1.msra.mxu0 0.0
        %2593 = vmatprep.subr.mxu0 0.0
        %2594 = vmatpush1.msra.mxu0 0.0
        %2595 = vmatprep.subr.mxu0 0.0
        %2596 = vmatpush1.msra.mxu0 0.0
        %2597 = vmatprep.subr.mxu0 0.0
        %2598 = vmatpush1.msra.mxu0 0.0
        %2599 = vmatprep.subr.mxu0 0.0
        %2600 = vmatpush1.msra.mxu0 0.0
        %2601 = vmatprep.subr.mxu0 0.0
        %2602 = vmatpush1.msra.mxu0 0.0
        %2603 = vmatprep.subr.mxu0 0.0
        %2604 = vmatpush1.msra.mxu0 0.0
        %2605 = vmatprep.subr.mxu0 0.0
        %2606 = vmatpush1.msra.mxu0 0.0
        %2607 = vmatprep.subr.mxu0 0.0
        %2608 = vmatpush1.msra.mxu0 0.0
        %2609 = vmatprep.subr.mxu0 0.0
        %2610 = vmatpush1.msra.mxu0 0.0
        %2611 = vmatprep.subr.mxu0 0.0
        %2612 = vmatpush1.msra.mxu0 0.0
        %2613 = vmatprep.subr.mxu0 0.0
        %2614 = vmatpush1.msra.mxu0 0.0
        %2615 = vmatprep.subr.mxu0 0.0
        %2616 = vmatpush1.msra.mxu0 0.0
        %2617 = vmatprep.subr.mxu0 0.0
        %2618 = vmatpush1.msra.mxu0 0.0
        %2619 = vmatprep.subr.mxu0 0.0
        %2620 = vmatpush1.msra.mxu0 0.0
        %2621 = vmatprep.subr.mxu0 0.0
        %2622 = vmatpush1.msra.mxu0 0.0
        %2623 = vmatprep.subr.mxu0 0.0
        %2624 = vmatpush1.msra.mxu0 0.0
        %2625 = vmatprep.subr.mxu0 0.0
        %2626 = vmatpush1.msra.mxu0 0.0
        %2627 = vmatprep.mubr.f32.mxu0 0.0
        %2628 = vmatmul.mubr.f32.gmra.mrb[0].mxu0 %v2561
        %v2629 = vpop.f32.mrb[0].mxu0
        %v2630 = vadd.f32 0.0, %v2629
        %v2631 = vpop.f32.mrb[0].mxu0
        %2632 = vdwg.mxu0
        %v2634 = vsel %vm2122, %v2485, 0
        %2636 = vmatprep.subr.mxu0 0.0
        %2637 = vmatpush1.msra.mxu0 %v2049
        %2638 = vmatprep.subr.mxu0 0.0
        %2639 = vmatpush1.msra.mxu0 0.0
        %2640 = vmatprep.subr.mxu0 0.0
        %2641 = vmatpush1.msra.mxu0 0.0
        %2642 = vmatprep.subr.mxu0 0.0
        %2643 = vmatpush1.msra.mxu0 0.0
        %2644 = vmatprep.subr.mxu0 0.0
        %2645 = vmatpush1.msra.mxu0 0.0
        %2646 = vmatprep.subr.mxu0 0.0
        %2647 = vmatpush1.msra.mxu0 0.0
        %2648 = vmatprep.subr.mxu0 0.0
        %2649 = vmatpush1.msra.mxu0 0.0
        %2650 = vmatprep.subr.mxu0 0.0
        %2651 = vmatpush1.msra.mxu0 0.0
        %2652 = vmatprep.subr.mxu0 0.0
        %2653 = vmatpush1.msra.mxu0 0.0
        %2654 = vmatprep.subr.mxu0 0.0
        %2655 = vmatpush1.msra.mxu0 0.0
        %2656 = vmatprep.subr.mxu0 0.0
        %2657 = vmatpush1.msra.mxu0 0.0
        %2658 = vmatprep.subr.mxu0 0.0
        %2659 = vmatpush1.msra.mxu0 0.0
        %2660 = vmatprep.subr.mxu0 0.0
        %2661 = vmatpush1.msra.mxu0 0.0
        %2662 = vmatprep.subr.mxu0 0.0
        %2663 = vmatpush1.msra.mxu0 0.0
        %2664 = vmatprep.subr.mxu0 0.0
        %2665 = vmatpush1.msra.mxu0 0.0
        %2666 = vmatprep.subr.mxu0 0.0
        %2667 = vmatpush1.msra.mxu0 0.0
        %2668 = vmatprep.subr.mxu0 0.0
        %2669 = vmatpush1.msra.mxu0 0.0
        %2670 = vmatprep.subr.mxu0 0.0
        %2671 = vmatpush1.msra.mxu0 0.0
        %2672 = vmatprep.subr.mxu0 0.0
        %2673 = vmatpush1.msra.mxu0 0.0
        %2674 = vmatprep.subr.mxu0 0.0
        %2675 = vmatpush1.msra.mxu0 0.0
        %2676 = vmatprep.subr.mxu0 0.0
        %2677 = vmatpush1.msra.mxu0 0.0
        %2678 = vmatprep.subr.mxu0 0.0
        %2679 = vmatpush1.msra.mxu0 0.0
        %2680 = vmatprep.subr.mxu0 0.0
        %2681 = vmatpush1.msra.mxu0 0.0
        %2682 = vmatprep.subr.mxu0 0.0
        %2683 = vmatpush1.msra.mxu0 0.0
        %2684 = vmatprep.subr.mxu0 0.0
        %2685 = vmatpush1.msra.mxu0 0.0
        %2686 = vmatprep.subr.mxu0 0.0
        %2687 = vmatpush1.msra.mxu0 0.0
        %2688 = vmatprep.subr.mxu0 0.0
        %2689 = vmatpush1.msra.mxu0 0.0
        %2690 = vmatprep.subr.mxu0 0.0
        %2691 = vmatpush1.msra.mxu0 0.0
        %2692 = vmatprep.subr.mxu0 0.0
        %2693 = vmatpush1.msra.mxu0 0.0
        %2694 = vmatprep.subr.mxu0 0.0
        %2695 = vmatpush1.msra.mxu0 0.0
        %2696 = vmatprep.subr.mxu0 0.0
        %2697 = vmatpush1.msra.mxu0 0.0
        %2698 = vmatprep.subr.mxu0 0.0
        %2699 = vmatpush1.msra.mxu0 0.0
        %2700 = vmatprep.mubr.f32.mxu0 0.0
        %2701 = vmatmul.mubr.f32.gmra.mrb[0].mxu0 %v2634
        %v2702 = vpop.f32.mrb[0].mxu0
        %v2703 = vadd.f32 0.0, %v2702
        %v2704 = vpop.f32.mrb[0].mxu0
        %2705 = vdwg.mxu0
        %v2707 = vsel %vm2122, %v2486, 0
        %2709 = vmatprep.subr.mxu0 0.0
        %2710 = vmatpush1.msra.mxu0 %v2119
        %2711 = vmatprep.subr.mxu0 0.0
        %2712 = vmatpush1.msra.mxu0 0.0
        %2713 = vmatprep.subr.mxu0 0.0
        %2714 = vmatpush1.msra.mxu0 0.0
        %2715 = vmatprep.subr.mxu0 0.0
        %2716 = vmatpush1.msra.mxu0 0.0
        %2717 = vmatprep.subr.mxu0 0.0
        %2718 = vmatpush1.msra.mxu0 0.0
        %2719 = vmatprep.subr.mxu0 0.0
        %2720 = vmatpush1.msra.mxu0 0.0
        %2721 = vmatprep.subr.mxu0 0.0
        %2722 = vmatpush1.msra.mxu0 0.0
        %2723 = vmatprep.subr.mxu0 0.0
        %2724 = vmatpush1.msra.mxu0 0.0
        %2725 = vmatprep.subr.mxu0 0.0
        %2726 = vmatpush1.msra.mxu0 0.0
        %2727 = vmatprep.subr.mxu0 0.0
        %2728 = vmatpush1.msra.mxu0 0.0
        %2729 = vmatprep.subr.mxu0 0.0
        %2730 = vmatpush1.msra.mxu0 0.0
        %2731 = vmatprep.subr.mxu0 0.0
        %2732 = vmatpush1.msra.mxu0 0.0
        %2733 = vmatprep.subr.mxu0 0.0
        %2734 = vmatpush1.msra.mxu0 0.0
        %2735 = vmatprep.subr.mxu0 0.0
        %2736 = vmatpush1.msra.mxu0 0.0
        %2737 = vmatprep.subr.mxu0 0.0
        %2738 = vmatpush1.msra.mxu0 0.0
        %2739 = vmatprep.subr.mxu0 0.0
        %2740 = vmatpush1.msra.mxu0 0.0
        %2741 = vmatprep.subr.mxu0 0.0
        %2742 = vmatpush1.msra.mxu0 0.0
        %2743 = vmatprep.subr.mxu0 0.0
        %2744 = vmatpush1.msra.mxu0 0.0
        %2745 = vmatprep.subr.mxu0 0.0
        %2746 = vmatpush1.msra.mxu0 0.0
        %2747 = vmatprep.subr.mxu0 0.0
        %2748 = vmatpush1.msra.mxu0 0.0
        %2749 = vmatprep.subr.mxu0 0.0
        %2750 = vmatpush1.msra.mxu0 0.0
        %2751 = vmatprep.subr.mxu0 0.0
        %2752 = vmatpush1.msra.mxu0 0.0
        %2753 = vmatprep.subr.mxu0 0.0
        %2754 = vmatpush1.msra.mxu0 0.0
        %2755 = vmatprep.subr.mxu0 0.0
        %2756 = vmatpush1.msra.mxu0 0.0
        %2757 = vmatprep.subr.mxu0 0.0
        %2758 = vmatpush1.msra.mxu0 0.0
        %2759 = vmatprep.subr.mxu0 0.0
        %2760 = vmatpush1.msra.mxu0 0.0
        %2761 = vmatprep.subr.mxu0 0.0
        %2762 = vmatpush1.msra.mxu0 0.0
        %2763 = vmatprep.subr.mxu0 0.0
        %2764 = vmatpush1.msra.mxu0 0.0
        %2765 = vmatprep.subr.mxu0 0.0
        %2766 = vmatpush1.msra.mxu0 0.0
        %2767 = vmatprep.subr.mxu0 0.0
        %2768 = vmatpush1.msra.mxu0 0.0
        %2769 = vmatprep.subr.mxu0 0.0
        %2770 = vmatpush1.msra.mxu0 0.0
        %2771 = vmatprep.subr.mxu0 0.0
        %2772 = vmatpush1.msra.mxu0 0.0
        %2773 = vmatprep.mubr.f32.mxu0 0.0
        %2774 = vmatmul.mubr.f32.gmra.mrb[0].mxu0 %v2707
        %v2775 = vpop.f32.mrb[0].mxu0
        %v2776 = vadd.f32 0.0, %v2775
        %v2777 = vpop.f32.mrb[0].mxu0
        %2778 = vdwg.mxu0
        %v2780 = vsel %vm2122, %v2557, 0
        %2782 = vmatprep.subr.mxu0 0.0
        %2783 = vmatpush1.msra.mxu0 %v1201
        %2784 = vmatprep.subr.mxu0 0.0
        %2785 = vmatpush1.msra.mxu0 0.0
        %2786 = vmatprep.subr.mxu0 0.0
        %2787 = vmatpush1.msra.mxu0 0.0
        %2788 = vmatprep.subr.mxu0 0.0
        %2789 = vmatpush1.msra.mxu0 0.0
        %2790 = vmatprep.subr.mxu0 0.0
        %2791 = vmatpush1.msra.mxu0 0.0
        %2792 = vmatprep.subr.mxu0 0.0
        %2793 = vmatpush1.msra.mxu0 0.0
        %2794 = vmatprep.subr.mxu0 0.0
        %2795 = vmatpush1.msra.mxu0 0.0
        %2796 = vmatprep.subr.mxu0 0.0
        %2797 = vmatpush1.msra.mxu0 0.0
        %2798 = vmatprep.subr.mxu0 0.0
        %2799 = vmatpush1.msra.mxu0 0.0
        %2800 = vmatprep.subr.mxu0 0.0
        %2801 = vmatpush1.msra.mxu0 0.0
        %2802 = vmatprep.subr.mxu0 0.0
        %2803 = vmatpush1.msra.mxu0 0.0
        %2804 = vmatprep.subr.mxu0 0.0
        %2805 = vmatpush1.msra.mxu0 0.0
        %2806 = vmatprep.subr.mxu0 0.0
        %2807 = vmatpush1.msra.mxu0 0.0
        %2808 = vmatprep.subr.mxu0 0.0
        %2809 = vmatpush1.msra.mxu0 0.0
        %2810 = vmatprep.subr.mxu0 0.0
        %2811 = vmatpush1.msra.mxu0 0.0
        %2812 = vmatprep.subr.mxu0 0.0
        %2813 = vmatpush1.msra.mxu0 0.0
        %2814 = vmatprep.subr.mxu0 0.0
        %2815 = vmatpush1.msra.mxu0 0.0
        %2816 = vmatprep.subr.mxu0 0.0
        %2817 = vmatpush1.msra.mxu0 0.0
        %2818 = vmatprep.subr.mxu0 0.0
        %2819 = vmatpush1.msra.mxu0 0.0
        %2820 = vmatprep.subr.mxu0 0.0
        %2821 = vmatpush1.msra.mxu0 0.0
        %2822 = vmatprep.subr.mxu0 0.0
        %2823 = vmatpush1.msra.mxu0 0.0
        %2824 = vmatprep.subr.mxu0 0.0
        %2825 = vmatpush1.msra.mxu0 0.0
        %2826 = vmatprep.subr.mxu0 0.0
        %2827 = vmatpush1.msra.mxu0 0.0
        %2828 = vmatprep.subr.mxu0 0.0
        %2829 = vmatpush1.msra.mxu0 0.0
        %2830 = vmatprep.subr.mxu0 0.0
        %2831 = vmatpush1.msra.mxu0 0.0
        %2832 = vmatprep.subr.mxu0 0.0
        %2833 = vmatpush1.msra.mxu0 0.0
        %2834 = vmatprep.subr.mxu0 0.0
        %2835 = vmatpush1.msra.mxu0 0.0
        %2836 = vmatprep.subr.mxu0 0.0
        %2837 = vmatpush1.msra.mxu0 0.0
        %2838 = vmatprep.subr.mxu0 0.0
        %2839 = vmatpush1.msra.mxu0 0.0
        %2840 = vmatprep.subr.mxu0 0.0
        %2841 = vmatpush1.msra.mxu0 0.0
        %2842 = vmatprep.subr.mxu0 0.0
        %2843 = vmatpush1.msra.mxu0 0.0
        %2844 = vmatprep.subr.mxu0 0.0
        %2845 = vmatpush1.msra.mxu0 0.0
        %2846 = vmatprep.mubr.f32.mxu0 0.0
        %2847 = vmatmul.mubr.f32.gmra.mrb[0].mxu0 %v2780
        %v2848 = vpop.f32.mrb[0].mxu0
        %v2849 = vadd.f32 0.0, %v2848
        %v2850 = vpop.f32.mrb[0].mxu0
        %2851 = vdwg.mxu0
        %v2853 = vsel %vm2122, %v2630, 0
        %2855 = vmatprep.subr.mxu0 0.0
        %2856 = vmatpush1.msra.mxu0 %v1202
        %2857 = vmatprep.subr.mxu0 0.0
        %2858 = vmatpush1.msra.mxu0 0.0
        %2859 = vmatprep.subr.mxu0 0.0
        %2860 = vmatpush1.msra.mxu0 0.0
        %2861 = vmatprep.subr.mxu0 0.0
        %2862 = vmatpush1.msra.mxu0 0.0
        %2863 = vmatprep.subr.mxu0 0.0
        %2864 = vmatpush1.msra.mxu0 0.0
        %2865 = vmatprep.subr.mxu0 0.0
        %2866 = vmatpush1.msra.mxu0 0.0
        %2867 = vmatprep.subr.mxu0 0.0
        %2868 = vmatpush1.msra.mxu0 0.0
        %2869 = vmatprep.subr.mxu0 0.0
        %2870 = vmatpush1.msra.mxu0 0.0
        %2871 = vmatprep.subr.mxu0 0.0
        %2872 = vmatpush1.msra.mxu0 0.0
        %2873 = vmatprep.subr.mxu0 0.0
        %2874 = vmatpush1.msra.mxu0 0.0
        %2875 = vmatprep.subr.mxu0 0.0
        %2876 = vmatpush1.msra.mxu0 0.0
        %2877 = vmatprep.subr.mxu0 0.0
        %2878 = vmatpush1.msra.mxu0 0.0
        %2879 = vmatprep.subr.mxu0 0.0
        %2880 = vmatpush1.msra.mxu0 0.0
        %2881 = vmatprep.subr.mxu0 0.0
        %2882 = vmatpush1.msra.mxu0 0.0
        %2883 = vmatprep.subr.mxu0 0.0
        %2884 = vmatpush1.msra.mxu0 0.0
        %2885 = vmatprep.subr.mxu0 0.0
        %2886 = vmatpush1.msra.mxu0 0.0
        %2887 = vmatprep.subr.mxu0 0.0
        %2888 = vmatpush1.msra.mxu0 0.0
        %2889 = vmatprep.subr.mxu0 0.0
        %2890 = vmatpush1.msra.mxu0 0.0
        %2891 = vmatprep.subr.mxu0 0.0
        %2892 = vmatpush1.msra.mxu0 0.0
        %2893 = vmatprep.subr.mxu0 0.0
        %2894 = vmatpush1.msra.mxu0 0.0
        %2895 = vmatprep.subr.mxu0 0.0
        %2896 = vmatpush1.msra.mxu0 0.0
        %2897 = vmatprep.subr.mxu0 0.0
        %2898 = vmatpush1.msra.mxu0 0.0
        %2899 = vmatprep.subr.mxu0 0.0
        %2900 = vmatpush1.msra.mxu0 0.0
        %2901 = vmatprep.subr.mxu0 0.0
        %2902 = vmatpush1.msra.mxu0 0.0
        %2903 = vmatprep.subr.mxu0 0.0
        %2904 = vmatpush1.msra.mxu0 0.0
        %2905 = vmatprep.subr.mxu0 0.0
        %2906 = vmatpush1.msra.mxu0 0.0
        %2907 = vmatprep.subr.mxu0 0.0
        %2908 = vmatpush1.msra.mxu0 0.0
        %2909 = vmatprep.subr.mxu0 0.0
        %2910 = vmatpush1.msra.mxu0 0.0
        %2911 = vmatprep.subr.mxu0 0.0
        %2912 = vmatpush1.msra.mxu0 0.0
        %2913 = vmatprep.subr.mxu0 0.0
        %2914 = vmatpush1.msra.mxu0 0.0
        %2915 = vmatprep.subr.mxu0 0.0
        %2916 = vmatpush1.msra.mxu0 0.0
        %2917 = vmatprep.subr.mxu0 0.0
        %2918 = vmatpush1.msra.mxu0 0.0
        %2919 = vmatprep.mubr.f32.mxu0 0.0
        %2920 = vmatmul.mubr.f32.gmra.mrb[0].mxu0 %v2853
        %v2921 = vpop.f32.mrb[0].mxu0
        %v2922 = vadd.f32 0.0, %v2921
        %v2923 = vpop.f32.mrb[0].mxu0
        %2924 = vdwg.mxu0
        %v2926 = vsel %vm2122, %v2703, 0
        %2928 = vmatprep.subr.mxu0 0.0
        %2929 = vmatpush1.msra.mxu0 %v1203
        %2930 = vmatprep.subr.mxu0 0.0
        %2931 = vmatpush1.msra.mxu0 0.0
        %2932 = vmatprep.subr.mxu0 0.0
        %2933 = vmatpush1.msra.mxu0 0.0
        %2934 = vmatprep.subr.mxu0 0.0
        %2935 = vmatpush1.msra.mxu0 0.0
        %2936 = vmatprep.subr.mxu0 0.0
        %2937 = vmatpush1.msra.mxu0 0.0
        %2938 = vmatprep.subr.mxu0 0.0
        %2939 = vmatpush1.msra.mxu0 0.0
        %2940 = vmatprep.subr.mxu0 0.0
        %2941 = vmatpush1.msra.mxu0 0.0
        %2942 = vmatprep.subr.mxu0 0.0
        %2943 = vmatpush1.msra.mxu0 0.0
        %2944 = vmatprep.subr.mxu0 0.0
        %2945 = vmatpush1.msra.mxu0 0.0
        %2946 = vmatprep.subr.mxu0 0.0
        %2947 = vmatpush1.msra.mxu0 0.0
        %2948 = vmatprep.subr.mxu0 0.0
        %2949 = vmatpush1.msra.mxu0 0.0
        %2950 = vmatprep.subr.mxu0 0.0
        %2951 = vmatpush1.msra.mxu0 0.0
        %2952 = vmatprep.subr.mxu0 0.0
        %2953 = vmatpush1.msra.mxu0 0.0
        %2954 = vmatprep.subr.mxu0 0.0
        %2955 = vmatpush1.msra.mxu0 0.0
        %2956 = vmatprep.subr.mxu0 0.0
        %2957 = vmatpush1.msra.mxu0 0.0
        %2958 = vmatprep.subr.mxu0 0.0
        %2959 = vmatpush1.msra.mxu0 0.0
        %2960 = vmatprep.subr.mxu0 0.0
        %2961 = vmatpush1.msra.mxu0 0.0
        %2962 = vmatprep.subr.mxu0 0.0
        %2963 = vmatpush1.msra.mxu0 0.0
        %2964 = vmatprep.subr.mxu0 0.0
        %2965 = vmatpush1.msra.mxu0 0.0
        %2966 = vmatprep.subr.mxu0 0.0
        %2967 = vmatpush1.msra.mxu0 0.0
        %2968 = vmatprep.subr.mxu0 0.0
        %2969 = vmatpush1.msra.mxu0 0.0
        %2970 = vmatprep.subr.mxu0 0.0
        %2971 = vmatpush1.msra.mxu0 0.0
        %2972 = vmatprep.subr.mxu0 0.0
        %2973 = vmatpush1.msra.mxu0 0.0
        %2974 = vmatprep.subr.mxu0 0.0
        %2975 = vmatpush1.msra.mxu0 0.0
        %2976 = vmatprep.subr.mxu0 0.0
        %2977 = vmatpush1.msra.mxu0 0.0
        %2978 = vmatprep.subr.mxu0 0.0
        %2979 = vmatpush1.msra.mxu0 0.0
        %2980 = vmatprep.subr.mxu0 0.0
        %2981 = vmatpush1.msra.mxu0 0.0
        %2982 = vmatprep.subr.mxu0 0.0
        %2983 = vmatpush1.msra.mxu0 0.0
        %2984 = vmatprep.subr.mxu0 0.0
        %2985 = vmatpush1.msra.mxu0 0.0
        %2986 = vmatprep.subr.mxu0 0.0
        %2987 = vmatpush1.msra.mxu0 0.0
        %2988 = vmatprep.subr.mxu0 0.0
        %2989 = vmatpush1.msra.mxu0 0.0
        %2990 = vmatprep.subr.mxu0 0.0
        %2991 = vmatpush1.msra.mxu0 0.0
        %2992 = vmatprep.mubr.f32.mxu0 0.0
        %2993 = vmatmul.mubr.f32.gmra.mrb[0].mxu0 %v2926
        %v2994 = vpop.f32.mrb[0].mxu0
        %v2995 = vadd.f32 0.0, %v2994
        %v2996 = vpop.f32.mrb[0].mxu0
        %2997 = vdwg.mxu0
        %v2999 = vsel %vm2122, %v2776, 0
        %3001 = vmatprep.subr.mxu0 0.0
        %3002 = vmatpush1.msra.mxu0 %v1204
        %3003 = vmatprep.subr.mxu0 0.0
        %3004 = vmatpush1.msra.mxu0 0.0
        %3005 = vmatprep.subr.mxu0 0.0
        %3006 = vmatpush1.msra.mxu0 0.0
        %3007 = vmatprep.subr.mxu0 0.0
        %3008 = vmatpush1.msra.mxu0 0.0
        %3009 = vmatprep.subr.mxu0 0.0
        %3010 = vmatpush1.msra.mxu0 0.0
        %3011 = vmatprep.subr.mxu0 0.0
        %3012 = vmatpush1.msra.mxu0 0.0
        %3013 = vmatprep.subr.mxu0 0.0
        %3014 = vmatpush1.msra.mxu0 0.0
        %3015 = vmatprep.subr.mxu0 0.0
        %3016 = vmatpush1.msra.mxu0 0.0
        %3017 = vmatprep.subr.mxu0 0.0
        %3018 = vmatpush1.msra.mxu0 0.0
        %3019 = vmatprep.subr.mxu0 0.0
        %3020 = vmatpush1.msra.mxu0 0.0
        %3021 = vmatprep.subr.mxu0 0.0
        %3022 = vmatpush1.msra.mxu0 0.0
        %3023 = vmatprep.subr.mxu0 0.0
        %3024 = vmatpush1.msra.mxu0 0.0
        %3025 = vmatprep.subr.mxu0 0.0
        %3026 = vmatpush1.msra.mxu0 0.0
        %3027 = vmatprep.subr.mxu0 0.0
        %3028 = vmatpush1.msra.mxu0 0.0
        %3029 = vmatprep.subr.mxu0 0.0
        %3030 = vmatpush1.msra.mxu0 0.0
        %3031 = vmatprep.subr.mxu0 0.0
        %3032 = vmatpush1.msra.mxu0 0.0
        %3033 = vmatprep.subr.mxu0 0.0
        %3034 = vmatpush1.msra.mxu0 0.0
        %3035 = vmatprep.subr.mxu0 0.0
        %3036 = vmatpush1.msra.mxu0 0.0
        %3037 = vmatprep.subr.mxu0 0.0
        %3038 = vmatpush1.msra.mxu0 0.0
        %3039 = vmatprep.subr.mxu0 0.0
        %3040 = vmatpush1.msra.mxu0 0.0
        %3041 = vmatprep.subr.mxu0 0.0
        %3042 = vmatpush1.msra.mxu0 0.0
        %3043 = vmatprep.subr.mxu0 0.0
        %3044 = vmatpush1.msra.mxu0 0.0
        %3045 = vmatprep.subr.mxu0 0.0
        %3046 = vmatpush1.msra.mxu0 0.0
        %3047 = vmatprep.subr.mxu0 0.0
        %3048 = vmatpush1.msra.mxu0 0.0
        %3049 = vmatprep.subr.mxu0 0.0
        %3050 = vmatpush1.msra.mxu0 0.0
        %3051 = vmatprep.subr.mxu0 0.0
        %3052 = vmatpush1.msra.mxu0 0.0
        %3053 = vmatprep.subr.mxu0 0.0
        %3054 = vmatpush1.msra.mxu0 0.0
        %3055 = vmatprep.subr.mxu0 0.0
        %3056 = vmatpush1.msra.mxu0 0.0
        %3057 = vmatprep.subr.mxu0 0.0
        %3058 = vmatpush1.msra.mxu0 0.0
        %3059 = vmatprep.subr.mxu0 0.0
        %3060 = vmatpush1.msra.mxu0 0.0
        %3061 = vmatprep.subr.mxu0 0.0
        %3062 = vmatpush1.msra.mxu0 0.0
        %3063 = vmatprep.subr.mxu0 0.0
        %3064 = vmatpush1.msra.mxu0 0.0
        %3065 = vmatprep.mubr.f32.mxu0 0.0
        %3066 = vmatmul.mubr.f32.gmra.mrb[0].mxu0 %v2999
        %v3067 = vpop.f32.mrb[0].mxu0
        %v3068 = vadd.f32 0.0, %v3067
        %v3069 = vpop.f32.mrb[0].mxu0
        %3070 = vdwg.mxu0
        %v3071 = vsel %vm1230, %v2849, 0.0
        %v3072 = vsel %vm1230, %v2922, 0.0
        %v3073 = vadd.f32 %v3071, %v3072
        %v3074 = vsel %vm1230, %v2995, 0.0
        %v3075 = vadd.f32 %v3073, %v3074
        %v3076 = vsel %vm1230, %v3068, 0.0
        %v3077 = vadd.f32 %v3075, %v3076
        %v3079 = vlaneseq
        %v3080 = vshrl.u32 %v3079, 7
        %v3081 = vsub.s32 0, %v3080
        %v3082 = vrot.slane %v1205, %v3081
        %v3084 = vadd.f32 %v3077, %v3082
        %v3085 = vadd.f32 %v3084, %v1138
        %v3086 = vld [vmem:[%s23] sm:$0x1]
        %v3087 = vld [vmem:[%s25] sm:$0x1]
        %v3088 = vsel %vm1230, %v3085, 0.0
        %3089 = vadd.xlane.f32.xlu0 %v3088
        %v3090 = vpop.xlane.xlu0 %3089
        %v3091 = vrcp.pop 32.0
        %v3092 = vmul.f32 %v3090, %v3091
        %v3093 = vsub.f32 %v3085, %v3092
        %v3094 = vmul.f32 %v3093, %v3093
        %v3095 = vsel %vm1230, %v3094, 0.0
        %3096 = vadd.xlane.f32.xlu0 %v3095
        %v3097 = vpop.xlane.xlu0 %3096
        %v3098 = vmul.f32 %v3097, %v3091
        %v3099 = vadd.f32 %v3098, 1e-05
        %v3100 = vrsqrt.pop %v3099
        %v3101 = vmul.f32 %v3093, %v3100
        %v3103 = vlaneseq
        %v3104 = vshrl.u32 %v3103, 7
        %v3105 = vsub.s32 0, %v3104
        %v3106 = vrot.slane %v3086, %v3105
        %v3108 = vmul.f32 %v3101, %v3106
        %v3110 = vlaneseq
        %v3111 = vshrl.u32 %v3110, 7
        %v3112 = vsub.s32 0, %v3111
        %v3113 = vrot.slane %v3087, %v3112
        %v3115 = vadd.f32 %v3108, %v3113
        %v3116 = vld [vmem:[%s27] sm:$0xff]
        %v3117 = vld [vmem:[%s27 + $0x8] sm:$0xff]
        %v3118 = vld [vmem:[%s27 + $0x10] sm:$0xff]
        %v3119 = vld [vmem:[%s27 + $0x18] sm:$0xff]
        %v3120 = vld [vmem:[%s27 + $0x20] sm:$0xff]
        %v3121 = vld [vmem:[%s27 + $0x28] sm:$0xff]
        %v3122 = vld [vmem:[%s27 + $0x30] sm:$0xff]
        %v3123 = vld [vmem:[%s27 + $0x38] sm:$0xff]
        %v3124 = vld [vmem:[%s27 + $0x40] sm:$0xff]
        %v3125 = vld [vmem:[%s27 + $0x48] sm:$0xff]
        %v3126 = vld [vmem:[%s27 + $0x50] sm:$0xff]
        %v3127 = vld [vmem:[%s27 + $0x58] sm:$0xff]
        %v3128 = vld [vmem:[%s27 + $0x60] sm:$0xff]
        %v3129 = vld [vmem:[%s27 + $0x68] sm:$0xff]
        %v3130 = vld [vmem:[%s27 + $0x70] sm:$0xff]
        %v3131 = vld [vmem:[%s27 + $0x78] sm:$0xff]
        %v3132 = vld [vmem:[%s29] sm:$0x1]
        %v3133 = vld [vmem:[%s29 + $0x1] sm:$0x1]
        %v3134 = vld [vmem:[%s29 + $0x2] sm:$0x1]
        %v3135 = vld [vmem:[%s29 + $0x3] sm:$0x1]
        %v3136 = vld [vmem:[%s31] sm:$0xff]
        %v3137 = vld [vmem:[%s31 + $0x8] sm:$0xff]
        %v3138 = vld [vmem:[%s31 + $0x10] sm:$0xff]
        %v3139 = vld [vmem:[%s31 + $0x18] sm:$0xff]
        %v3140 = vld [vmem:[%s31 + $0x20] sm:$0xff]
        %v3141 = vld [vmem:[%s31 + $0x28] sm:$0xff]
        %v3142 = vld [vmem:[%s31 + $0x30] sm:$0xff]
        %v3143 = vld [vmem:[%s31 + $0x38] sm:$0xff]
        %v3144 = vld [vmem:[%s33] sm:$0x1]
        %v3145 = vld [vmem:[%s33 + $0x1] sm:$0x1]
        %v3146 = vld [vmem:[%s33 + $0x2] sm:$0x1]
        %v3147 = vld [vmem:[%s33 + $0x3] sm:$0x1]
        %v3148 = vld [vmem:[%s35] sm:$0xff]
        %v3149 = vld [vmem:[%s35 + $0x8] sm:$0xff]
        %v3150 = vld [vmem:[%s35 + $0x10] sm:$0xff]
        %v3151 = vld [vmem:[%s35 + $0x18] sm:$0xff]
        %v3152 = vld [vmem:[%s35 + $0x20] sm:$0xff]
        %v3153 = vld [vmem:[%s35 + $0x28] sm:$0xff]
        %v3154 = vld [vmem:[%s35 + $0x30] sm:$0xff]
        %v3155 = vld [vmem:[%s35 + $0x38] sm:$0xff]
        %v3156 = vld [vmem:[%s37] sm:$0x1]
        %v3157 = vld [vmem:[%s37 + $0x1] sm:$0x1]
        %v3158 = vld [vmem:[%s37 + $0x2] sm:$0x1]
        %v3159 = vld [vmem:[%s37 + $0x3] sm:$0x1]
        %v3160 = vld [vmem:[%s39] sm:$0xff]
        %v3161 = vld [vmem:[%s39 + $0x8] sm:$0xff]
        %v3162 = vld [vmem:[%s39 + $0x10] sm:$0xff]
        %v3163 = vld [vmem:[%s39 + $0x18] sm:$0xff]
        %v3164 = vld [vmem:[%s41] sm:$0x1]
        %v3169 = vlaneseq
        %v3170 = vshrl.u32 %v3169, 7
        %v3171 = vsub.s32 0, %v3170
        %v3172 = vrot.slane %v3132, %v3171
        %v3173 = vlaneseq
        %v3174 = vshrl.u32 %v3173, 7
        %v3175 = vsub.s32 0, %v3174
        %v3176 = vrot.slane %v3133, %v3175
        %v3177 = vlaneseq
        %v3178 = vshrl.u32 %v3177, 7
        %v3179 = vsub.s32 0, %v3178
        %v3180 = vrot.slane %v3134, %v3179
        %v3181 = vlaneseq
        %v3182 = vshrl.u32 %v3181, 7
        %v3183 = vsub.s32 0, %v3182
        %v3184 = vrot.slane %v3135, %v3183
        %v3190 = vsel %vm1230, %v3115, 0
        %3192 = vmatprep.subr.mxu0 0.0
        %3193 = vmatpush1.msra.mxu0 %v3116
        %3194 = vmatprep.subr.mxu0 0.0
        %3195 = vmatpush1.msra.mxu0 %v3117
        %3196 = vmatprep.subr.mxu0 0.0
        %3197 = vmatpush1.msra.mxu0 %v3118
        %3198 = vmatprep.subr.mxu0 0.0
        %3199 = vmatpush1.msra.mxu0 %v3119
        %3200 = vmatprep.subr.mxu0 0.0
        %3201 = vmatpush1.msra.mxu0 0.0
        %3202 = vmatprep.subr.mxu0 0.0
        %3203 = vmatpush1.msra.mxu0 0.0
        %3204 = vmatprep.subr.mxu0 0.0
        %3205 = vmatpush1.msra.mxu0 0.0
        %3206 = vmatprep.subr.mxu0 0.0
        %3207 = vmatpush1.msra.mxu0 0.0
        %3208 = vmatprep.subr.mxu0 0.0
        %3209 = vmatpush1.msra.mxu0 0.0
        %3210 = vmatprep.subr.mxu0 0.0
        %3211 = vmatpush1.msra.mxu0 0.0
        %3212 = vmatprep.subr.mxu0 0.0
        %3213 = vmatpush1.msra.mxu0 0.0
        %3214 = vmatprep.subr.mxu0 0.0
        %3215 = vmatpush1.msra.mxu0 0.0
        %3216 = vmatprep.subr.mxu0 0.0
        %3217 = vmatpush1.msra.mxu0 0.0
        %3218 = vmatprep.subr.mxu0 0.0
        %3219 = vmatpush1.msra.mxu0 0.0
        %3220 = vmatprep.subr.mxu0 0.0
        %3221 = vmatpush1.msra.mxu0 0.0
        %3222 = vmatprep.subr.mxu0 0.0
        %3223 = vmatpush1.msra.mxu0 0.0
        %3224 = vmatprep.subr.mxu0 0.0
        %3225 = vmatpush1.msra.mxu0 0.0
        %3226 = vmatprep.subr.mxu0 0.0
        %3227 = vmatpush1.msra.mxu0 0.0
        %3228 = vmatprep.subr.mxu0 0.0
        %3229 = vmatpush1.msra.mxu0 0.0
        %3230 = vmatprep.subr.mxu0 0.0
        %3231 = vmatpush1.msra.mxu0 0.0
        %3232 = vmatprep.subr.mxu0 0.0
        %3233 = vmatpush1.msra.mxu0 0.0
        %3234 = vmatprep.subr.mxu0 0.0
        %3235 = vmatpush1.msra.mxu0 0.0
        %3236 = vmatprep.subr.mxu0 0.0
        %3237 = vmatpush1.msra.mxu0 0.0
        %3238 = vmatprep.subr.mxu0 0.0
        %3239 = vmatpush1.msra.mxu0 0.0
        %3240 = vmatprep.subr.mxu0 0.0
        %3241 = vmatpush1.msra.mxu0 0.0
        %3242 = vmatprep.subr.mxu0 0.0
        %3243 = vmatpush1.msra.mxu0 0.0
        %3244 = vmatprep.subr.mxu0 0.0
        %3245 = vmatpush1.msra.mxu0 0.0
        %3246 = vmatprep.subr.mxu0 0.0
        %3247 = vmatpush1.msra.mxu0 0.0
        %3248 = vmatprep.subr.mxu0 0.0
        %3249 = vmatpush1.msra.mxu0 0.0
        %3250 = vmatprep.subr.mxu0 0.0
        %3251 = vmatpush1.msra.mxu0 0.0
        %3252 = vmatprep.subr.mxu0 0.0
        %3253 = vmatpush1.msra.mxu0 0.0
        %3254 = vmatprep.subr.mxu0 0.0
        %3255 = vmatpush1.msra.mxu0 0.0
        %3256 = vmatprep.mubr.f32.mxu0 0.0
        %3257 = vmatmul.mubr.f32.gmra.mrb[0].mxu0 %v3190
        %v3258 = vpop.f32.mrb[0].mxu0
        %v3259 = vadd.f32 %v3172, %v3258
        %v3260 = vpop.f32.mrb[0].mxu0
        %3261 = vdwg.mxu0
        %3262 = vmatprep.subr.mxu0 0.0
        %3263 = vmatpush1.msra.mxu0 %v3120
        %3264 = vmatprep.subr.mxu0 0.0
        %3265 = vmatpush1.msra.mxu0 %v3121
        %3266 = vmatprep.subr.mxu0 0.0
        %3267 = vmatpush1.msra.mxu0 %v3122
        %3268 = vmatprep.subr.mxu0 0.0
        %3269 = vmatpush1.msra.mxu0 %v3123
        %3270 = vmatprep.subr.mxu0 0.0
        %3271 = vmatpush1.msra.mxu0 0.0
        %3272 = vmatprep.subr.mxu0 0.0
        %3273 = vmatpush1.msra.mxu0 0.0
        %3274 = vmatprep.subr.mxu0 0.0
        %3275 = vmatpush1.msra.mxu0 0.0
        %3276 = vmatprep.subr.mxu0 0.0
        %3277 = vmatpush1.msra.mxu0 0.0
        %3278 = vmatprep.subr.mxu0 0.0
        %3279 = vmatpush1.msra.mxu0 0.0
        %3280 = vmatprep.subr.mxu0 0.0
        %3281 = vmatpush1.msra.mxu0 0.0
        %3282 = vmatprep.subr.mxu0 0.0
        %3283 = vmatpush1.msra.mxu0 0.0
        %3284 = vmatprep.subr.mxu0 0.0
        %3285 = vmatpush1.msra.mxu0 0.0
        %3286 = vmatprep.subr.mxu0 0.0
        %3287 = vmatpush1.msra.mxu0 0.0
        %3288 = vmatprep.subr.mxu0 0.0
        %3289 = vmatpush1.msra.mxu0 0.0
        %3290 = vmatprep.subr.mxu0 0.0
        %3291 = vmatpush1.msra.mxu0 0.0
        %3292 = vmatprep.subr.mxu0 0.0
        %3293 = vmatpush1.msra.mxu0 0.0
        %3294 = vmatprep.subr.mxu0 0.0
        %3295 = vmatpush1.msra.mxu0 0.0
        %3296 = vmatprep.subr.mxu0 0.0
        %3297 = vmatpush1.msra.mxu0 0.0
        %3298 = vmatprep.subr.mxu0 0.0
        %3299 = vmatpush1.msra.mxu0 0.0
        %3300 = vmatprep.subr.mxu0 0.0
        %3301 = vmatpush1.msra.mxu0 0.0
        %3302 = vmatprep.subr.mxu0 0.0
        %3303 = vmatpush1.msra.mxu0 0.0
        %3304 = vmatprep.subr.mxu0 0.0
        %3305 = vmatpush1.msra.mxu0 0.0
        %3306 = vmatprep.subr.mxu0 0.0
        %3307 = vmatpush1.msra.mxu0 0.0
        %3308 = vmatprep.subr.mxu0 0.0
        %3309 = vmatpush1.msra.mxu0 0.0
        %3310 = vmatprep.subr.mxu0 0.0
        %3311 = vmatpush1.msra.mxu0 0.0
        %3312 = vmatprep.subr.mxu0 0.0
        %3313 = vmatpush1.msra.mxu0 0.0
        %3314 = vmatprep.subr.mxu0 0.0
        %3315 = vmatpush1.msra.mxu0 0.0
        %3316 = vmatprep.subr.mxu0 0.0
        %3317 = vmatpush1.msra.mxu0 0.0
        %3318 = vmatprep.subr.mxu0 0.0
        %3319 = vmatpush1.msra.mxu0 0.0
        %3320 = vmatprep.subr.mxu0 0.0
        %3321 = vmatpush1.msra.mxu0 0.0
        %3322 = vmatprep.subr.mxu0 0.0
        %3323 = vmatpush1.msra.mxu0 0.0
        %3324 = vmatprep.subr.mxu0 0.0
        %3325 = vmatpush1.msra.mxu0 0.0
        %3326 = vmatprep.mubr.f32.mxu0 0.0
        %3327 = vmatmul.mubr.f32.gmra.mrb[0].mxu0 %v3190
        %v3328 = vpop.f32.mrb[0].mxu0
        %v3329 = vadd.f32 %v3176, %v3328
        %v3330 = vpop.f32.mrb[0].mxu0
        %3331 = vdwg.mxu0
        %3332 = vmatprep.subr.mxu0 0.0
        %3333 = vmatpush1.msra.mxu0 %v3124
        %3334 = vmatprep.subr.mxu0 0.0
        %3335 = vmatpush1.msra.mxu0 %v3125
        %3336 = vmatprep.subr.mxu0 0.0
        %3337 = vmatpush1.msra.mxu0 %v3126
        %3338 = vmatprep.subr.mxu0 0.0
        %3339 = vmatpush1.msra.mxu0 %v3127
        %3340 = vmatprep.subr.mxu0 0.0
        %3341 = vmatpush1.msra.mxu0 0.0
        %3342 = vmatprep.subr.mxu0 0.0
        %3343 = vmatpush1.msra.mxu0 0.0
        %3344 = vmatprep.subr.mxu0 0.0
        %3345 = vmatpush1.msra.mxu0 0.0
        %3346 = vmatprep.subr.mxu0 0.0
        %3347 = vmatpush1.msra.mxu0 0.0
        %3348 = vmatprep.subr.mxu0 0.0
        %3349 = vmatpush1.msra.mxu0 0.0
        %3350 = vmatprep.subr.mxu0 0.0
        %3351 = vmatpush1.msra.mxu0 0.0
        %3352 = vmatprep.subr.mxu0 0.0
        %3353 = vmatpush1.msra.mxu0 0.0
        %3354 = vmatprep.subr.mxu0 0.0
        %3355 = vmatpush1.msra.mxu0 0.0
        %3356 = vmatprep.subr.mxu0 0.0
        %3357 = vmatpush1.msra.mxu0 0.0
        %3358 = vmatprep.subr.mxu0 0.0
        %3359 = vmatpush1.msra.mxu0 0.0
        %3360 = vmatprep.subr.mxu0 0.0
        %3361 = vmatpush1.msra.mxu0 0.0
        %3362 = vmatprep.subr.mxu0 0.0
        %3363 = vmatpush1.msra.mxu0 0.0
        %3364 = vmatprep.subr.mxu0 0.0
        %3365 = vmatpush1.msra.mxu0 0.0
        %3366 = vmatprep.subr.mxu0 0.0
        %3367 = vmatpush1.msra.mxu0 0.0
        %3368 = vmatprep.subr.mxu0 0.0
        %3369 = vmatpush1.msra.mxu0 0.0
        %3370 = vmatprep.subr.mxu0 0.0
        %3371 = vmatpush1.msra.mxu0 0.0
        %3372 = vmatprep.subr.mxu0 0.0
        %3373 = vmatpush1.msra.mxu0 0.0
        %3374 = vmatprep.subr.mxu0 0.0
        %3375 = vmatpush1.msra.mxu0 0.0
        %3376 = vmatprep.subr.mxu0 0.0
        %3377 = vmatpush1.msra.mxu0 0.0
        %3378 = vmatprep.subr.mxu0 0.0
        %3379 = vmatpush1.msra.mxu0 0.0
        %3380 = vmatprep.subr.mxu0 0.0
        %3381 = vmatpush1.msra.mxu0 0.0
        %3382 = vmatprep.subr.mxu0 0.0
        %3383 = vmatpush1.msra.mxu0 0.0
        %3384 = vmatprep.subr.mxu0 0.0
        %3385 = vmatpush1.msra.mxu0 0.0
        %3386 = vmatprep.subr.mxu0 0.0
        %3387 = vmatpush1.msra.mxu0 0.0
        %3388 = vmatprep.subr.mxu0 0.0
        %3389 = vmatpush1.msra.mxu0 0.0
        %3390 = vmatprep.subr.mxu0 0.0
        %3391 = vmatpush1.msra.mxu0 0.0
        %3392 = vmatprep.subr.mxu0 0.0
        %3393 = vmatpush1.msra.mxu0 0.0
        %3394 = vmatprep.subr.mxu0 0.0
        %3395 = vmatpush1.msra.mxu0 0.0
        %3396 = vmatprep.mubr.f32.mxu0 0.0
        %3397 = vmatmul.mubr.f32.gmra.mrb[0].mxu0 %v3190
        %v3398 = vpop.f32.mrb[0].mxu0
        %v3399 = vadd.f32 %v3180, %v3398
        %v3400 = vpop.f32.mrb[0].mxu0
        %3401 = vdwg.mxu0
        %3402 = vmatprep.subr.mxu0 0.0
        %3403 = vmatpush1.msra.mxu0 %v3128
        %3404 = vmatprep.subr.mxu0 0.0
        %3405 = vmatpush1.msra.mxu0 %v3129
        %3406 = vmatprep.subr.mxu0 0.0
        %3407 = vmatpush1.msra.mxu0 %v3130
        %3408 = vmatprep.subr.mxu0 0.0
        %3409 = vmatpush1.msra.mxu0 %v3131
        %3410 = vmatprep.subr.mxu0 0.0
        %3411 = vmatpush1.msra.mxu0 0.0
        %3412 = vmatprep.subr.mxu0 0.0
        %3413 = vmatpush1.msra.mxu0 0.0
        %3414 = vmatprep.subr.mxu0 0.0
        %3415 = vmatpush1.msra.mxu0 0.0
        %3416 = vmatprep.subr.mxu0 0.0
        %3417 = vmatpush1.msra.mxu0 0.0
        %3418 = vmatprep.subr.mxu0 0.0
        %3419 = vmatpush1.msra.mxu0 0.0
        %3420 = vmatprep.subr.mxu0 0.0
        %3421 = vmatpush1.msra.mxu0 0.0
        %3422 = vmatprep.subr.mxu0 0.0
        %3423 = vmatpush1.msra.mxu0 0.0
        %3424 = vmatprep.subr.mxu0 0.0
        %3425 = vmatpush1.msra.mxu0 0.0
        %3426 = vmatprep.subr.mxu0 0.0
        %3427 = vmatpush1.msra.mxu0 0.0
        %3428 = vmatprep.subr.mxu0 0.0
        %3429 = vmatpush1.msra.mxu0 0.0
        %3430 = vmatprep.subr.mxu0 0.0
        %3431 = vmatpush1.msra.mxu0 0.0
        %3432 = vmatprep.subr.mxu0 0.0
        %3433 = vmatpush1.msra.mxu0 0.0
        %3434 = vmatprep.subr.mxu0 0.0
        %3435 = vmatpush1.msra.mxu0 0.0
        %3436 = vmatprep.subr.mxu0 0.0
        %3437 = vmatpush1.msra.mxu0 0.0
        %3438 = vmatprep.subr.mxu0 0.0
        %3439 = vmatpush1.msra.mxu0 0.0
        %3440 = vmatprep.subr.mxu0 0.0
        %3441 = vmatpush1.msra.mxu0 0.0
        %3442 = vmatprep.subr.mxu0 0.0
        %3443 = vmatpush1.msra.mxu0 0.0
        %3444 = vmatprep.subr.mxu0 0.0
        %3445 = vmatpush1.msra.mxu0 0.0
        %3446 = vmatprep.subr.mxu0 0.0
        %3447 = vmatpush1.msra.mxu0 0.0
        %3448 = vmatprep.subr.mxu0 0.0
        %3449 = vmatpush1.msra.mxu0 0.0
        %3450 = vmatprep.subr.mxu0 0.0
        %3451 = vmatpush1.msra.mxu0 0.0
        %3452 = vmatprep.subr.mxu0 0.0
        %3453 = vmatpush1.msra.mxu0 0.0
        %3454 = vmatprep.subr.mxu0 0.0
        %3455 = vmatpush1.msra.mxu0 0.0
        %3456 = vmatprep.subr.mxu0 0.0
        %3457 = vmatpush1.msra.mxu0 0.0
        %3458 = vmatprep.subr.mxu0 0.0
        %3459 = vmatpush1.msra.mxu0 0.0
        %3460 = vmatprep.subr.mxu0 0.0
        %3461 = vmatpush1.msra.mxu0 0.0
        %3462 = vmatprep.subr.mxu0 0.0
        %3463 = vmatpush1.msra.mxu0 0.0
        %3464 = vmatprep.subr.mxu0 0.0
        %3465 = vmatpush1.msra.mxu0 0.0
        %3466 = vmatprep.mubr.f32.mxu0 0.0
        %3467 = vmatmul.mubr.f32.gmra.mrb[0].mxu0 %v3190
        %v3468 = vpop.f32.mrb[0].mxu0
        %v3469 = vadd.f32 %v3184, %v3468
        %v3470 = vpop.f32.mrb[0].mxu0
        %3471 = vdwg.mxu0
        %v3476 = vlaneseq
        %v3477 = vshrl.u32 %v3476, 7
        %v3478 = vsub.s32 0, %v3477
        %v3479 = vrot.slane %v3144, %v3478
        %v3480 = vlaneseq
        %v3481 = vshrl.u32 %v3480, 7
        %v3482 = vsub.s32 0, %v3481
        %v3483 = vrot.slane %v3145, %v3482
        %v3484 = vlaneseq
        %v3485 = vshrl.u32 %v3484, 7
        %v3486 = vsub.s32 0, %v3485
        %v3487 = vrot.slane %v3146, %v3486
        %v3488 = vlaneseq
        %v3489 = vshrl.u32 %v3488, 7
        %v3490 = vsub.s32 0, %v3489
        %v3491 = vrot.slane %v3147, %v3490
        %vm3496 = vcmask 130048
        %v3498 = vsel %vm3496, %v1139, 0
        %3500 = vmatprep.subr.mxu0 0.0
        %3501 = vmatpush1.msra.mxu0 %v3136
        %3502 = vmatprep.subr.mxu0 0.0
        %3503 = vmatpush1.msra.mxu0 %v3137
        %3504 = vmatprep.subr.mxu0 0.0
        %3505 = vmatpush1.msra.mxu0 0.0
        %3506 = vmatprep.subr.mxu0 0.0
        %3507 = vmatpush1.msra.mxu0 0.0
        %3508 = vmatprep.subr.mxu0 0.0
        %3509 = vmatpush1.msra.mxu0 0.0
        %3510 = vmatprep.subr.mxu0 0.0
        %3511 = vmatpush1.msra.mxu0 0.0
        %3512 = vmatprep.subr.mxu0 0.0
        %3513 = vmatpush1.msra.mxu0 0.0
        %3514 = vmatprep.subr.mxu0 0.0
        %3515 = vmatpush1.msra.mxu0 0.0
        %3516 = vmatprep.subr.mxu0 0.0
        %3517 = vmatpush1.msra.mxu0 0.0
        %3518 = vmatprep.subr.mxu0 0.0
        %3519 = vmatpush1.msra.mxu0 0.0
        %3520 = vmatprep.subr.mxu0 0.0
        %3521 = vmatpush1.msra.mxu0 0.0
        %3522 = vmatprep.subr.mxu0 0.0
        %3523 = vmatpush1.msra.mxu0 0.0
        %3524 = vmatprep.subr.mxu0 0.0
        %3525 = vmatpush1.msra.mxu0 0.0
        %3526 = vmatprep.subr.mxu0 0.0
        %3527 = vmatpush1.msra.mxu0 0.0
        %3528 = vmatprep.subr.mxu0 0.0
        %3529 = vmatpush1.msra.mxu0 0.0
        %3530 = vmatprep.subr.mxu0 0.0
        %3531 = vmatpush1.msra.mxu0 0.0
        %3532 = vmatprep.subr.mxu0 0.0
        %3533 = vmatpush1.msra.mxu0 0.0
        %3534 = vmatprep.subr.mxu0 0.0
        %3535 = vmatpush1.msra.mxu0 0.0
        %3536 = vmatprep.subr.mxu0 0.0
        %3537 = vmatpush1.msra.mxu0 0.0
        %3538 = vmatprep.subr.mxu0 0.0
        %3539 = vmatpush1.msra.mxu0 0.0
        %3540 = vmatprep.subr.mxu0 0.0
        %3541 = vmatpush1.msra.mxu0 0.0
        %3542 = vmatprep.subr.mxu0 0.0
        %3543 = vmatpush1.msra.mxu0 0.0
        %3544 = vmatprep.subr.mxu0 0.0
        %3545 = vmatpush1.msra.mxu0 0.0
        %3546 = vmatprep.subr.mxu0 0.0
        %3547 = vmatpush1.msra.mxu0 0.0
        %3548 = vmatprep.subr.mxu0 0.0
        %3549 = vmatpush1.msra.mxu0 0.0
        %3550 = vmatprep.subr.mxu0 0.0
        %3551 = vmatpush1.msra.mxu0 0.0
        %3552 = vmatprep.subr.mxu0 0.0
        %3553 = vmatpush1.msra.mxu0 0.0
        %3554 = vmatprep.subr.mxu0 0.0
        %3555 = vmatpush1.msra.mxu0 0.0
        %3556 = vmatprep.subr.mxu0 0.0
        %3557 = vmatpush1.msra.mxu0 0.0
        %3558 = vmatprep.subr.mxu0 0.0
        %3559 = vmatpush1.msra.mxu0 0.0
        %3560 = vmatprep.subr.mxu0 0.0
        %3561 = vmatpush1.msra.mxu0 0.0
        %3562 = vmatprep.subr.mxu0 0.0
        %3563 = vmatpush1.msra.mxu0 0.0
        %3564 = vmatprep.mubr.f32.mxu0 0.0
        %3565 = vmatmul.mubr.f32.gmra.mrb[0].mxu0 %v3498
        %v3566 = vpop.f32.mrb[0].mxu0
        %v3567 = vadd.f32 %v3479, %v3566
        %v3568 = vpop.f32.mrb[0].mxu0
        %3569 = vdwg.mxu0
        %3570 = vmatprep.subr.mxu0 0.0
        %3571 = vmatpush1.msra.mxu0 %v3138
        %3572 = vmatprep.subr.mxu0 0.0
        %3573 = vmatpush1.msra.mxu0 %v3139
        %3574 = vmatprep.subr.mxu0 0.0
        %3575 = vmatpush1.msra.mxu0 0.0
        %3576 = vmatprep.subr.mxu0 0.0
        %3577 = vmatpush1.msra.mxu0 0.0
        %3578 = vmatprep.subr.mxu0 0.0
        %3579 = vmatpush1.msra.mxu0 0.0
        %3580 = vmatprep.subr.mxu0 0.0
        %3581 = vmatpush1.msra.mxu0 0.0
        %3582 = vmatprep.subr.mxu0 0.0
        %3583 = vmatpush1.msra.mxu0 0.0
        %3584 = vmatprep.subr.mxu0 0.0
        %3585 = vmatpush1.msra.mxu0 0.0
        %3586 = vmatprep.subr.mxu0 0.0
        %3587 = vmatpush1.msra.mxu0 0.0
        %3588 = vmatprep.subr.mxu0 0.0
        %3589 = vmatpush1.msra.mxu0 0.0
        %3590 = vmatprep.subr.mxu0 0.0
        %3591 = vmatpush1.msra.mxu0 0.0
        %3592 = vmatprep.subr.mxu0 0.0
        %3593 = vmatpush1.msra.mxu0 0.0
        %3594 = vmatprep.subr.mxu0 0.0
        %3595 = vmatpush1.msra.mxu0 0.0
        %3596 = vmatprep.subr.mxu0 0.0
        %3597 = vmatpush1.msra.mxu0 0.0
        %3598 = vmatprep.subr.mxu0 0.0
        %3599 = vmatpush1.msra.mxu0 0.0
        %3600 = vmatprep.subr.mxu0 0.0
        %3601 = vmatpush1.msra.mxu0 0.0
        %3602 = vmatprep.subr.mxu0 0.0
        %3603 = vmatpush1.msra.mxu0 0.0
        %3604 = vmatprep.subr.mxu0 0.0
        %3605 = vmatpush1.msra.mxu0 0.0
        %3606 = vmatprep.subr.mxu0 0.0
        %3607 = vmatpush1.msra.mxu0 0.0
        %3608 = vmatprep.subr.mxu0 0.0
        %3609 = vmatpush1.msra.mxu0 0.0
        %3610 = vmatprep.subr.mxu0 0.0
        %3611 = vmatpush1.msra.mxu0 0.0
        %3612 = vmatprep.subr.mxu0 0.0
        %3613 = vmatpush1.msra.mxu0 0.0
        %3614 = vmatprep.subr.mxu0 0.0
        %3615 = vmatpush1.msra.mxu0 0.0
        %3616 = vmatprep.subr.mxu0 0.0
        %3617 = vmatpush1.msra.mxu0 0.0
        %3618 = vmatprep.subr.mxu0 0.0
        %3619 = vmatpush1.msra.mxu0 0.0
        %3620 = vmatprep.subr.mxu0 0.0
        %3621 = vmatpush1.msra.mxu0 0.0
        %3622 = vmatprep.subr.mxu0 0.0
        %3623 = vmatpush1.msra.mxu0 0.0
        %3624 = vmatprep.subr.mxu0 0.0
        %3625 = vmatpush1.msra.mxu0 0.0
        %3626 = vmatprep.subr.mxu0 0.0
        %3627 = vmatpush1.msra.mxu0 0.0
        %3628 = vmatprep.subr.mxu0 0.0
        %3629 = vmatpush1.msra.mxu0 0.0
        %3630 = vmatprep.subr.mxu0 0.0
        %3631 = vmatpush1.msra.mxu0 0.0
        %3632 = vmatprep.subr.mxu0 0.0
        %3633 = vmatpush1.msra.mxu0 0.0
        %3634 = vmatprep.mubr.f32.mxu0 0.0
        %3635 = vmatmul.mubr.f32.gmra.mrb[0].mxu0 %v3498
        %v3636 = vpop.f32.mrb[0].mxu0
        %v3637 = vadd.f32 %v3483, %v3636
        %v3638 = vpop.f32.mrb[0].mxu0
        %3639 = vdwg.mxu0
        %3640 = vmatprep.subr.mxu0 0.0
        %3641 = vmatpush1.msra.mxu0 %v3140
        %3642 = vmatprep.subr.mxu0 0.0
        %3643 = vmatpush1.msra.mxu0 %v3141
        %3644 = vmatprep.subr.mxu0 0.0
        %3645 = vmatpush1.msra.mxu0 0.0
        %3646 = vmatprep.subr.mxu0 0.0
        %3647 = vmatpush1.msra.mxu0 0.0
        %3648 = vmatprep.subr.mxu0 0.0
        %3649 = vmatpush1.msra.mxu0 0.0
        %3650 = vmatprep.subr.mxu0 0.0
        %3651 = vmatpush1.msra.mxu0 0.0
        %3652 = vmatprep.subr.mxu0 0.0
        %3653 = vmatpush1.msra.mxu0 0.0
        %3654 = vmatprep.subr.mxu0 0.0
        %3655 = vmatpush1.msra.mxu0 0.0
        %3656 = vmatprep.subr.mxu0 0.0
        %3657 = vmatpush1.msra.mxu0 0.0
        %3658 = vmatprep.subr.mxu0 0.0
        %3659 = vmatpush1.msra.mxu0 0.0
        %3660 = vmatprep.subr.mxu0 0.0
        %3661 = vmatpush1.msra.mxu0 0.0
        %3662 = vmatprep.subr.mxu0 0.0
        %3663 = vmatpush1.msra.mxu0 0.0
        %3664 = vmatprep.subr.mxu0 0.0
        %3665 = vmatpush1.msra.mxu0 0.0
        %3666 = vmatprep.subr.mxu0 0.0
        %3667 = vmatpush1.msra.mxu0 0.0
        %3668 = vmatprep.subr.mxu0 0.0
        %3669 = vmatpush1.msra.mxu0 0.0
        %3670 = vmatprep.subr.mxu0 0.0
        %3671 = vmatpush1.msra.mxu0 0.0
        %3672 = vmatprep.subr.mxu0 0.0
        %3673 = vmatpush1.msra.mxu0 0.0
        %3674 = vmatprep.subr.mxu0 0.0
        %3675 = vmatpush1.msra.mxu0 0.0
        %3676 = vmatprep.subr.mxu0 0.0
        %3677 = vmatpush1.msra.mxu0 0.0
        %3678 = vmatprep.subr.mxu0 0.0
        %3679 = vmatpush1.msra.mxu0 0.0
        %3680 = vmatprep.subr.mxu0 0.0
        %3681 = vmatpush1.msra.mxu0 0.0
        %3682 = vmatprep.subr.mxu0 0.0
        %3683 = vmatpush1.msra.mxu0 0.0
        %3684 = vmatprep.subr.mxu0 0.0
        %3685 = vmatpush1.msra.mxu0 0.0
        %3686 = vmatprep.subr.mxu0 0.0
        %3687 = vmatpush1.msra.mxu0 0.0
        %3688 = vmatprep.subr.mxu0 0.0
        %3689 = vmatpush1.msra.mxu0 0.0
        %3690 = vmatprep.subr.mxu0 0.0
        %3691 = vmatpush1.msra.mxu0 0.0
        %3692 = vmatprep.subr.mxu0 0.0
        %3693 = vmatpush1.msra.mxu0 0.0
        %3694 = vmatprep.subr.mxu0 0.0
        %3695 = vmatpush1.msra.mxu0 0.0
        %3696 = vmatprep.subr.mxu0 0.0
        %3697 = vmatpush1.msra.mxu0 0.0
        %3698 = vmatprep.subr.mxu0 0.0
        %3699 = vmatpush1.msra.mxu0 0.0
        %3700 = vmatprep.subr.mxu0 0.0
        %3701 = vmatpush1.msra.mxu0 0.0
        %3702 = vmatprep.subr.mxu0 0.0
        %3703 = vmatpush1.msra.mxu0 0.0
        %3704 = vmatprep.mubr.f32.mxu0 0.0
        %3705 = vmatmul.mubr.f32.gmra.mrb[0].mxu0 %v3498
        %v3706 = vpop.f32.mrb[0].mxu0
        %v3707 = vadd.f32 %v3487, %v3706
        %v3708 = vpop.f32.mrb[0].mxu0
        %3709 = vdwg.mxu0
        %3710 = vmatprep.subr.mxu0 0.0
        %3711 = vmatpush1.msra.mxu0 %v3142
        %3712 = vmatprep.subr.mxu0 0.0
        %3713 = vmatpush1.msra.mxu0 %v3143
        %3714 = vmatprep.subr.mxu0 0.0
        %3715 = vmatpush1.msra.mxu0 0.0
        %3716 = vmatprep.subr.mxu0 0.0
        %3717 = vmatpush1.msra.mxu0 0.0
        %3718 = vmatprep.subr.mxu0 0.0
        %3719 = vmatpush1.msra.mxu0 0.0
        %3720 = vmatprep.subr.mxu0 0.0
        %3721 = vmatpush1.msra.mxu0 0.0
        %3722 = vmatprep.subr.mxu0 0.0
        %3723 = vmatpush1.msra.mxu0 0.0
        %3724 = vmatprep.subr.mxu0 0.0
        %3725 = vmatpush1.msra.mxu0 0.0
        %3726 = vmatprep.subr.mxu0 0.0
        %3727 = vmatpush1.msra.mxu0 0.0
        %3728 = vmatprep.subr.mxu0 0.0
        %3729 = vmatpush1.msra.mxu0 0.0
        %3730 = vmatprep.subr.mxu0 0.0
        %3731 = vmatpush1.msra.mxu0 0.0
        %3732 = vmatprep.subr.mxu0 0.0
        %3733 = vmatpush1.msra.mxu0 0.0
        %3734 = vmatprep.subr.mxu0 0.0
        %3735 = vmatpush1.msra.mxu0 0.0
        %3736 = vmatprep.subr.mxu0 0.0
        %3737 = vmatpush1.msra.mxu0 0.0
        %3738 = vmatprep.subr.mxu0 0.0
        %3739 = vmatpush1.msra.mxu0 0.0
        %3740 = vmatprep.subr.mxu0 0.0
        %3741 = vmatpush1.msra.mxu0 0.0
        %3742 = vmatprep.subr.mxu0 0.0
        %3743 = vmatpush1.msra.mxu0 0.0
        %3744 = vmatprep.subr.mxu0 0.0
        %3745 = vmatpush1.msra.mxu0 0.0
        %3746 = vmatprep.subr.mxu0 0.0
        %3747 = vmatpush1.msra.mxu0 0.0
        %3748 = vmatprep.subr.mxu0 0.0
        %3749 = vmatpush1.msra.mxu0 0.0
        %3750 = vmatprep.subr.mxu0 0.0
        %3751 = vmatpush1.msra.mxu0 0.0
        %3752 = vmatprep.subr.mxu0 0.0
        %3753 = vmatpush1.msra.mxu0 0.0
        %3754 = vmatprep.subr.mxu0 0.0
        %3755 = vmatpush1.msra.mxu0 0.0
        %3756 = vmatprep.subr.mxu0 0.0
        %3757 = vmatpush1.msra.mxu0 0.0
        %3758 = vmatprep.subr.mxu0 0.0
        %3759 = vmatpush1.msra.mxu0 0.0
        %3760 = vmatprep.subr.mxu0 0.0
        %3761 = vmatpush1.msra.mxu0 0.0
        %3762 = vmatprep.subr.mxu0 0.0
        %3763 = vmatpush1.msra.mxu0 0.0
        %3764 = vmatprep.subr.mxu0 0.0
        %3765 = vmatpush1.msra.mxu0 0.0
        %3766 = vmatprep.subr.mxu0 0.0
        %3767 = vmatpush1.msra.mxu0 0.0
        %3768 = vmatprep.subr.mxu0 0.0
        %3769 = vmatpush1.msra.mxu0 0.0
        %3770 = vmatprep.subr.mxu0 0.0
        %3771 = vmatpush1.msra.mxu0 0.0
        %3772 = vmatprep.subr.mxu0 0.0
        %3773 = vmatpush1.msra.mxu0 0.0
        %3774 = vmatprep.mubr.f32.mxu0 0.0
        %3775 = vmatmul.mubr.f32.gmra.mrb[0].mxu0 %v3498
        %v3776 = vpop.f32.mrb[0].mxu0
        %v3777 = vadd.f32 %v3491, %v3776
        %v3778 = vpop.f32.mrb[0].mxu0
        %3779 = vdwg.mxu0
        %v3784 = vlaneseq
        %v3785 = vshrl.u32 %v3784, 7
        %v3786 = vsub.s32 0, %v3785
        %v3787 = vrot.slane %v3156, %v3786
        %v3788 = vlaneseq
        %v3789 = vshrl.u32 %v3788, 7
        %v3790 = vsub.s32 0, %v3789
        %v3791 = vrot.slane %v3157, %v3790
        %v3792 = vlaneseq
        %v3793 = vshrl.u32 %v3792, 7
        %v3794 = vsub.s32 0, %v3793
        %v3795 = vrot.slane %v3158, %v3794
        %v3796 = vlaneseq
        %v3797 = vshrl.u32 %v3796, 7
        %v3798 = vsub.s32 0, %v3797
        %v3799 = vrot.slane %v3159, %v3798
        %3804 = vmatprep.subr.mxu0 0.0
        %3805 = vmatpush1.msra.mxu0 %v3148
        %3806 = vmatprep.subr.mxu0 0.0
        %3807 = vmatpush1.msra.mxu0 %v3149
        %3808 = vmatprep.subr.mxu0 0.0
        %3809 = vmatpush1.msra.mxu0 0.0
        %3810 = vmatprep.subr.mxu0 0.0
        %3811 = vmatpush1.msra.mxu0 0.0
        %3812 = vmatprep.subr.mxu0 0.0
        %3813 = vmatpush1.msra.mxu0 0.0
        %3814 = vmatprep.subr.mxu0 0.0
        %3815 = vmatpush1.msra.mxu0 0.0
        %3816 = vmatprep.subr.mxu0 0.0
        %3817 = vmatpush1.msra.mxu0 0.0
        %3818 = vmatprep.subr.mxu0 0.0
        %3819 = vmatpush1.msra.mxu0 0.0
        %3820 = vmatprep.subr.mxu0 0.0
        %3821 = vmatpush1.msra.mxu0 0.0
        %3822 = vmatprep.subr.mxu0 0.0
        %3823 = vmatpush1.msra.mxu0 0.0
        %3824 = vmatprep.subr.mxu0 0.0
        %3825 = vmatpush1.msra.mxu0 0.0
        %3826 = vmatprep.subr.mxu0 0.0
        %3827 = vmatpush1.msra.mxu0 0.0
        %3828 = vmatprep.subr.mxu0 0.0
        %3829 = vmatpush1.msra.mxu0 0.0
        %3830 = vmatprep.subr.mxu0 0.0
        %3831 = vmatpush1.msra.mxu0 0.0
        %3832 = vmatprep.subr.mxu0 0.0
        %3833 = vmatpush1.msra.mxu0 0.0
        %3834 = vmatprep.subr.mxu0 0.0
        %3835 = vmatpush1.msra.mxu0 0.0
        %3836 = vmatprep.subr.mxu0 0.0
        %3837 = vmatpush1.msra.mxu0 0.0
        %3838 = vmatprep.subr.mxu0 0.0
        %3839 = vmatpush1.msra.mxu0 0.0
        %3840 = vmatprep.subr.mxu0 0.0
        %3841 = vmatpush1.msra.mxu0 0.0
        %3842 = vmatprep.subr.mxu0 0.0
        %3843 = vmatpush1.msra.mxu0 0.0
        %3844 = vmatprep.subr.mxu0 0.0
        %3845 = vmatpush1.msra.mxu0 0.0
        %3846 = vmatprep.subr.mxu0 0.0
        %3847 = vmatpush1.msra.mxu0 0.0
        %3848 = vmatprep.subr.mxu0 0.0
        %3849 = vmatpush1.msra.mxu0 0.0
        %3850 = vmatprep.subr.mxu0 0.0
        %3851 = vmatpush1.msra.mxu0 0.0
        %3852 = vmatprep.subr.mxu0 0.0
        %3853 = vmatpush1.msra.mxu0 0.0
        %3854 = vmatprep.subr.mxu0 0.0
        %3855 = vmatpush1.msra.mxu0 0.0
        %3856 = vmatprep.subr.mxu0 0.0
        %3857 = vmatpush1.msra.mxu0 0.0
        %3858 = vmatprep.subr.mxu0 0.0
        %3859 = vmatpush1.msra.mxu0 0.0
        %3860 = vmatprep.subr.mxu0 0.0
        %3861 = vmatpush1.msra.mxu0 0.0
        %3862 = vmatprep.subr.mxu0 0.0
        %3863 = vmatpush1.msra.mxu0 0.0
        %3864 = vmatprep.subr.mxu0 0.0
        %3865 = vmatpush1.msra.mxu0 0.0
        %3866 = vmatprep.subr.mxu0 0.0
        %3867 = vmatpush1.msra.mxu0 0.0
        %3868 = vmatprep.mubr.f32.mxu0 0.0
        %3869 = vmatmul.mubr.f32.gmra.mrb[0].mxu0 %v3498
        %v3870 = vpop.f32.mrb[0].mxu0
        %v3871 = vadd.f32 %v3787, %v3870
        %v3872 = vpop.f32.mrb[0].mxu0
        %3873 = vdwg.mxu0
        %3874 = vmatprep.subr.mxu0 0.0
        %3875 = vmatpush1.msra.mxu0 %v3150
        %3876 = vmatprep.subr.mxu0 0.0
        %3877 = vmatpush1.msra.mxu0 %v3151
        %3878 = vmatprep.subr.mxu0 0.0
        %3879 = vmatpush1.msra.mxu0 0.0
        %3880 = vmatprep.subr.mxu0 0.0
        %3881 = vmatpush1.msra.mxu0 0.0
        %3882 = vmatprep.subr.mxu0 0.0
        %3883 = vmatpush1.msra.mxu0 0.0
        %3884 = vmatprep.subr.mxu0 0.0
        %3885 = vmatpush1.msra.mxu0 0.0
        %3886 = vmatprep.subr.mxu0 0.0
        %3887 = vmatpush1.msra.mxu0 0.0
        %3888 = vmatprep.subr.mxu0 0.0
        %3889 = vmatpush1.msra.mxu0 0.0
        %3890 = vmatprep.subr.mxu0 0.0
        %3891 = vmatpush1.msra.mxu0 0.0
        %3892 = vmatprep.subr.mxu0 0.0
        %3893 = vmatpush1.msra.mxu0 0.0
        %3894 = vmatprep.subr.mxu0 0.0
        %3895 = vmatpush1.msra.mxu0 0.0
        %3896 = vmatprep.subr.mxu0 0.0
        %3897 = vmatpush1.msra.mxu0 0.0
        %3898 = vmatprep.subr.mxu0 0.0
        %3899 = vmatpush1.msra.mxu0 0.0
        %3900 = vmatprep.subr.mxu0 0.0
        %3901 = vmatpush1.msra.mxu0 0.0
        %3902 = vmatprep.subr.mxu0 0.0
        %3903 = vmatpush1.msra.mxu0 0.0
        %3904 = vmatprep.subr.mxu0 0.0
        %3905 = vmatpush1.msra.mxu0 0.0
        %3906 = vmatprep.subr.mxu0 0.0
        %3907 = vmatpush1.msra.mxu0 0.0
        %3908 = vmatprep.subr.mxu0 0.0
        %3909 = vmatpush1.msra.mxu0 0.0
        %3910 = vmatprep.subr.mxu0 0.0
        %3911 = vmatpush1.msra.mxu0 0.0
        %3912 = vmatprep.subr.mxu0 0.0
        %3913 = vmatpush1.msra.mxu0 0.0
        %3914 = vmatprep.subr.mxu0 0.0
        %3915 = vmatpush1.msra.mxu0 0.0
        %3916 = vmatprep.subr.mxu0 0.0
        %3917 = vmatpush1.msra.mxu0 0.0
        %3918 = vmatprep.subr.mxu0 0.0
        %3919 = vmatpush1.msra.mxu0 0.0
        %3920 = vmatprep.subr.mxu0 0.0
        %3921 = vmatpush1.msra.mxu0 0.0
        %3922 = vmatprep.subr.mxu0 0.0
        %3923 = vmatpush1.msra.mxu0 0.0
        %3924 = vmatprep.subr.mxu0 0.0
        %3925 = vmatpush1.msra.mxu0 0.0
        %3926 = vmatprep.subr.mxu0 0.0
        %3927 = vmatpush1.msra.mxu0 0.0
        %3928 = vmatprep.subr.mxu0 0.0
        %3929 = vmatpush1.msra.mxu0 0.0
        %3930 = vmatprep.subr.mxu0 0.0
        %3931 = vmatpush1.msra.mxu0 0.0
        %3932 = vmatprep.subr.mxu0 0.0
        %3933 = vmatpush1.msra.mxu0 0.0
        %3934 = vmatprep.subr.mxu0 0.0
        %3935 = vmatpush1.msra.mxu0 0.0
        %3936 = vmatprep.subr.mxu0 0.0
        %3937 = vmatpush1.msra.mxu0 0.0
        %3938 = vmatprep.mubr.f32.mxu0 0.0
        %3939 = vmatmul.mubr.f32.gmra.mrb[0].mxu0 %v3498
        %v3940 = vpop.f32.mrb[0].mxu0
        %v3941 = vadd.f32 %v3791, %v3940
        %v3942 = vpop.f32.mrb[0].mxu0
        %3943 = vdwg.mxu0
        %3944 = vmatprep.subr.mxu0 0.0
        %3945 = vmatpush1.msra.mxu0 %v3152
        %3946 = vmatprep.subr.mxu0 0.0
        %3947 = vmatpush1.msra.mxu0 %v3153
        %3948 = vmatprep.subr.mxu0 0.0
        %3949 = vmatpush1.msra.mxu0 0.0
        %3950 = vmatprep.subr.mxu0 0.0
        %3951 = vmatpush1.msra.mxu0 0.0
        %3952 = vmatprep.subr.mxu0 0.0
        %3953 = vmatpush1.msra.mxu0 0.0
        %3954 = vmatprep.subr.mxu0 0.0
        %3955 = vmatpush1.msra.mxu0 0.0
        %3956 = vmatprep.subr.mxu0 0.0
        %3957 = vmatpush1.msra.mxu0 0.0
        %3958 = vmatprep.subr.mxu0 0.0
        %3959 = vmatpush1.msra.mxu0 0.0
        %3960 = vmatprep.subr.mxu0 0.0
        %3961 = vmatpush1.msra.mxu0 0.0
        %3962 = vmatprep.subr.mxu0 0.0
        %3963 = vmatpush1.msra.mxu0 0.0
        %3964 = vmatprep.subr.mxu0 0.0
        %3965 = vmatpush1.msra.mxu0 0.0
        %3966 = vmatprep.subr.mxu0 0.0
        %3967 = vmatpush1.msra.mxu0 0.0
        %3968 = vmatprep.subr.mxu0 0.0
        %3969 = vmatpush1.msra.mxu0 0.0
        %3970 = vmatprep.subr.mxu0 0.0
        %3971 = vmatpush1.msra.mxu0 0.0
        %3972 = vmatprep.subr.mxu0 0.0
        %3973 = vmatpush1.msra.mxu0 0.0
        %3974 = vmatprep.subr.mxu0 0.0
        %3975 = vmatpush1.msra.mxu0 0.0
        %3976 = vmatprep.subr.mxu0 0.0
        %3977 = vmatpush1.msra.mxu0 0.0
        %3978 = vmatprep.subr.mxu0 0.0
        %3979 = vmatpush1.msra.mxu0 0.0
        %3980 = vmatprep.subr.mxu0 0.0
        %3981 = vmatpush1.msra.mxu0 0.0
        %3982 = vmatprep.subr.mxu0 0.0
        %3983 = vmatpush1.msra.mxu0 0.0
        %3984 = vmatprep.subr.mxu0 0.0
        %3985 = vmatpush1.msra.mxu0 0.0
        %3986 = vmatprep.subr.mxu0 0.0
        %3987 = vmatpush1.msra.mxu0 0.0
        %3988 = vmatprep.subr.mxu0 0.0
        %3989 = vmatpush1.msra.mxu0 0.0
        %3990 = vmatprep.subr.mxu0 0.0
        %3991 = vmatpush1.msra.mxu0 0.0
        %3992 = vmatprep.subr.mxu0 0.0
        %3993 = vmatpush1.msra.mxu0 0.0
        %3994 = vmatprep.subr.mxu0 0.0
        %3995 = vmatpush1.msra.mxu0 0.0
        %3996 = vmatprep.subr.mxu0 0.0
        %3997 = vmatpush1.msra.mxu0 0.0
        %3998 = vmatprep.subr.mxu0 0.0
        %3999 = vmatpush1.msra.mxu0 0.0
        %4000 = vmatprep.subr.mxu0 0.0
        %4001 = vmatpush1.msra.mxu0 0.0
        %4002 = vmatprep.subr.mxu0 0.0
        %4003 = vmatpush1.msra.mxu0 0.0
        %4004 = vmatprep.subr.mxu0 0.0
        %4005 = vmatpush1.msra.mxu0 0.0
        %4006 = vmatprep.subr.mxu0 0.0
        %4007 = vmatpush1.msra.mxu0 0.0
        %4008 = vmatprep.mubr.f32.mxu0 0.0
        %4009 = vmatmul.mubr.f32.gmra.mrb[0].mxu0 %v3498
        %v4010 = vpop.f32.mrb[0].mxu0
        %v4011 = vadd.f32 %v3795, %v4010
        %v4012 = vpop.f32.mrb[0].mxu0
        %4013 = vdwg.mxu0
        %4014 = vmatprep.subr.mxu0 0.0
        %4015 = vmatpush1.msra.mxu0 %v3154
        %4016 = vmatprep.subr.mxu0 0.0
        %4017 = vmatpush1.msra.mxu0 %v3155
        %4018 = vmatprep.subr.mxu0 0.0
        %4019 = vmatpush1.msra.mxu0 0.0
        %4020 = vmatprep.subr.mxu0 0.0
        %4021 = vmatpush1.msra.mxu0 0.0
        %4022 = vmatprep.subr.mxu0 0.0
        %4023 = vmatpush1.msra.mxu0 0.0
        %4024 = vmatprep.subr.mxu0 0.0
        %4025 = vmatpush1.msra.mxu0 0.0
        %4026 = vmatprep.subr.mxu0 0.0
        %4027 = vmatpush1.msra.mxu0 0.0
        %4028 = vmatprep.subr.mxu0 0.0
        %4029 = vmatpush1.msra.mxu0 0.0
        %4030 = vmatprep.subr.mxu0 0.0
        %4031 = vmatpush1.msra.mxu0 0.0
        %4032 = vmatprep.subr.mxu0 0.0
        %4033 = vmatpush1.msra.mxu0 0.0
        %4034 = vmatprep.subr.mxu0 0.0
        %4035 = vmatpush1.msra.mxu0 0.0
        %4036 = vmatprep.subr.mxu0 0.0
        %4037 = vmatpush1.msra.mxu0 0.0
        %4038 = vmatprep.subr.mxu0 0.0
        %4039 = vmatpush1.msra.mxu0 0.0
        %4040 = vmatprep.subr.mxu0 0.0
        %4041 = vmatpush1.msra.mxu0 0.0
        %4042 = vmatprep.subr.mxu0 0.0
        %4043 = vmatpush1.msra.mxu0 0.0
        %4044 = vmatprep.subr.mxu0 0.0
        %4045 = vmatpush1.msra.mxu0 0.0
        %4046 = vmatprep.subr.mxu0 0.0
        %4047 = vmatpush1.msra.mxu0 0.0
        %4048 = vmatprep.subr.mxu0 0.0
        %4049 = vmatpush1.msra.mxu0 0.0
        %4050 = vmatprep.subr.mxu0 0.0
        %4051 = vmatpush1.msra.mxu0 0.0
        %4052 = vmatprep.subr.mxu0 0.0
        %4053 = vmatpush1.msra.mxu0 0.0
        %4054 = vmatprep.subr.mxu0 0.0
        %4055 = vmatpush1.msra.mxu0 0.0
        %4056 = vmatprep.subr.mxu0 0.0
        %4057 = vmatpush1.msra.mxu0 0.0
        %4058 = vmatprep.subr.mxu0 0.0
        %4059 = vmatpush1.msra.mxu0 0.0
        %4060 = vmatprep.subr.mxu0 0.0
        %4061 = vmatpush1.msra.mxu0 0.0
        %4062 = vmatprep.subr.mxu0 0.0
        %4063 = vmatpush1.msra.mxu0 0.0
        %4064 = vmatprep.subr.mxu0 0.0
        %4065 = vmatpush1.msra.mxu0 0.0
        %4066 = vmatprep.subr.mxu0 0.0
        %4067 = vmatpush1.msra.mxu0 0.0
        %4068 = vmatprep.subr.mxu0 0.0
        %4069 = vmatpush1.msra.mxu0 0.0
        %4070 = vmatprep.subr.mxu0 0.0
        %4071 = vmatpush1.msra.mxu0 0.0
        %4072 = vmatprep.subr.mxu0 0.0
        %4073 = vmatpush1.msra.mxu0 0.0
        %4074 = vmatprep.subr.mxu0 0.0
        %4075 = vmatpush1.msra.mxu0 0.0
        %4076 = vmatprep.subr.mxu0 0.0
        %4077 = vmatpush1.msra.mxu0 0.0
        %4078 = vmatprep.mubr.f32.mxu0 0.0
        %4079 = vmatmul.mubr.f32.gmra.mrb[0].mxu0 %v3498
        %v4080 = vpop.f32.mrb[0].mxu0
        %v4081 = vadd.f32 %v3799, %v4080
        %v4082 = vpop.f32.mrb[0].mxu0
        %4083 = vdwg.mxu0
        %v4085 = vsel %vm2122, %v3259, 0
        %v4088 = vsel %vm2122, %v3567, 0
        %4090 = vmatprep.subr.mxu0 0.0
        %4091 = vmatpush1.xpose.msra.mxu0 %v4088
        %4092 = vmatprep.subr.mxu0 0.0
        %4093 = vmatpush1.xpose.msra.mxu0 0.0
        %4094 = vmatprep.subr.mxu0 0.0
        %4095 = vmatpush1.xpose.msra.mxu0 0.0
        %4096 = vmatprep.subr.mxu0 0.0
        %4097 = vmatpush1.xpose.msra.mxu0 0.0
        %4098 = vmatprep.subr.mxu0 0.0
        %4099 = vmatpush1.xpose.msra.mxu0 0.0
        %4100 = vmatprep.subr.mxu0 0.0
        %4101 = vmatpush1.xpose.msra.mxu0 0.0
        %4102 = vmatprep.subr.mxu0 0.0
        %4103 = vmatpush1.xpose.msra.mxu0 0.0
        %4104 = vmatprep.subr.mxu0 0.0
        %4105 = vmatpush1.xpose.msra.mxu0 0.0
        %4106 = vmatprep.subr.mxu0 0.0
        %4107 = vmatpush1.xpose.msra.mxu0 0.0
        %4108 = vmatprep.subr.mxu0 0.0
        %4109 = vmatpush1.xpose.msra.mxu0 0.0
        %4110 = vmatprep.subr.mxu0 0.0
        %4111 = vmatpush1.xpose.msra.mxu0 0.0
        %4112 = vmatprep.subr.mxu0 0.0
        %4113 = vmatpush1.xpose.msra.mxu0 0.0
        %4114 = vmatprep.subr.mxu0 0.0
        %4115 = vmatpush1.xpose.msra.mxu0 0.0
        %4116 = vmatprep.subr.mxu0 0.0
        %4117 = vmatpush1.xpose.msra.mxu0 0.0
        %4118 = vmatprep.subr.mxu0 0.0
        %4119 = vmatpush1.xpose.msra.mxu0 0.0
        %4120 = vmatprep.subr.mxu0 0.0
        %4121 = vmatpush1.xpose.msra.mxu0 0.0
        %4122 = vmatprep.subr.mxu0 0.0
        %4123 = vmatpush1.xpose.msra.mxu0 0.0
        %4124 = vmatprep.subr.mxu0 0.0
        %4125 = vmatpush1.xpose.msra.mxu0 0.0
        %4126 = vmatprep.subr.mxu0 0.0
        %4127 = vmatpush1.xpose.msra.mxu0 0.0
        %4128 = vmatprep.subr.mxu0 0.0
        %4129 = vmatpush1.xpose.msra.mxu0 0.0
        %4130 = vmatprep.subr.mxu0 0.0
        %4131 = vmatpush1.xpose.msra.mxu0 0.0
        %4132 = vmatprep.subr.mxu0 0.0
        %4133 = vmatpush1.xpose.msra.mxu0 0.0
        %4134 = vmatprep.subr.mxu0 0.0
        %4135 = vmatpush1.xpose.msra.mxu0 0.0
        %4136 = vmatprep.subr.mxu0 0.0
        %4137 = vmatpush1.xpose.msra.mxu0 0.0
        %4138 = vmatprep.subr.mxu0 0.0
        %4139 = vmatpush1.xpose.msra.mxu0 0.0
        %4140 = vmatprep.subr.mxu0 0.0
        %4141 = vmatpush1.xpose.msra.mxu0 0.0
        %4142 = vmatprep.subr.mxu0 0.0
        %4143 = vmatpush1.xpose.msra.mxu0 0.0
        %4144 = vmatprep.subr.mxu0 0.0
        %4145 = vmatpush1.xpose.msra.mxu0 0.0
        %4146 = vmatprep.subr.mxu0 0.0
        %4147 = vmatpush1.xpose.msra.mxu0 0.0
        %4148 = vmatprep.subr.mxu0 0.0
        %4149 = vmatpush1.xpose.msra.mxu0 0.0
        %4150 = vmatprep.subr.mxu0 0.0
        %4151 = vmatpush1.xpose.msra.mxu0 0.0
        %4152 = vmatprep.subr.mxu0 0.0
        %4153 = vmatpush1.xpose.msra.mxu0 0.0
        %4154 = vmatprep.mubr.f32.mxu0 0.0
        %4155 = vmatmul.mubr.f32.gmra.mrb[0].mxu0 %v4085
        %v4156 = vpop.f32.mrb[0].mxu0
        %v4157 = vadd.f32 0.0, %v4156
        %v4158 = vpop.f32.mrb[0].mxu0
        %4159 = vdwg.mxu0
        %v4161 = vsel %vm2122, %v3329, 0
        %v4164 = vsel %vm2122, %v3637, 0
        %4166 = vmatprep.subr.mxu0 0.0
        %4167 = vmatpush1.xpose.msra.mxu0 %v4164
        %4168 = vmatprep.subr.mxu0 0.0
        %4169 = vmatpush1.xpose.msra.mxu0 0.0
        %4170 = vmatprep.subr.mxu0 0.0
        %4171 = vmatpush1.xpose.msra.mxu0 0.0
        %4172 = vmatprep.subr.mxu0 0.0
        %4173 = vmatpush1.xpose.msra.mxu0 0.0
        %4174 = vmatprep.subr.mxu0 0.0
        %4175 = vmatpush1.xpose.msra.mxu0 0.0
        %4176 = vmatprep.subr.mxu0 0.0
        %4177 = vmatpush1.xpose.msra.mxu0 0.0
        %4178 = vmatprep.subr.mxu0 0.0
        %4179 = vmatpush1.xpose.msra.mxu0 0.0
        %4180 = vmatprep.subr.mxu0 0.0
        %4181 = vmatpush1.xpose.msra.mxu0 0.0
        %4182 = vmatprep.subr.mxu0 0.0
        %4183 = vmatpush1.xpose.msra.mxu0 0.0
        %4184 = vmatprep.subr.mxu0 0.0
        %4185 = vmatpush1.xpose.msra.mxu0 0.0
        %4186 = vmatprep.subr.mxu0 0.0
        %4187 = vmatpush1.xpose.msra.mxu0 0.0
        %4188 = vmatprep.subr.mxu0 0.0
        %4189 = vmatpush1.xpose.msra.mxu0 0.0
        %4190 = vmatprep.subr.mxu0 0.0
        %4191 = vmatpush1.xpose.msra.mxu0 0.0
        %4192 = vmatprep.subr.mxu0 0.0
        %4193 = vmatpush1.xpose.msra.mxu0 0.0
        %4194 = vmatprep.subr.mxu0 0.0
        %4195 = vmatpush1.xpose.msra.mxu0 0.0
        %4196 = vmatprep.subr.mxu0 0.0
        %4197 = vmatpush1.xpose.msra.mxu0 0.0
        %4198 = vmatprep.subr.mxu0 0.0
        %4199 = vmatpush1.xpose.msra.mxu0 0.0
        %4200 = vmatprep.subr.mxu0 0.0
        %4201 = vmatpush1.xpose.msra.mxu0 0.0
        %4202 = vmatprep.subr.mxu0 0.0
        %4203 = vmatpush1.xpose.msra.mxu0 0.0
        %4204 = vmatprep.subr.mxu0 0.0
        %4205 = vmatpush1.xpose.msra.mxu0 0.0
        %4206 = vmatprep.subr.mxu0 0.0
        %4207 = vmatpush1.xpose.msra.mxu0 0.0
        %4208 = vmatprep.subr.mxu0 0.0
        %4209 = vmatpush1.xpose.msra.mxu0 0.0
        %4210 = vmatprep.subr.mxu0 0.0
        %4211 = vmatpush1.xpose.msra.mxu0 0.0
        %4212 = vmatprep.subr.mxu0 0.0
        %4213 = vmatpush1.xpose.msra.mxu0 0.0
        %4214 = vmatprep.subr.mxu0 0.0
        %4215 = vmatpush1.xpose.msra.mxu0 0.0
        %4216 = vmatprep.subr.mxu0 0.0
        %4217 = vmatpush1.xpose.msra.mxu0 0.0
        %4218 = vmatprep.subr.mxu0 0.0
        %4219 = vmatpush1.xpose.msra.mxu0 0.0
        %4220 = vmatprep.subr.mxu0 0.0
        %4221 = vmatpush1.xpose.msra.mxu0 0.0
        %4222 = vmatprep.subr.mxu0 0.0
        %4223 = vmatpush1.xpose.msra.mxu0 0.0
        %4224 = vmatprep.subr.mxu0 0.0
        %4225 = vmatpush1.xpose.msra.mxu0 0.0
        %4226 = vmatprep.subr.mxu0 0.0
        %4227 = vmatpush1.xpose.msra.mxu0 0.0
        %4228 = vmatprep.subr.mxu0 0.0
        %4229 = vmatpush1.xpose.msra.mxu0 0.0
        %4230 = vmatprep.mubr.f32.mxu0 0.0
        %4231 = vmatmul.mubr.f32.gmra.mrb[0].mxu0 %v4161
        %v4232 = vpop.f32.mrb[0].mxu0
        %v4233 = vadd.f32 0.0, %v4232
        %v4234 = vpop.f32.mrb[0].mxu0
        %4235 = vdwg.mxu0
        %v4237 = vsel %vm2122, %v3399, 0
        %v4240 = vsel %vm2122, %v3707, 0
        %4242 = vmatprep.subr.mxu0 0.0
        %4243 = vmatpush1.xpose.msra.mxu0 %v4240
        %4244 = vmatprep.subr.mxu0 0.0
        %4245 = vmatpush1.xpose.msra.mxu0 0.0
        %4246 = vmatprep.subr.mxu0 0.0
        %4247 = vmatpush1.xpose.msra.mxu0 0.0
        %4248 = vmatprep.subr.mxu0 0.0
        %4249 = vmatpush1.xpose.msra.mxu0 0.0
        %4250 = vmatprep.subr.mxu0 0.0
        %4251 = vmatpush1.xpose.msra.mxu0 0.0
        %4252 = vmatprep.subr.mxu0 0.0
        %4253 = vmatpush1.xpose.msra.mxu0 0.0
        %4254 = vmatprep.subr.mxu0 0.0
        %4255 = vmatpush1.xpose.msra.mxu0 0.0
        %4256 = vmatprep.subr.mxu0 0.0
        %4257 = vmatpush1.xpose.msra.mxu0 0.0
        %4258 = vmatprep.subr.mxu0 0.0
        %4259 = vmatpush1.xpose.msra.mxu0 0.0
        %4260 = vmatprep.subr.mxu0 0.0
        %4261 = vmatpush1.xpose.msra.mxu0 0.0
        %4262 = vmatprep.subr.mxu0 0.0
        %4263 = vmatpush1.xpose.msra.mxu0 0.0
        %4264 = vmatprep.subr.mxu0 0.0
        %4265 = vmatpush1.xpose.msra.mxu0 0.0
        %4266 = vmatprep.subr.mxu0 0.0
        %4267 = vmatpush1.xpose.msra.mxu0 0.0
        %4268 = vmatprep.subr.mxu0 0.0
        %4269 = vmatpush1.xpose.msra.mxu0 0.0
        %4270 = vmatprep.subr.mxu0 0.0
        %4271 = vmatpush1.xpose.msra.mxu0 0.0
        %4272 = vmatprep.subr.mxu0 0.0
        %4273 = vmatpush1.xpose.msra.mxu0 0.0
        %4274 = vmatprep.subr.mxu0 0.0
        %4275 = vmatpush1.xpose.msra.mxu0 0.0
        %4276 = vmatprep.subr.mxu0 0.0
        %4277 = vmatpush1.xpose.msra.mxu0 0.0
        %4278 = vmatprep.subr.mxu0 0.0
        %4279 = vmatpush1.xpose.msra.mxu0 0.0
        %4280 = vmatprep.subr.mxu0 0.0
        %4281 = vmatpush1.xpose.msra.mxu0 0.0
        %4282 = vmatprep.subr.mxu0 0.0
        %4283 = vmatpush1.xpose.msra.mxu0 0.0
        %4284 = vmatprep.subr.mxu0 0.0
        %4285 = vmatpush1.xpose.msra.mxu0 0.0
        %4286 = vmatprep.subr.mxu0 0.0
        %4287 = vmatpush1.xpose.msra.mxu0 0.0
        %4288 = vmatprep.subr.mxu0 0.0
        %4289 = vmatpush1.xpose.msra.mxu0 0.0
        %4290 = vmatprep.subr.mxu0 0.0
        %4291 = vmatpush1.xpose.msra.mxu0 0.0
        %4292 = vmatprep.subr.mxu0 0.0
        %4293 = vmatpush1.xpose.msra.mxu0 0.0
        %4294 = vmatprep.subr.mxu0 0.0
        %4295 = vmatpush1.xpose.msra.mxu0 0.0
        %4296 = vmatprep.subr.mxu0 0.0
        %4297 = vmatpush1.xpose.msra.mxu0 0.0
        %4298 = vmatprep.subr.mxu0 0.0
        %4299 = vmatpush1.xpose.msra.mxu0 0.0
        %4300 = vmatprep.subr.mxu0 0.0
        %4301 = vmatpush1.xpose.msra.mxu0 0.0
        %4302 = vmatprep.subr.mxu0 0.0
        %4303 = vmatpush1.xpose.msra.mxu0 0.0
        %4304 = vmatprep.subr.mxu0 0.0
        %4305 = vmatpush1.xpose.msra.mxu0 0.0
        %4306 = vmatprep.mubr.f32.mxu0 0.0
        %4307 = vmatmul.mubr.f32.gmra.mrb[0].mxu0 %v4237
        %v4308 = vpop.f32.mrb[0].mxu0
        %v4309 = vadd.f32 0.0, %v4308
        %v4310 = vpop.f32.mrb[0].mxu0
        %4311 = vdwg.mxu0
        %v4313 = vsel %vm2122, %v3469, 0
        %v4316 = vsel %vm2122, %v3777, 0
        %4318 = vmatprep.subr.mxu0 0.0
        %4319 = vmatpush1.xpose.msra.mxu0 %v4316
        %4320 = vmatprep.subr.mxu0 0.0
        %4321 = vmatpush1.xpose.msra.mxu0 0.0
        %4322 = vmatprep.subr.mxu0 0.0
        %4323 = vmatpush1.xpose.msra.mxu0 0.0
        %4324 = vmatprep.subr.mxu0 0.0
        %4325 = vmatpush1.xpose.msra.mxu0 0.0
        %4326 = vmatprep.subr.mxu0 0.0
        %4327 = vmatpush1.xpose.msra.mxu0 0.0
        %4328 = vmatprep.subr.mxu0 0.0
        %4329 = vmatpush1.xpose.msra.mxu0 0.0
        %4330 = vmatprep.subr.mxu0 0.0
        %4331 = vmatpush1.xpose.msra.mxu0 0.0
        %4332 = vmatprep.subr.mxu0 0.0
        %4333 = vmatpush1.xpose.msra.mxu0 0.0
        %4334 = vmatprep.subr.mxu0 0.0
        %4335 = vmatpush1.xpose.msra.mxu0 0.0
        %4336 = vmatprep.subr.mxu0 0.0
        %4337 = vmatpush1.xpose.msra.mxu0 0.0
        %4338 = vmatprep.subr.mxu0 0.0
        %4339 = vmatpush1.xpose.msra.mxu0 0.0
        %4340 = vmatprep.subr.mxu0 0.0
        %4341 = vmatpush1.xpose.msra.mxu0 0.0
        %4342 = vmatprep.subr.mxu0 0.0
        %4343 = vmatpush1.xpose.msra.mxu0 0.0
        %4344 = vmatprep.subr.mxu0 0.0
        %4345 = vmatpush1.xpose.msra.mxu0 0.0
        %4346 = vmatprep.subr.mxu0 0.0
        %4347 = vmatpush1.xpose.msra.mxu0 0.0
        %4348 = vmatprep.subr.mxu0 0.0
        %4349 = vmatpush1.xpose.msra.mxu0 0.0
        %4350 = vmatprep.subr.mxu0 0.0
        %4351 = vmatpush1.xpose.msra.mxu0 0.0
        %4352 = vmatprep.subr.mxu0 0.0
        %4353 = vmatpush1.xpose.msra.mxu0 0.0
        %4354 = vmatprep.subr.mxu0 0.0
        %4355 = vmatpush1.xpose.msra.mxu0 0.0
        %4356 = vmatprep.subr.mxu0 0.0
        %4357 = vmatpush1.xpose.msra.mxu0 0.0
        %4358 = vmatprep.subr.mxu0 0.0
        %4359 = vmatpush1.xpose.msra.mxu0 0.0
        %4360 = vmatprep.subr.mxu0 0.0
        %4361 = vmatpush1.xpose.msra.mxu0 0.0
        %4362 = vmatprep.subr.mxu0 0.0
        %4363 = vmatpush1.xpose.msra.mxu0 0.0
        %4364 = vmatprep.subr.mxu0 0.0
        %4365 = vmatpush1.xpose.msra.mxu0 0.0
        %4366 = vmatprep.subr.mxu0 0.0
        %4367 = vmatpush1.xpose.msra.mxu0 0.0
        %4368 = vmatprep.subr.mxu0 0.0
        %4369 = vmatpush1.xpose.msra.mxu0 0.0
        %4370 = vmatprep.subr.mxu0 0.0
        %4371 = vmatpush1.xpose.msra.mxu0 0.0
        %4372 = vmatprep.subr.mxu0 0.0
        %4373 = vmatpush1.xpose.msra.mxu0 0.0
        %4374 = vmatprep.subr.mxu0 0.0
        %4375 = vmatpush1.xpose.msra.mxu0 0.0
        %4376 = vmatprep.subr.mxu0 0.0
        %4377 = vmatpush1.xpose.msra.mxu0 0.0
        %4378 = vmatprep.subr.mxu0 0.0
        %4379 = vmatpush1.xpose.msra.mxu0 0.0
        %4380 = vmatprep.subr.mxu0 0.0
        %4381 = vmatpush1.xpose.msra.mxu0 0.0
        %4382 = vmatprep.mubr.f32.mxu0 0.0
        %4383 = vmatmul.mubr.f32.gmra.mrb[0].mxu0 %v4313
        %v4384 = vpop.f32.mrb[0].mxu0
        %v4385 = vadd.f32 0.0, %v4384
        %v4386 = vpop.f32.mrb[0].mxu0
        %4387 = vdwg.mxu0
        %v4388 = vmul.f32 %v4157, 0.35355338
        %v4389 = vmul.f32 %v4233, 0.35355338
        %v4390 = vmul.f32 %v4309, 0.35355338
        %v4391 = vmul.f32 %v4385, 0.35355338
        %v4392 = vsel %vm2122, %v4388, -inf
        %4393 = vmax.xlane.f32.xlu0 %v4392
        %v4394 = vpop.xlane.xlu0 %4393
        %v4395 = vsel %vm2122, %v4389, -inf
        %4396 = vmax.xlane.f32.xlu0 %v4395
        %v4397 = vpop.xlane.xlu0 %4396
        %v4398 = vsel %vm2122, %v4390, -inf
        %4399 = vmax.xlane.f32.xlu0 %v4398
        %v4400 = vpop.xlane.xlu0 %4399
        %v4401 = vsel %vm2122, %v4391, -inf
        %4402 = vmax.xlane.f32.xlu0 %v4401
        %v4403 = vpop.xlane.xlu0 %4402
        %v4404 = vsub.f32 %v4388, %v4394
        %v4405 = vsub.f32 %v4389, %v4397
        %v4406 = vsub.f32 %v4390, %v4400
        %v4407 = vsub.f32 %v4391, %v4403
        %v4408 = vmul.f32 %v4404, 1.442695
        %v4409 = vpow.pop %v4408
        %v4410 = vmul.f32 %v4405, 1.442695
        %v4411 = vpow.pop %v4410
        %v4412 = vmul.f32 %v4406, 1.442695
        %v4413 = vpow.pop %v4412
        %v4414 = vmul.f32 %v4407, 1.442695
        %v4415 = vpow.pop %v4414
        %v4416 = vsel %vm2122, %v4409, 0.0
        %4417 = vadd.xlane.f32.xlu0 %v4416
        %v4418 = vpop.xlane.xlu0 %4417
        %v4419 = vsel %vm2122, %v4411, 0.0
        %4420 = vadd.xlane.f32.xlu0 %v4419
        %v4421 = vpop.xlane.xlu0 %4420
        %v4422 = vsel %vm2122, %v4413, 0.0
        %4423 = vadd.xlane.f32.xlu0 %v4422
        %v4424 = vpop.xlane.xlu0 %4423
        %v4425 = vsel %vm2122, %v4415, 0.0
        %4426 = vadd.xlane.f32.xlu0 %v4425
        %v4427 = vpop.xlane.xlu0 %4426
        %v4428 = vrcp.pop %v4418
        %v4429 = vrcp.pop %v4421
        %v4430 = vrcp.pop %v4424
        %v4431 = vrcp.pop %v4427
        %v4432 = vmul.f32 %v4418, %v4428
        %v4433 = vmul.f32 %v4421, %v4429
        %v4434 = vmul.f32 %v4424, %v4430
        %v4435 = vmul.f32 %v4427, %v4431
        %v4436 = vsub.f32 2.0, %v4432
        %v4437 = vsub.f32 2.0, %v4433
        %v4438 = vsub.f32 2.0, %v4434
        %v4439 = vsub.f32 2.0, %v4435
        %v4440 = vmul.f32 %v4428, %v4436
        %v4441 = vmul.f32 %v4429, %v4437
        %v4442 = vmul.f32 %v4430, %v4438
        %v4443 = vmul.f32 %v4431, %v4439
        %v4444 = vmul.f32 %v4409, %v4440
        %v4445 = vmul.f32 %v4411, %v4441
        %v4446 = vmul.f32 %v4413, %v4442
        %v4447 = vmul.f32 %v4415, %v4443
        %v4449 = vsel %vm2122, %v4444, 0
        %4451 = vmatprep.subr.mxu0 0.0
        %4452 = vmatpush1.msra.mxu0 %v3871
        %4453 = vmatprep.subr.mxu0 0.0
        %4454 = vmatpush1.msra.mxu0 0.0
        %4455 = vmatprep.subr.mxu0 0.0
        %4456 = vmatpush1.msra.mxu0 0.0
        %4457 = vmatprep.subr.mxu0 0.0
        %4458 = vmatpush1.msra.mxu0 0.0
        %4459 = vmatprep.subr.mxu0 0.0
        %4460 = vmatpush1.msra.mxu0 0.0
        %4461 = vmatprep.subr.mxu0 0.0
        %4462 = vmatpush1.msra.mxu0 0.0
        %4463 = vmatprep.subr.mxu0 0.0
        %4464 = vmatpush1.msra.mxu0 0.0
        %4465 = vmatprep.subr.mxu0 0.0
        %4466 = vmatpush1.msra.mxu0 0.0
        %4467 = vmatprep.subr.mxu0 0.0
        %4468 = vmatpush1.msra.mxu0 0.0
        %4469 = vmatprep.subr.mxu0 0.0
        %4470 = vmatpush1.msra.mxu0 0.0
        %4471 = vmatprep.subr.mxu0 0.0
        %4472 = vmatpush1.msra.mxu0 0.0
        %4473 = vmatprep.subr.mxu0 0.0
        %4474 = vmatpush1.msra.mxu0 0.0
        %4475 = vmatprep.subr.mxu0 0.0
        %4476 = vmatpush1.msra.mxu0 0.0
        %4477 = vmatprep.subr.mxu0 0.0
        %4478 = vmatpush1.msra.mxu0 0.0
        %4479 = vmatprep.subr.mxu0 0.0
        %4480 = vmatpush1.msra.mxu0 0.0
        %4481 = vmatprep.subr.mxu0 0.0
        %4482 = vmatpush1.msra.mxu0 0.0
        %4483 = vmatprep.subr.mxu0 0.0
        %4484 = vmatpush1.msra.mxu0 0.0
        %4485 = vmatprep.subr.mxu0 0.0
        %4486 = vmatpush1.msra.mxu0 0.0
        %4487 = vmatprep.subr.mxu0 0.0
        %4488 = vmatpush1.msra.mxu0 0.0
        %4489 = vmatprep.subr.mxu0 0.0
        %4490 = vmatpush1.msra.mxu0 0.0
        %4491 = vmatprep.subr.mxu0 0.0
        %4492 = vmatpush1.msra.mxu0 0.0
        %4493 = vmatprep.subr.mxu0 0.0
        %4494 = vmatpush1.msra.mxu0 0.0
        %4495 = vmatprep.subr.mxu0 0.0
        %4496 = vmatpush1.msra.mxu0 0.0
        %4497 = vmatprep.subr.mxu0 0.0
        %4498 = vmatpush1.msra.mxu0 0.0
        %4499 = vmatprep.subr.mxu0 0.0
        %4500 = vmatpush1.msra.mxu0 0.0
        %4501 = vmatprep.subr.mxu0 0.0
        %4502 = vmatpush1.msra.mxu0 0.0
        %4503 = vmatprep.subr.mxu0 0.0
        %4504 = vmatpush1.msra.mxu0 0.0
        %4505 = vmatprep.subr.mxu0 0.0
        %4506 = vmatpush1.msra.mxu0 0.0
        %4507 = vmatprep.subr.mxu0 0.0
        %4508 = vmatpush1.msra.mxu0 0.0
        %4509 = vmatprep.subr.mxu0 0.0
        %4510 = vmatpush1.msra.mxu0 0.0
        %4511 = vmatprep.subr.mxu0 0.0
        %4512 = vmatpush1.msra.mxu0 0.0
        %4513 = vmatprep.subr.mxu0 0.0
        %4514 = vmatpush1.msra.mxu0 0.0
        %4515 = vmatprep.mubr.f32.mxu0 0.0
        %4516 = vmatmul.mubr.f32.gmra.mrb[0].mxu0 %v4449
        %v4517 = vpop.f32.mrb[0].mxu0
        %v4518 = vadd.f32 0.0, %v4517
        %v4519 = vpop.f32.mrb[0].mxu0
        %4520 = vdwg.mxu0
        %v4522 = vsel %vm2122, %v4445, 0
        %4524 = vmatprep.subr.mxu0 0.0
        %4525 = vmatpush1.msra.mxu0 %v3941
        %4526 = vmatprep.subr.mxu0 0.0
        %4527 = vmatpush1.msra.mxu0 0.0
        %4528 = vmatprep.subr.mxu0 0.0
        %4529 = vmatpush1.msra.mxu0 0.0
        %4530 = vmatprep.subr.mxu0 0.0
        %4531 = vmatpush1.msra.mxu0 0.0
        %4532 = vmatprep.subr.mxu0 0.0
        %4533 = vmatpush1.msra.mxu0 0.0
        %4534 = vmatprep.subr.mxu0 0.0
        %4535 = vmatpush1.msra.mxu0 0.0
        %4536 = vmatprep.subr.mxu0 0.0
        %4537 = vmatpush1.msra.mxu0 0.0
        %4538 = vmatprep.subr.mxu0 0.0
        %4539 = vmatpush1.msra.mxu0 0.0
        %4540 = vmatprep.subr.mxu0 0.0
        %4541 = vmatpush1.msra.mxu0 0.0
        %4542 = vmatprep.subr.mxu0 0.0
        %4543 = vmatpush1.msra.mxu0 0.0
        %4544 = vmatprep.subr.mxu0 0.0
        %4545 = vmatpush1.msra.mxu0 0.0
        %4546 = vmatprep.subr.mxu0 0.0
        %4547 = vmatpush1.msra.mxu0 0.0
        %4548 = vmatprep.subr.mxu0 0.0
        %4549 = vmatpush1.msra.mxu0 0.0
        %4550 = vmatprep.subr.mxu0 0.0
        %4551 = vmatpush1.msra.mxu0 0.0
        %4552 = vmatprep.subr.mxu0 0.0
        %4553 = vmatpush1.msra.mxu0 0.0
        %4554 = vmatprep.subr.mxu0 0.0
        %4555 = vmatpush1.msra.mxu0 0.0
        %4556 = vmatprep.subr.mxu0 0.0
        %4557 = vmatpush1.msra.mxu0 0.0
        %4558 = vmatprep.subr.mxu0 0.0
        %4559 = vmatpush1.msra.mxu0 0.0
        %4560 = vmatprep.subr.mxu0 0.0
        %4561 = vmatpush1.msra.mxu0 0.0
        %4562 = vmatprep.subr.mxu0 0.0
        %4563 = vmatpush1.msra.mxu0 0.0
        %4564 = vmatprep.subr.mxu0 0.0
        %4565 = vmatpush1.msra.mxu0 0.0
        %4566 = vmatprep.subr.mxu0 0.0
        %4567 = vmatpush1.msra.mxu0 0.0
        %4568 = vmatprep.subr.mxu0 0.0
        %4569 = vmatpush1.msra.mxu0 0.0
        %4570 = vmatprep.subr.mxu0 0.0
        %4571 = vmatpush1.msra.mxu0 0.0
        %4572 = vmatprep.subr.mxu0 0.0
        %4573 = vmatpush1.msra.mxu0 0.0
        %4574 = vmatprep.subr.mxu0 0.0
        %4575 = vmatpush1.msra.mxu0 0.0
        %4576 = vmatprep.subr.mxu0 0.0
        %4577 = vmatpush1.msra.mxu0 0.0
        %4578 = vmatprep.subr.mxu0 0.0
        %4579 = vmatpush1.msra.mxu0 0.0
        %4580 = vmatprep.subr.mxu0 0.0
        %4581 = vmatpush1.msra.mxu0 0.0
        %4582 = vmatprep.subr.mxu0 0.0
        %4583 = vmatpush1.msra.mxu0 0.0
        %4584 = vmatprep.subr.mxu0 0.0
        %4585 = vmatpush1.msra.mxu0 0.0
        %4586 = vmatprep.subr.mxu0 0.0
        %4587 = vmatpush1.msra.mxu0 0.0
        %4588 = vmatprep.mubr.f32.mxu0 0.0
        %4589 = vmatmul.mubr.f32.gmra.mrb[0].mxu0 %v4522
        %v4590 = vpop.f32.mrb[0].mxu0
        %v4591 = vadd.f32 0.0, %v4590
        %v4592 = vpop.f32.mrb[0].mxu0
        %4593 = vdwg.mxu0
        %v4595 = vsel %vm2122, %v4446, 0
        %4597 = vmatprep.subr.mxu0 0.0
        %4598 = vmatpush1.msra.mxu0 %v4011
        %4599 = vmatprep.subr.mxu0 0.0
        %4600 = vmatpush1.msra.mxu0 0.0
        %4601 = vmatprep.subr.mxu0 0.0
        %4602 = vmatpush1.msra.mxu0 0.0
        %4603 = vmatprep.subr.mxu0 0.0
        %4604 = vmatpush1.msra.mxu0 0.0
        %4605 = vmatprep.subr.mxu0 0.0
        %4606 = vmatpush1.msra.mxu0 0.0
        %4607 = vmatprep.subr.mxu0 0.0
        %4608 = vmatpush1.msra.mxu0 0.0
        %4609 = vmatprep.subr.mxu0 0.0
        %4610 = vmatpush1.msra.mxu0 0.0
        %4611 = vmatprep.subr.mxu0 0.0
        %4612 = vmatpush1.msra.mxu0 0.0
        %4613 = vmatprep.subr.mxu0 0.0
        %4614 = vmatpush1.msra.mxu0 0.0
        %4615 = vmatprep.subr.mxu0 0.0
        %4616 = vmatpush1.msra.mxu0 0.0
        %4617 = vmatprep.subr.mxu0 0.0
        %4618 = vmatpush1.msra.mxu0 0.0
        %4619 = vmatprep.subr.mxu0 0.0
        %4620 = vmatpush1.msra.mxu0 0.0
        %4621 = vmatprep.subr.mxu0 0.0
        %4622 = vmatpush1.msra.mxu0 0.0
        %4623 = vmatprep.subr.mxu0 0.0
        %4624 = vmatpush1.msra.mxu0 0.0
        %4625 = vmatprep.subr.mxu0 0.0
        %4626 = vmatpush1.msra.mxu0 0.0
        %4627 = vmatprep.subr.mxu0 0.0
        %4628 = vmatpush1.msra.mxu0 0.0
        %4629 = vmatprep.subr.mxu0 0.0
        %4630 = vmatpush1.msra.mxu0 0.0
        %4631 = vmatprep.subr.mxu0 0.0
        %4632 = vmatpush1.msra.mxu0 0.0
        %4633 = vmatprep.subr.mxu0 0.0
        %4634 = vmatpush1.msra.mxu0 0.0
        %4635 = vmatprep.subr.mxu0 0.0
        %4636 = vmatpush1.msra.mxu0 0.0
        %4637 = vmatprep.subr.mxu0 0.0
        %4638 = vmatpush1.msra.mxu0 0.0
        %4639 = vmatprep.subr.mxu0 0.0
        %4640 = vmatpush1.msra.mxu0 0.0
        %4641 = vmatprep.subr.mxu0 0.0
        %4642 = vmatpush1.msra.mxu0 0.0
        %4643 = vmatprep.subr.mxu0 0.0
        %4644 = vmatpush1.msra.mxu0 0.0
        %4645 = vmatprep.subr.mxu0 0.0
        %4646 = vmatpush1.msra.mxu0 0.0
        %4647 = vmatprep.subr.mxu0 0.0
        %4648 = vmatpush1.msra.mxu0 0.0
        %4649 = vmatprep.subr.mxu0 0.0
        %4650 = vmatpush1.msra.mxu0 0.0
        %4651 = vmatprep.subr.mxu0 0.0
        %4652 = vmatpush1.msra.mxu0 0.0
        %4653 = vmatprep.subr.mxu0 0.0
        %4654 = vmatpush1.msra.mxu0 0.0
        %4655 = vmatprep.subr.mxu0 0.0
        %4656 = vmatpush1.msra.mxu0 0.0
        %4657 = vmatprep.subr.mxu0 0.0
        %4658 = vmatpush1.msra.mxu0 0.0
        %4659 = vmatprep.subr.mxu0 0.0
        %4660 = vmatpush1.msra.mxu0 0.0
        %4661 = vmatprep.mubr.f32.mxu0 0.0
        %4662 = vmatmul.mubr.f32.gmra.mrb[0].mxu0 %v4595
        %v4663 = vpop.f32.mrb[0].mxu0
        %v4664 = vadd.f32 0.0, %v4663
        %v4665 = vpop.f32.mrb[0].mxu0
        %4666 = vdwg.mxu0
        %v4668 = vsel %vm2122, %v4447, 0
        %4670 = vmatprep.subr.mxu0 0.0
        %4671 = vmatpush1.msra.mxu0 %v4081
        %4672 = vmatprep.subr.mxu0 0.0
        %4673 = vmatpush1.msra.mxu0 0.0
        %4674 = vmatprep.subr.mxu0 0.0
        %4675 = vmatpush1.msra.mxu0 0.0
        %4676 = vmatprep.subr.mxu0 0.0
        %4677 = vmatpush1.msra.mxu0 0.0
        %4678 = vmatprep.subr.mxu0 0.0
        %4679 = vmatpush1.msra.mxu0 0.0
        %4680 = vmatprep.subr.mxu0 0.0
        %4681 = vmatpush1.msra.mxu0 0.0
        %4682 = vmatprep.subr.mxu0 0.0
        %4683 = vmatpush1.msra.mxu0 0.0
        %4684 = vmatprep.subr.mxu0 0.0
        %4685 = vmatpush1.msra.mxu0 0.0
        %4686 = vmatprep.subr.mxu0 0.0
        %4687 = vmatpush1.msra.mxu0 0.0
        %4688 = vmatprep.subr.mxu0 0.0
        %4689 = vmatpush1.msra.mxu0 0.0
        %4690 = vmatprep.subr.mxu0 0.0
        %4691 = vmatpush1.msra.mxu0 0.0
        %4692 = vmatprep.subr.mxu0 0.0
        %4693 = vmatpush1.msra.mxu0 0.0
        %4694 = vmatprep.subr.mxu0 0.0
        %4695 = vmatpush1.msra.mxu0 0.0
        %4696 = vmatprep.subr.mxu0 0.0
        %4697 = vmatpush1.msra.mxu0 0.0
        %4698 = vmatprep.subr.mxu0 0.0
        %4699 = vmatpush1.msra.mxu0 0.0
        %4700 = vmatprep.subr.mxu0 0.0
        %4701 = vmatpush1.msra.mxu0 0.0
        %4702 = vmatprep.subr.mxu0 0.0
        %4703 = vmatpush1.msra.mxu0 0.0
        %4704 = vmatprep.subr.mxu0 0.0
        %4705 = vmatpush1.msra.mxu0 0.0
        %4706 = vmatprep.subr.mxu0 0.0
        %4707 = vmatpush1.msra.mxu0 0.0
        %4708 = vmatprep.subr.mxu0 0.0
        %4709 = vmatpush1.msra.mxu0 0.0
        %4710 = vmatprep.subr.mxu0 0.0
        %4711 = vmatpush1.msra.mxu0 0.0
        %4712 = vmatprep.subr.mxu0 0.0
        %4713 = vmatpush1.msra.mxu0 0.0
        %4714 = vmatprep.subr.mxu0 0.0
        %4715 = vmatpush1.msra.mxu0 0.0
        %4716 = vmatprep.subr.mxu0 0.0
        %4717 = vmatpush1.msra.mxu0 0.0
        %4718 = vmatprep.subr.mxu0 0.0
        %4719 = vmatpush1.msra.mxu0 0.0
        %4720 = vmatprep.subr.mxu0 0.0
        %4721 = vmatpush1.msra.mxu0 0.0
        %4722 = vmatprep.subr.mxu0 0.0
        %4723 = vmatpush1.msra.mxu0 0.0
        %4724 = vmatprep.subr.mxu0 0.0
        %4725 = vmatpush1.msra.mxu0 0.0
        %4726 = vmatprep.subr.mxu0 0.0
        %4727 = vmatpush1.msra.mxu0 0.0
        %4728 = vmatprep.subr.mxu0 0.0
        %4729 = vmatpush1.msra.mxu0 0.0
        %4730 = vmatprep.subr.mxu0 0.0
        %4731 = vmatpush1.msra.mxu0 0.0
        %4732 = vmatprep.subr.mxu0 0.0
        %4733 = vmatpush1.msra.mxu0 0.0
        %4734 = vmatprep.mubr.f32.mxu0 0.0
        %4735 = vmatmul.mubr.f32.gmra.mrb[0].mxu0 %v4668
        %v4736 = vpop.f32.mrb[0].mxu0
        %v4737 = vadd.f32 0.0, %v4736
        %v4738 = vpop.f32.mrb[0].mxu0
        %4739 = vdwg.mxu0
        %v4741 = vsel %vm2122, %v4518, 0
        %4743 = vmatprep.subr.mxu0 0.0
        %4744 = vmatpush1.msra.mxu0 %v3160
        %4745 = vmatprep.subr.mxu0 0.0
        %4746 = vmatpush1.msra.mxu0 0.0
        %4747 = vmatprep.subr.mxu0 0.0
        %4748 = vmatpush1.msra.mxu0 0.0
        %4749 = vmatprep.subr.mxu0 0.0
        %4750 = vmatpush1.msra.mxu0 0.0
        %4751 = vmatprep.subr.mxu0 0.0
        %4752 = vmatpush1.msra.mxu0 0.0
        %4753 = vmatprep.subr.mxu0 0.0
        %4754 = vmatpush1.msra.mxu0 0.0
        %4755 = vmatprep.subr.mxu0 0.0
        %4756 = vmatpush1.msra.mxu0 0.0
        %4757 = vmatprep.subr.mxu0 0.0
        %4758 = vmatpush1.msra.mxu0 0.0
        %4759 = vmatprep.subr.mxu0 0.0
        %4760 = vmatpush1.msra.mxu0 0.0
        %4761 = vmatprep.subr.mxu0 0.0
        %4762 = vmatpush1.msra.mxu0 0.0
        %4763 = vmatprep.subr.mxu0 0.0
        %4764 = vmatpush1.msra.mxu0 0.0
        %4765 = vmatprep.subr.mxu0 0.0
        %4766 = vmatpush1.msra.mxu0 0.0
        %4767 = vmatprep.subr.mxu0 0.0
        %4768 = vmatpush1.msra.mxu0 0.0
        %4769 = vmatprep.subr.mxu0 0.0
        %4770 = vmatpush1.msra.mxu0 0.0
        %4771 = vmatprep.subr.mxu0 0.0
        %4772 = vmatpush1.msra.mxu0 0.0
        %4773 = vmatprep.subr.mxu0 0.0
        %4774 = vmatpush1.msra.mxu0 0.0
        %4775 = vmatprep.subr.mxu0 0.0
        %4776 = vmatpush1.msra.mxu0 0.0
        %4777 = vmatprep.subr.mxu0 0.0
        %4778 = vmatpush1.msra.mxu0 0.0
        %4779 = vmatprep.subr.mxu0 0.0
        %4780 = vmatpush1.msra.mxu0 0.0
        %4781 = vmatprep.subr.mxu0 0.0
        %4782 = vmatpush1.msra.mxu0 0.0
        %4783 = vmatprep.subr.mxu0 0.0
        %4784 = vmatpush1.msra.mxu0 0.0
        %4785 = vmatprep.subr.mxu0 0.0
        %4786 = vmatpush1.msra.mxu0 0.0
        %4787 = vmatprep.subr.mxu0 0.0
        %4788 = vmatpush1.msra.mxu0 0.0
        %4789 = vmatprep.subr.mxu0 0.0
        %4790 = vmatpush1.msra.mxu0 0.0
        %4791 = vmatprep.subr.mxu0 0.0
        %4792 = vmatpush1.msra.mxu0 0.0
        %4793 = vmatprep.subr.mxu0 0.0
        %4794 = vmatpush1.msra.mxu0 0.0
        %4795 = vmatprep.subr.mxu0 0.0
        %4796 = vmatpush1.msra.mxu0 0.0
        %4797 = vmatprep.subr.mxu0 0.0
        %4798 = vmatpush1.msra.mxu0 0.0
        %4799 = vmatprep.subr.mxu0 0.0
        %4800 = vmatpush1.msra.mxu0 0.0
        %4801 = vmatprep.subr.mxu0 0.0
        %4802 = vmatpush1.msra.mxu0 0.0
        %4803 = vmatprep.subr.mxu0 0.0
        %4804 = vmatpush1.msra.mxu0 0.0
        %4805 = vmatprep.subr.mxu0 0.0
        %4806 = vmatpush1.msra.mxu0 0.0
        %4807 = vmatprep.mubr.f32.mxu0 0.0
        %4808 = vmatmul.mubr.f32.gmra.mrb[0].mxu0 %v4741
        %v4809 = vpop.f32.mrb[0].mxu0
        %v4810 = vadd.f32 0.0, %v4809
        %v4811 = vpop.f32.mrb[0].mxu0
        %4812 = vdwg.mxu0
        %v4814 = vsel %vm2122, %v4591, 0
        %4816 = vmatprep.subr.mxu0 0.0
        %4817 = vmatpush1.msra.mxu0 %v3161
        %4818 = vmatprep.subr.mxu0 0.0
        %4819 = vmatpush1.msra.mxu0 0.0
        %4820 = vmatprep.subr.mxu0 0.0
        %4821 = vmatpush1.msra.mxu0 0.0
        %4822 = vmatprep.subr.mxu0 0.0
        %4823 = vmatpush1.msra.mxu0 0.0
        %4824 = vmatprep.subr.mxu0 0.0
        %4825 = vmatpush1.msra.mxu0 0.0
        %4826 = vmatprep.subr.mxu0 0.0
        %4827 = vmatpush1.msra.mxu0 0.0
        %4828 = vmatprep.subr.mxu0 0.0
        %4829 = vmatpush1.msra.mxu0 0.0
        %4830 = vmatprep.subr.mxu0 0.0
        %4831 = vmatpush1.msra.mxu0 0.0
        %4832 = vmatprep.subr.mxu0 0.0
        %4833 = vmatpush1.msra.mxu0 0.0
        %4834 = vmatprep.subr.mxu0 0.0
        %4835 = vmatpush1.msra.mxu0 0.0
        %4836 = vmatprep.subr.mxu0 0.0
        %4837 = vmatpush1.msra.mxu0 0.0
        %4838 = vmatprep.subr.mxu0 0.0
        %4839 = vmatpush1.msra.mxu0 0.0
        %4840 = vmatprep.subr.mxu0 0.0
        %4841 = vmatpush1.msra.mxu0 0.0
        %4842 = vmatprep.subr.mxu0 0.0
        %4843 = vmatpush1.msra.mxu0 0.0
        %4844 = vmatprep.subr.mxu0 0.0
        %4845 = vmatpush1.msra.mxu0 0.0
        %4846 = vmatprep.subr.mxu0 0.0
        %4847 = vmatpush1.msra.mxu0 0.0
        %4848 = vmatprep.subr.mxu0 0.0
        %4849 = vmatpush1.msra.mxu0 0.0
        %4850 = vmatprep.subr.mxu0 0.0
        %4851 = vmatpush1.msra.mxu0 0.0
        %4852 = vmatprep.subr.mxu0 0.0
        %4853 = vmatpush1.msra.mxu0 0.0
        %4854 = vmatprep.subr.mxu0 0.0
        %4855 = vmatpush1.msra.mxu0 0.0
        %4856 = vmatprep.subr.mxu0 0.0
        %4857 = vmatpush1.msra.mxu0 0.0
        %4858 = vmatprep.subr.mxu0 0.0
        %4859 = vmatpush1.msra.mxu0 0.0
        %4860 = vmatprep.subr.mxu0 0.0
        %4861 = vmatpush1.msra.mxu0 0.0
        %4862 = vmatprep.subr.mxu0 0.0
        %4863 = vmatpush1.msra.mxu0 0.0
        %4864 = vmatprep.subr.mxu0 0.0
        %4865 = vmatpush1.msra.mxu0 0.0
        %4866 = vmatprep.subr.mxu0 0.0
        %4867 = vmatpush1.msra.mxu0 0.0
        %4868 = vmatprep.subr.mxu0 0.0
        %4869 = vmatpush1.msra.mxu0 0.0
        %4870 = vmatprep.subr.mxu0 0.0
        %4871 = vmatpush1.msra.mxu0 0.0
        %4872 = vmatprep.subr.mxu0 0.0
        %4873 = vmatpush1.msra.mxu0 0.0
        %4874 = vmatprep.subr.mxu0 0.0
        %4875 = vmatpush1.msra.mxu0 0.0
        %4876 = vmatprep.subr.mxu0 0.0
        %4877 = vmatpush1.msra.mxu0 0.0
        %4878 = vmatprep.subr.mxu0 0.0
        %4879 = vmatpush1.msra.mxu0 0.0
        %4880 = vmatprep.mubr.f32.mxu0 0.0
        %4881 = vmatmul.mubr.f32.gmra.mrb[0].mxu0 %v4814
        %v4882 = vpop.f32.mrb[0].mxu0
        %v4883 = vadd.f32 0.0, %v4882
        %v4884 = vpop.f32.mrb[0].mxu0
        %4885 = vdwg.mxu0
        %v4887 = vsel %vm2122, %v4664, 0
        %4889 = vmatprep.subr.mxu0 0.0
        %4890 = vmatpush1.msra.mxu0 %v3162
        %4891 = vmatprep.subr.mxu0 0.0
        %4892 = vmatpush1.msra.mxu0 0.0
        %4893 = vmatprep.subr.mxu0 0.0
        %4894 = vmatpush1.msra.mxu0 0.0
        %4895 = vmatprep.subr.mxu0 0.0
        %4896 = vmatpush1.msra.mxu0 0.0
        %4897 = vmatprep.subr.mxu0 0.0
        %4898 = vmatpush1.msra.mxu0 0.0
        %4899 = vmatprep.subr.mxu0 0.0
        %4900 = vmatpush1.msra.mxu0 0.0
        %4901 = vmatprep.subr.mxu0 0.0
        %4902 = vmatpush1.msra.mxu0 0.0
        %4903 = vmatprep.subr.mxu0 0.0
        %4904 = vmatpush1.msra.mxu0 0.0
        %4905 = vmatprep.subr.mxu0 0.0
        %4906 = vmatpush1.msra.mxu0 0.0
        %4907 = vmatprep.subr.mxu0 0.0
        %4908 = vmatpush1.msra.mxu0 0.0
        %4909 = vmatprep.subr.mxu0 0.0
        %4910 = vmatpush1.msra.mxu0 0.0
        %4911 = vmatprep.subr.mxu0 0.0
        %4912 = vmatpush1.msra.mxu0 0.0
        %4913 = vmatprep.subr.mxu0 0.0
        %4914 = vmatpush1.msra.mxu0 0.0
        %4915 = vmatprep.subr.mxu0 0.0
        %4916 = vmatpush1.msra.mxu0 0.0
        %4917 = vmatprep.subr.mxu0 0.0
        %4918 = vmatpush1.msra.mxu0 0.0
        %4919 = vmatprep.subr.mxu0 0.0
        %4920 = vmatpush1.msra.mxu0 0.0
        %4921 = vmatprep.subr.mxu0 0.0
        %4922 = vmatpush1.msra.mxu0 0.0
        %4923 = vmatprep.subr.mxu0 0.0
        %4924 = vmatpush1.msra.mxu0 0.0
        %4925 = vmatprep.subr.mxu0 0.0
        %4926 = vmatpush1.msra.mxu0 0.0
        %4927 = vmatprep.subr.mxu0 0.0
        %4928 = vmatpush1.msra.mxu0 0.0
        %4929 = vmatprep.subr.mxu0 0.0
        %4930 = vmatpush1.msra.mxu0 0.0
        %4931 = vmatprep.subr.mxu0 0.0
        %4932 = vmatpush1.msra.mxu0 0.0
        %4933 = vmatprep.subr.mxu0 0.0
        %4934 = vmatpush1.msra.mxu0 0.0
        %4935 = vmatprep.subr.mxu0 0.0
        %4936 = vmatpush1.msra.mxu0 0.0
        %4937 = vmatprep.subr.mxu0 0.0
        %4938 = vmatpush1.msra.mxu0 0.0
        %4939 = vmatprep.subr.mxu0 0.0
        %4940 = vmatpush1.msra.mxu0 0.0
        %4941 = vmatprep.subr.mxu0 0.0
        %4942 = vmatpush1.msra.mxu0 0.0
        %4943 = vmatprep.subr.mxu0 0.0
        %4944 = vmatpush1.msra.mxu0 0.0
        %4945 = vmatprep.subr.mxu0 0.0
        %4946 = vmatpush1.msra.mxu0 0.0
        %4947 = vmatprep.subr.mxu0 0.0
        %4948 = vmatpush1.msra.mxu0 0.0
        %4949 = vmatprep.subr.mxu0 0.0
        %4950 = vmatpush1.msra.mxu0 0.0
        %4951 = vmatprep.subr.mxu0 0.0
        %4952 = vmatpush1.msra.mxu0 0.0
        %4953 = vmatprep.mubr.f32.mxu0 0.0
        %4954 = vmatmul.mubr.f32.gmra.mrb[0].mxu0 %v4887
        %v4955 = vpop.f32.mrb[0].mxu0
        %v4956 = vadd.f32 0.0, %v4955
        %v4957 = vpop.f32.mrb[0].mxu0
        %4958 = vdwg.mxu0
        %v4960 = vsel %vm2122, %v4737, 0
        %4962 = vmatprep.subr.mxu0 0.0
        %4963 = vmatpush1.msra.mxu0 %v3163
        %4964 = vmatprep.subr.mxu0 0.0
        %4965 = vmatpush1.msra.mxu0 0.0
        %4966 = vmatprep.subr.mxu0 0.0
        %4967 = vmatpush1.msra.mxu0 0.0
        %4968 = vmatprep.subr.mxu0 0.0
        %4969 = vmatpush1.msra.mxu0 0.0
        %4970 = vmatprep.subr.mxu0 0.0
        %4971 = vmatpush1.msra.mxu0 0.0
        %4972 = vmatprep.subr.mxu0 0.0
        %4973 = vmatpush1.msra.mxu0 0.0
        %4974 = vmatprep.subr.mxu0 0.0
        %4975 = vmatpush1.msra.mxu0 0.0
        %4976 = vmatprep.subr.mxu0 0.0
        %4977 = vmatpush1.msra.mxu0 0.0
        %4978 = vmatprep.subr.mxu0 0.0
        %4979 = vmatpush1.msra.mxu0 0.0
        %4980 = vmatprep.subr.mxu0 0.0
        %4981 = vmatpush1.msra.mxu0 0.0
        %4982 = vmatprep.subr.mxu0 0.0
        %4983 = vmatpush1.msra.mxu0 0.0
        %4984 = vmatprep.subr.mxu0 0.0
        %4985 = vmatpush1.msra.mxu0 0.0
        %4986 = vmatprep.subr.mxu0 0.0
        %4987 = vmatpush1.msra.mxu0 0.0
        %4988 = vmatprep.subr.mxu0 0.0
        %4989 = vmatpush1.msra.mxu0 0.0
        %4990 = vmatprep.subr.mxu0 0.0
        %4991 = vmatpush1.msra.mxu0 0.0
        %4992 = vmatprep.subr.mxu0 0.0
        %4993 = vmatpush1.msra.mxu0 0.0
        %4994 = vmatprep.subr.mxu0 0.0
        %4995 = vmatpush1.msra.mxu0 0.0
        %4996 = vmatprep.subr.mxu0 0.0
        %4997 = vmatpush1.msra.mxu0 0.0
        %4998 = vmatprep.subr.mxu0 0.0
        %4999 = vmatpush1.msra.mxu0 0.0
        %5000 = vmatprep.subr.mxu0 0.0
        %5001 = vmatpush1.msra.mxu0 0.0
        %5002 = vmatprep.subr.mxu0 0.0
        %5003 = vmatpush1.msra.mxu0 0.0
        %5004 = vmatprep.subr.mxu0 0.0
        %5005 = vmatpush1.msra.mxu0 0.0
        %5006 = vmatprep.subr.mxu0 0.0
        %5007 = vmatpush1.msra.mxu0 0.0
        %5008 = vmatprep.subr.mxu0 0.0
        %5009 = vmatpush1.msra.mxu0 0.0
        %5010 = vmatprep.subr.mxu0 0.0
        %5011 = vmatpush1.msra.mxu0 0.0
        %5012 = vmatprep.subr.mxu0 0.0
        %5013 = vmatpush1.msra.mxu0 0.0
        %5014 = vmatprep.subr.mxu0 0.0
        %5015 = vmatpush1.msra.mxu0 0.0
        %5016 = vmatprep.subr.mxu0 0.0
        %5017 = vmatpush1.msra.mxu0 0.0
        %5018 = vmatprep.subr.mxu0 0.0
        %5019 = vmatpush1.msra.mxu0 0.0
        %5020 = vmatprep.subr.mxu0 0.0
        %5021 = vmatpush1.msra.mxu0 0.0
        %5022 = vmatprep.subr.mxu0 0.0
        %5023 = vmatpush1.msra.mxu0 0.0
        %5024 = vmatprep.subr.mxu0 0.0
        %5025 = vmatpush1.msra.mxu0 0.0
        %5026 = vmatprep.mubr.f32.mxu0 0.0
        %5027 = vmatmul.mubr.f32.gmra.mrb[0].mxu0 %v4960
        %v5028 = vpop.f32.mrb[0].mxu0
        %v5029 = vadd.f32 0.0, %v5028
        %v5030 = vpop.f32.mrb[0].mxu0
        %5031 = vdwg.mxu0
        %v5032 = vsel %vm1230, %v4810, 0.0
        %v5033 = vsel %vm1230, %v4883, 0.0
        %v5034 = vadd.f32 %v5032, %v5033
        %v5035 = vsel %vm1230, %v4956, 0.0
        %v5036 = vadd.f32 %v5034, %v5035
        %v5037 = vsel %vm1230, %v5029, 0.0
        %v5038 = vadd.f32 %v5036, %v5037
        %v5040 = vlaneseq
        %v5041 = vshrl.u32 %v5040, 7
        %v5042 = vsub.s32 0, %v5041
        %v5043 = vrot.slane %v3164, %v5042
        %v5045 = vadd.f32 %v5038, %v5043
        %v5046 = vadd.f32 %v5045, %v3115
        %v5047 = vld [vmem:[%s43] sm:$0x1]
        %v5048 = vld [vmem:[%s45] sm:$0x1]
        %v5049 = vsel %vm1230, %v5046, 0.0
        %5050 = vadd.xlane.f32.xlu0 %v5049
        %v5051 = vpop.xlane.xlu0 %5050
        %v5052 = vmul.f32 %v5051, %v3091
        %v5053 = vsub.f32 %v5046, %v5052
        %v5054 = vmul.f32 %v5053, %v5053
        %v5055 = vsel %vm1230, %v5054, 0.0
        %5056 = vadd.xlane.f32.xlu0 %v5055
        %v5057 = vpop.xlane.xlu0 %5056
        %v5058 = vmul.f32 %v5057, %v3091
        %v5059 = vadd.f32 %v5058, 1e-05
        %v5060 = vrsqrt.pop %v5059
        %v5061 = vmul.f32 %v5053, %v5060
        %v5063 = vlaneseq
        %v5064 = vshrl.u32 %v5063, 7
        %v5065 = vsub.s32 0, %v5064
        %v5066 = vrot.slane %v5047, %v5065
        %v5068 = vmul.f32 %v5061, %v5066
        %v5070 = vlaneseq
        %v5071 = vshrl.u32 %v5070, 7
        %v5072 = vsub.s32 0, %v5071
        %v5073 = vrot.slane %v5048, %v5072
        %v5075 = vadd.f32 %v5068, %v5073
        %v5076 = vld [vmem:[%s51] sm:$0xff]
        %v5077 = vld [vmem:[%s53] sm:$0x1]
        %v5079 = vsel %vm2122, %v1140, 0
        %5081 = vmatprep.subr.mxu0 0.0
        %5082 = vmatpush1.msra.mxu0 %v5076
        %5083 = vmatprep.subr.mxu0 0.0
        %5084 = vmatpush1.msra.mxu0 0.0
        %5085 = vmatprep.subr.mxu0 0.0
        %5086 = vmatpush1.msra.mxu0 0.0
        %5087 = vmatprep.subr.mxu0 0.0
        %5088 = vmatpush1.msra.mxu0 0.0
        %5089 = vmatprep.subr.mxu0 0.0
        %5090 = vmatpush1.msra.mxu0 0.0
        %5091 = vmatprep.subr.mxu0 0.0
        %5092 = vmatpush1.msra.mxu0 0.0
        %5093 = vmatprep.subr.mxu0 0.0
        %5094 = vmatpush1.msra.mxu0 0.0
        %5095 = vmatprep.subr.mxu0 0.0
        %5096 = vmatpush1.msra.mxu0 0.0
        %5097 = vmatprep.subr.mxu0 0.0
        %5098 = vmatpush1.msra.mxu0 0.0
        %5099 = vmatprep.subr.mxu0 0.0
        %5100 = vmatpush1.msra.mxu0 0.0
        %5101 = vmatprep.subr.mxu0 0.0
        %5102 = vmatpush1.msra.mxu0 0.0
        %5103 = vmatprep.subr.mxu0 0.0
        %5104 = vmatpush1.msra.mxu0 0.0
        %5105 = vmatprep.subr.mxu0 0.0
        %5106 = vmatpush1.msra.mxu0 0.0
        %5107 = vmatprep.subr.mxu0 0.0
        %5108 = vmatpush1.msra.mxu0 0.0
        %5109 = vmatprep.subr.mxu0 0.0
        %5110 = vmatpush1.msra.mxu0 0.0
        %5111 = vmatprep.subr.mxu0 0.0
        %5112 = vmatpush1.msra.mxu0 0.0
        %5113 = vmatprep.subr.mxu0 0.0
        %5114 = vmatpush1.msra.mxu0 0.0
        %5115 = vmatprep.subr.mxu0 0.0
        %5116 = vmatpush1.msra.mxu0 0.0
        %5117 = vmatprep.subr.mxu0 0.0
        %5118 = vmatpush1.msra.mxu0 0.0
        %5119 = vmatprep.subr.mxu0 0.0
        %5120 = vmatpush1.msra.mxu0 0.0
        %5121 = vmatprep.subr.mxu0 0.0
        %5122 = vmatpush1.msra.mxu0 0.0
        %5123 = vmatprep.subr.mxu0 0.0
        %5124 = vmatpush1.msra.mxu0 0.0
        %5125 = vmatprep.subr.mxu0 0.0
        %5126 = vmatpush1.msra.mxu0 0.0
        %5127 = vmatprep.subr.mxu0 0.0
        %5128 = vmatpush1.msra.mxu0 0.0
        %5129 = vmatprep.subr.mxu0 0.0
        %5130 = vmatpush1.msra.mxu0 0.0
        %5131 = vmatprep.subr.mxu0 0.0
        %5132 = vmatpush1.msra.mxu0 0.0
        %5133 = vmatprep.subr.mxu0 0.0
        %5134 = vmatpush1.msra.mxu0 0.0
        %5135 = vmatprep.subr.mxu0 0.0
        %5136 = vmatpush1.msra.mxu0 0.0
        %5137 = vmatprep.subr.mxu0 0.0
        %5138 = vmatpush1.msra.mxu0 0.0
        %5139 = vmatprep.subr.mxu0 0.0
        %5140 = vmatpush1.msra.mxu0 0.0
        %5141 = vmatprep.subr.mxu0 0.0
        %5142 = vmatpush1.msra.mxu0 0.0
        %5143 = vmatprep.subr.mxu0 0.0
        %5144 = vmatpush1.msra.mxu0 0.0
        %5145 = vmatprep.mubr.f32.mxu0 0.0
        %5146 = vmatmul.mubr.f32.gmra.mrb[0].mxu0 %v5079
        %v5147 = vpop.f32.mrb[0].mxu0
        %v5148 = vadd.f32 %v5077, %v5147
        %v5149 = vpop.f32.mrb[0].mxu0
        %5150 = vdwg.mxu0
        %v5151 = vxor.u32 %v5148, 2147483648
        %v5152 = vmul.f32 %v5151, 1.442695
        %v5153 = vpow.pop %v5152
        %v5154 = vadd.f32 %v5153, 1.0
        %v5155 = vrcp.pop %v5154
        %v5156 = vmul.f32 1.0, %v5155
        %v5157 = vld [vmem:[%s55] sm:$0xff]
        %5158 = vmatprep.subr.mxu0 0.0
        %5159 = vmatpush1.msra.mxu0 %v5157
        %5160 = vmatprep.subr.mxu0 0.0
        %5161 = vmatpush1.msra.mxu0 0.0
        %5162 = vmatprep.subr.mxu0 0.0
        %5163 = vmatpush1.msra.mxu0 0.0
        %5164 = vmatprep.subr.mxu0 0.0
        %5165 = vmatpush1.msra.mxu0 0.0
        %5166 = vmatprep.subr.mxu0 0.0
        %5167 = vmatpush1.msra.mxu0 0.0
        %5168 = vmatprep.subr.mxu0 0.0
        %5169 = vmatpush1.msra.mxu0 0.0
        %5170 = vmatprep.subr.mxu0 0.0
        %5171 = vmatpush1.msra.mxu0 0.0
        %5172 = vmatprep.subr.mxu0 0.0
        %5173 = vmatpush1.msra.mxu0 0.0
        %5174 = vmatprep.subr.mxu0 0.0
        %5175 = vmatpush1.msra.mxu0 0.0
        %5176 = vmatprep.subr.mxu0 0.0
        %5177 = vmatpush1.msra.mxu0 0.0
        %5178 = vmatprep.subr.mxu0 0.0
        %5179 = vmatpush1.msra.mxu0 0.0
        %5180 = vmatprep.subr.mxu0 0.0
        %5181 = vmatpush1.msra.mxu0 0.0
        %5182 = vmatprep.subr.mxu0 0.0
        %5183 = vmatpush1.msra.mxu0 0.0
        %5184 = vmatprep.subr.mxu0 0.0
        %5185 = vmatpush1.msra.mxu0 0.0
        %5186 = vmatprep.subr.mxu0 0.0
        %5187 = vmatpush1.msra.mxu0 0.0
        %5188 = vmatprep.subr.mxu0 0.0
        %5189 = vmatpush1.msra.mxu0 0.0
        %5190 = vmatprep.subr.mxu0 0.0
        %5191 = vmatpush1.msra.mxu0 0.0
        %5192 = vmatprep.subr.mxu0 0.0
        %5193 = vmatpush1.msra.mxu0 0.0
        %5194 = vmatprep.subr.mxu0 0.0
        %5195 = vmatpush1.msra.mxu0 0.0
        %5196 = vmatprep.subr.mxu0 0.0
        %5197 = vmatpush1.msra.mxu0 0.0
        %5198 = vmatprep.subr.mxu0 0.0
        %5199 = vmatpush1.msra.mxu0 0.0
        %5200 = vmatprep.subr.mxu0 0.0
        %5201 = vmatpush1.msra.mxu0 0.0
        %5202 = vmatprep.subr.mxu0 0.0
        %5203 = vmatpush1.msra.mxu0 0.0
        %5204 = vmatprep.subr.mxu0 0.0
        %5205 = vmatpush1.msra.mxu0 0.0
        %5206 = vmatprep.subr.mxu0 0.0
        %5207 = vmatpush1.msra.mxu0 0.0
        %5208 = vmatprep.subr.mxu0 0.0
        %5209 = vmatpush1.msra.mxu0 0.0
        %5210 = vmatprep.subr.mxu0 0.0
        %5211 = vmatpush1.msra.mxu0 0.0
        %5212 = vmatprep.subr.mxu0 0.0
        %5213 = vmatpush1.msra.mxu0 0.0
        %5214 = vmatprep.subr.mxu0 0.0
        %5215 = vmatpush1.msra.mxu0 0.0
        %5216 = vmatprep.subr.mxu0 0.0
        %5217 = vmatpush1.msra.mxu0 0.0
        %5218 = vmatprep.subr.mxu0 0.0
        %5219 = vmatpush1.msra.mxu0 0.0
        %5220 = vmatprep.subr.mxu0 0.0
        %5221 = vmatpush1.msra.mxu0 0.0
        %5222 = vmatprep.mubr.f32.mxu0 0.0
        %5223 = vmatmul.mubr.f32.gmra.mrb[0].mxu0 %v5079
        %v5224 = vpop.f32.mrb[0].mxu0
        %v5225 = vadd.f32 0.0, %v5224
        %v5226 = vpop.f32.mrb[0].mxu0
        %5227 = vdwg.mxu0
        %v5228 = vld [vmem:[%s47] sm:$0xff]
        %v5229 = vld [vmem:[%s47 + $0x8] sm:$0xff]
        %v5230 = vld [vmem:[%s47 + $0x10] sm:$0xff]
        %v5231 = vld [vmem:[%s47 + $0x18] sm:$0xff]
        %v5232 = vld [vmem:[%s49] sm:$0x1]
        %v5234 = vlaneseq
        %v5235 = vshrl.u32 %v5234, 7
        %v5236 = vsub.s32 0, %v5235
        %v5237 = vrot.slane %v5232, %v5236
        %v5240 = vsel %vm1230, %v5075, 0
        %5242 = vmatprep.subr.mxu0 0.0
        %5243 = vmatpush1.msra.mxu0 %v5228
        %5244 = vmatprep.subr.mxu0 0.0
        %5245 = vmatpush1.msra.mxu0 %v5229
        %5246 = vmatprep.subr.mxu0 0.0
        %5247 = vmatpush1.msra.mxu0 %v5230
        %5248 = vmatprep.subr.mxu0 0.0
        %5249 = vmatpush1.msra.mxu0 %v5231
        %5250 = vmatprep.subr.mxu0 0.0
        %5251 = vmatpush1.msra.mxu0 0.0
        %5252 = vmatprep.subr.mxu0 0.0
        %5253 = vmatpush1.msra.mxu0 0.0
        %5254 = vmatprep.subr.mxu0 0.0
        %5255 = vmatpush1.msra.mxu0 0.0
        %5256 = vmatprep.subr.mxu0 0.0
        %5257 = vmatpush1.msra.mxu0 0.0
        %5258 = vmatprep.subr.mxu0 0.0
        %5259 = vmatpush1.msra.mxu0 0.0
        %5260 = vmatprep.subr.mxu0 0.0
        %5261 = vmatpush1.msra.mxu0 0.0
        %5262 = vmatprep.subr.mxu0 0.0
        %5263 = vmatpush1.msra.mxu0 0.0
        %5264 = vmatprep.subr.mxu0 0.0
        %5265 = vmatpush1.msra.mxu0 0.0
        %5266 = vmatprep.subr.mxu0 0.0
        %5267 = vmatpush1.msra.mxu0 0.0
        %5268 = vmatprep.subr.mxu0 0.0
        %5269 = vmatpush1.msra.mxu0 0.0
        %5270 = vmatprep.subr.mxu0 0.0
        %5271 = vmatpush1.msra.mxu0 0.0
        %5272 = vmatprep.subr.mxu0 0.0
        %5273 = vmatpush1.msra.mxu0 0.0
        %5274 = vmatprep.subr.mxu0 0.0
        %5275 = vmatpush1.msra.mxu0 0.0
        %5276 = vmatprep.subr.mxu0 0.0
        %5277 = vmatpush1.msra.mxu0 0.0
        %5278 = vmatprep.subr.mxu0 0.0
        %5279 = vmatpush1.msra.mxu0 0.0
        %5280 = vmatprep.subr.mxu0 0.0
        %5281 = vmatpush1.msra.mxu0 0.0
        %5282 = vmatprep.subr.mxu0 0.0
        %5283 = vmatpush1.msra.mxu0 0.0
        %5284 = vmatprep.subr.mxu0 0.0
        %5285 = vmatpush1.msra.mxu0 0.0
        %5286 = vmatprep.subr.mxu0 0.0
        %5287 = vmatpush1.msra.mxu0 0.0
        %5288 = vmatprep.subr.mxu0 0.0
        %5289 = vmatpush1.msra.mxu0 0.0
        %5290 = vmatprep.subr.mxu0 0.0
        %5291 = vmatpush1.msra.mxu0 0.0
        %5292 = vmatprep.subr.mxu0 0.0
        %5293 = vmatpush1.msra.mxu0 0.0
        %5294 = vmatprep.subr.mxu0 0.0
        %5295 = vmatpush1.msra.mxu0 0.0
        %5296 = vmatprep.subr.mxu0 0.0
        %5297 = vmatpush1.msra.mxu0 0.0
        %5298 = vmatprep.subr.mxu0 0.0
        %5299 = vmatpush1.msra.mxu0 0.0
        %5300 = vmatprep.subr.mxu0 0.0
        %5301 = vmatpush1.msra.mxu0 0.0
        %5302 = vmatprep.subr.mxu0 0.0
        %5303 = vmatpush1.msra.mxu0 0.0
        %5304 = vmatprep.subr.mxu0 0.0
        %5305 = vmatpush1.msra.mxu0 0.0
        %5306 = vmatprep.mubr.f32.mxu0 0.0
        %5307 = vmatmul.mubr.f32.gmra.mrb[0].mxu0 %v5240
        %v5308 = vpop.f32.mrb[0].mxu0
        %v5309 = vadd.f32 %v5237, %v5308
        %v5310 = vpop.f32.mrb[0].mxu0
        %5311 = vdwg.mxu0
        %v5312 = vlaneseq
        %v5313 = vshrl.u32 %v5312, 7
        %v5314 = vsub.s32 0, %v5313
        %v5315 = vrot.slane %v5156, %v5314
        %v5316 = vmul.f32 %v5309, %v5315
        %v5317 = vlaneseq
        %v5318 = vshrl.u32 %v5317, 7
        %v5319 = vsub.s32 0, %v5318
        %v5320 = vrot.slane %v5225, %v5319
        %v5321 = vadd.f32 %v5316, %v5320
        %v5322 = vmax.f32 %v5321, 0.0
        %v5323 = vld [vmem:[%s61] sm:$0xff]
        %v5324 = vld [vmem:[%s63] sm:$0x1]
        %5325 = vmatprep.subr.mxu0 0.0
        %5326 = vmatpush1.msra.mxu0 %v5323
        %5327 = vmatprep.subr.mxu0 0.0
        %5328 = vmatpush1.msra.mxu0 0.0
        %5329 = vmatprep.subr.mxu0 0.0
        %5330 = vmatpush1.msra.mxu0 0.0
        %5331 = vmatprep.subr.mxu0 0.0
        %5332 = vmatpush1.msra.mxu0 0.0
        %5333 = vmatprep.subr.mxu0 0.0
        %5334 = vmatpush1.msra.mxu0 0.0
        %5335 = vmatprep.subr.mxu0 0.0
        %5336 = vmatpush1.msra.mxu0 0.0
        %5337 = vmatprep.subr.mxu0 0.0
        %5338 = vmatpush1.msra.mxu0 0.0
        %5339 = vmatprep.subr.mxu0 0.0
        %5340 = vmatpush1.msra.mxu0 0.0
        %5341 = vmatprep.subr.mxu0 0.0
        %5342 = vmatpush1.msra.mxu0 0.0
        %5343 = vmatprep.subr.mxu0 0.0
        %5344 = vmatpush1.msra.mxu0 0.0
        %5345 = vmatprep.subr.mxu0 0.0
        %5346 = vmatpush1.msra.mxu0 0.0
        %5347 = vmatprep.subr.mxu0 0.0
        %5348 = vmatpush1.msra.mxu0 0.0
        %5349 = vmatprep.subr.mxu0 0.0
        %5350 = vmatpush1.msra.mxu0 0.0
        %5351 = vmatprep.subr.mxu0 0.0
        %5352 = vmatpush1.msra.mxu0 0.0
        %5353 = vmatprep.subr.mxu0 0.0
        %5354 = vmatpush1.msra.mxu0 0.0
        %5355 = vmatprep.subr.mxu0 0.0
        %5356 = vmatpush1.msra.mxu0 0.0
        %5357 = vmatprep.subr.mxu0 0.0
        %5358 = vmatpush1.msra.mxu0 0.0
        %5359 = vmatprep.subr.mxu0 0.0
        %5360 = vmatpush1.msra.mxu0 0.0
        %5361 = vmatprep.subr.mxu0 0.0
        %5362 = vmatpush1.msra.mxu0 0.0
        %5363 = vmatprep.subr.mxu0 0.0
        %5364 = vmatpush1.msra.mxu0 0.0
        %5365 = vmatprep.subr.mxu0 0.0
        %5366 = vmatpush1.msra.mxu0 0.0
        %5367 = vmatprep.subr.mxu0 0.0
        %5368 = vmatpush1.msra.mxu0 0.0
        %5369 = vmatprep.subr.mxu0 0.0
        %5370 = vmatpush1.msra.mxu0 0.0
        %5371 = vmatprep.subr.mxu0 0.0
        %5372 = vmatpush1.msra.mxu0 0.0
        %5373 = vmatprep.subr.mxu0 0.0
        %5374 = vmatpush1.msra.mxu0 0.0
        %5375 = vmatprep.subr.mxu0 0.0
        %5376 = vmatpush1.msra.mxu0 0.0
        %5377 = vmatprep.subr.mxu0 0.0
        %5378 = vmatpush1.msra.mxu0 0.0
        %5379 = vmatprep.subr.mxu0 0.0
        %5380 = vmatpush1.msra.mxu0 0.0
        %5381 = vmatprep.subr.mxu0 0.0
        %5382 = vmatpush1.msra.mxu0 0.0
        %5383 = vmatprep.subr.mxu0 0.0
        %5384 = vmatpush1.msra.mxu0 0.0
        %5385 = vmatprep.subr.mxu0 0.0
        %5386 = vmatpush1.msra.mxu0 0.0
        %5387 = vmatprep.subr.mxu0 0.0
        %5388 = vmatpush1.msra.mxu0 0.0
        %5389 = vmatprep.mubr.f32.mxu0 0.0
        %5390 = vmatmul.mubr.f32.gmra.mrb[0].mxu0 %v5079
        %v5391 = vpop.f32.mrb[0].mxu0
        %v5392 = vadd.f32 %v5324, %v5391
        %v5393 = vpop.f32.mrb[0].mxu0
        %5394 = vdwg.mxu0
        %v5395 = vxor.u32 %v5392, 2147483648
        %v5396 = vmul.f32 %v5395, 1.442695
        %v5397 = vpow.pop %v5396
        %v5398 = vadd.f32 %v5397, 1.0
        %v5399 = vrcp.pop %v5398
        %v5400 = vmul.f32 1.0, %v5399
        %v5401 = vld [vmem:[%s65] sm:$0xff]
        %5402 = vmatprep.subr.mxu0 0.0
        %5403 = vmatpush1.msra.mxu0 %v5401
        %5404 = vmatprep.subr.mxu0 0.0
        %5405 = vmatpush1.msra.mxu0 0.0
        %5406 = vmatprep.subr.mxu0 0.0
        %5407 = vmatpush1.msra.mxu0 0.0
        %5408 = vmatprep.subr.mxu0 0.0
        %5409 = vmatpush1.msra.mxu0 0.0
        %5410 = vmatprep.subr.mxu0 0.0
        %5411 = vmatpush1.msra.mxu0 0.0
        %5412 = vmatprep.subr.mxu0 0.0
        %5413 = vmatpush1.msra.mxu0 0.0
        %5414 = vmatprep.subr.mxu0 0.0
        %5415 = vmatpush1.msra.mxu0 0.0
        %5416 = vmatprep.subr.mxu0 0.0
        %5417 = vmatpush1.msra.mxu0 0.0
        %5418 = vmatprep.subr.mxu0 0.0
        %5419 = vmatpush1.msra.mxu0 0.0
        %5420 = vmatprep.subr.mxu0 0.0
        %5421 = vmatpush1.msra.mxu0 0.0
        %5422 = vmatprep.subr.mxu0 0.0
        %5423 = vmatpush1.msra.mxu0 0.0
        %5424 = vmatprep.subr.mxu0 0.0
        %5425 = vmatpush1.msra.mxu0 0.0
        %5426 = vmatprep.subr.mxu0 0.0
        %5427 = vmatpush1.msra.mxu0 0.0
        %5428 = vmatprep.subr.mxu0 0.0
        %5429 = vmatpush1.msra.mxu0 0.0
        %5430 = vmatprep.subr.mxu0 0.0
        %5431 = vmatpush1.msra.mxu0 0.0
        %5432 = vmatprep.subr.mxu0 0.0
        %5433 = vmatpush1.msra.mxu0 0.0
        %5434 = vmatprep.subr.mxu0 0.0
        %5435 = vmatpush1.msra.mxu0 0.0
        %5436 = vmatprep.subr.mxu0 0.0
        %5437 = vmatpush1.msra.mxu0 0.0
        %5438 = vmatprep.subr.mxu0 0.0
        %5439 = vmatpush1.msra.mxu0 0.0
        %5440 = vmatprep.subr.mxu0 0.0
        %5441 = vmatpush1.msra.mxu0 0.0
        %5442 = vmatprep.subr.mxu0 0.0
        %5443 = vmatpush1.msra.mxu0 0.0
        %5444 = vmatprep.subr.mxu0 0.0
        %5445 = vmatpush1.msra.mxu0 0.0
        %5446 = vmatprep.subr.mxu0 0.0
        %5447 = vmatpush1.msra.mxu0 0.0
        %5448 = vmatprep.subr.mxu0 0.0
        %5449 = vmatpush1.msra.mxu0 0.0
        %5450 = vmatprep.subr.mxu0 0.0
        %5451 = vmatpush1.msra.mxu0 0.0
        %5452 = vmatprep.subr.mxu0 0.0
        %5453 = vmatpush1.msra.mxu0 0.0
        %5454 = vmatprep.subr.mxu0 0.0
        %5455 = vmatpush1.msra.mxu0 0.0
        %5456 = vmatprep.subr.mxu0 0.0
        %5457 = vmatpush1.msra.mxu0 0.0
        %5458 = vmatprep.subr.mxu0 0.0
        %5459 = vmatpush1.msra.mxu0 0.0
        %5460 = vmatprep.subr.mxu0 0.0
        %5461 = vmatpush1.msra.mxu0 0.0
        %5462 = vmatprep.subr.mxu0 0.0
        %5463 = vmatpush1.msra.mxu0 0.0
        %5464 = vmatprep.subr.mxu0 0.0
        %5465 = vmatpush1.msra.mxu0 0.0
        %5466 = vmatprep.mubr.f32.mxu0 0.0
        %5467 = vmatmul.mubr.f32.gmra.mrb[0].mxu0 %v5079
        %v5468 = vpop.f32.mrb[0].mxu0
        %v5469 = vadd.f32 0.0, %v5468
        %v5470 = vpop.f32.mrb[0].mxu0
        %5471 = vdwg.mxu0
        %v5472 = vld [vmem:[%s57] sm:$0xff]
        %v5473 = vld [vmem:[%s57 + $0x8] sm:$0xff]
        %v5474 = vld [vmem:[%s57 + $0x10] sm:$0xff]
        %v5475 = vld [vmem:[%s57 + $0x18] sm:$0xff]
        %v5476 = vld [vmem:[%s57 + $0x20] sm:$0xff]
        %v5477 = vld [vmem:[%s57 + $0x28] sm:$0xff]
        %v5478 = vld [vmem:[%s57 + $0x30] sm:$0xff]
        %v5479 = vld [vmem:[%s57 + $0x38] sm:$0xff]
        %v5480 = vld [vmem:[%s59] sm:$0x1]
        %v5482 = vlaneseq
        %v5483 = vshrl.u32 %v5482, 7
        %v5484 = vsub.s32 0, %v5483
        %v5485 = vrot.slane %v5480, %v5484
        %vm5487 = vcmask 523264
        %v5489 = vsel %vm5487, %v5322, 0
        %5491 = vmatprep.subr.mxu0 0.0
        %5492 = vmatpush1.msra.mxu0 %v5472
        %5493 = vmatprep.subr.mxu0 0.0
        %5494 = vmatpush1.msra.mxu0 %v5473
        %5495 = vmatprep.subr.mxu0 0.0
        %5496 = vmatpush1.msra.mxu0 %v5474
        %5497 = vmatprep.subr.mxu0 0.0
        %5498 = vmatpush1.msra.mxu0 %v5475
        %5499 = vmatprep.subr.mxu0 0.0
        %5500 = vmatpush1.msra.mxu0 %v5476
        %5501 = vmatprep.subr.mxu0 0.0
        %5502 = vmatpush1.msra.mxu0 %v5477
        %5503 = vmatprep.subr.mxu0 0.0
        %5504 = vmatpush1.msra.mxu0 %v5478
        %5505 = vmatprep.subr.mxu0 0.0
        %5506 = vmatpush1.msra.mxu0 %v5479
        %5507 = vmatprep.subr.mxu0 0.0
        %5508 = vmatpush1.msra.mxu0 0.0
        %5509 = vmatprep.subr.mxu0 0.0
        %5510 = vmatpush1.msra.mxu0 0.0
        %5511 = vmatprep.subr.mxu0 0.0
        %5512 = vmatpush1.msra.mxu0 0.0
        %5513 = vmatprep.subr.mxu0 0.0
        %5514 = vmatpush1.msra.mxu0 0.0
        %5515 = vmatprep.subr.mxu0 0.0
        %5516 = vmatpush1.msra.mxu0 0.0
        %5517 = vmatprep.subr.mxu0 0.0
        %5518 = vmatpush1.msra.mxu0 0.0
        %5519 = vmatprep.subr.mxu0 0.0
        %5520 = vmatpush1.msra.mxu0 0.0
        %5521 = vmatprep.subr.mxu0 0.0
        %5522 = vmatpush1.msra.mxu0 0.0
        %5523 = vmatprep.subr.mxu0 0.0
        %5524 = vmatpush1.msra.mxu0 0.0
        %5525 = vmatprep.subr.mxu0 0.0
        %5526 = vmatpush1.msra.mxu0 0.0
        %5527 = vmatprep.subr.mxu0 0.0
        %5528 = vmatpush1.msra.mxu0 0.0
        %5529 = vmatprep.subr.mxu0 0.0
        %5530 = vmatpush1.msra.mxu0 0.0
        %5531 = vmatprep.subr.mxu0 0.0
        %5532 = vmatpush1.msra.mxu0 0.0
        %5533 = vmatprep.subr.mxu0 0.0
        %5534 = vmatpush1.msra.mxu0 0.0
        %5535 = vmatprep.subr.mxu0 0.0
        %5536 = vmatpush1.msra.mxu0 0.0
        %5537 = vmatprep.subr.mxu0 0.0
        %5538 = vmatpush1.msra.mxu0 0.0
        %5539 = vmatprep.subr.mxu0 0.0
        %5540 = vmatpush1.msra.mxu0 0.0
        %5541 = vmatprep.subr.mxu0 0.0
        %5542 = vmatpush1.msra.mxu0 0.0
        %5543 = vmatprep.subr.mxu0 0.0
        %5544 = vmatpush1.msra.mxu0 0.0
        %5545 = vmatprep.subr.mxu0 0.0
        %5546 = vmatpush1.msra.mxu0 0.0
        %5547 = vmatprep.subr.mxu0 0.0
        %5548 = vmatpush1.msra.mxu0 0.0
        %5549 = vmatprep.subr.mxu0 0.0
        %5550 = vmatpush1.msra.mxu0 0.0
        %5551 = vmatprep.subr.mxu0 0.0
        %5552 = vmatpush1.msra.mxu0 0.0
        %5553 = vmatprep.subr.mxu0 0.0
        %5554 = vmatpush1.msra.mxu0 0.0
        %5555 = vmatprep.mubr.f32.mxu0 0.0
        %5556 = vmatmul.mubr.f32.gmra.mrb[0].mxu0 %v5489
        %v5557 = vpop.f32.mrb[0].mxu0
        %v5558 = vadd.f32 %v5485, %v5557
        %v5559 = vpop.f32.mrb[0].mxu0
        %5560 = vdwg.mxu0
        %v5561 = vlaneseq
        %v5562 = vshrl.u32 %v5561, 7
        %v5563 = vsub.s32 0, %v5562
        %v5564 = vrot.slane %v5400, %v5563
        %v5565 = vmul.f32 %v5558, %v5564
        %v5566 = vlaneseq
        %v5567 = vshrl.u32 %v5566, 7
        %v5568 = vsub.s32 0, %v5567
        %v5569 = vrot.slane %v5469, %v5568
        %v5570 = vadd.f32 %v5565, %v5569
        %v5571 = vadd.f32 %v5570, %v5075
        %v5572 = vld [vmem:[%s67] sm:$0x1]
        %v5573 = vld [vmem:[%s69] sm:$0x1]
        %v5574 = vsel %vm1230, %v5571, 0.0
        %5575 = vadd.xlane.f32.xlu0 %v5574
        %v5576 = vpop.xlane.xlu0 %5575
        %v5577 = vmul.f32 %v5576, %v3091
        %v5578 = vsub.f32 %v5571, %v5577
        %v5579 = vmul.f32 %v5578, %v5578
        %v5580 = vsel %vm1230, %v5579, 0.0
        %5581 = vadd.xlane.f32.xlu0 %v5580
        %v5582 = vpop.xlane.xlu0 %5581
        %v5583 = vmul.f32 %v5582, %v3091
        %v5584 = vadd.f32 %v5583, 1e-05
        %v5585 = vrsqrt.pop %v5584
        %v5586 = vmul.f32 %v5578, %v5585
        %v5588 = vlaneseq
        %v5589 = vshrl.u32 %v5588, 7
        %v5590 = vsub.s32 0, %v5589
        %v5591 = vrot.slane %v5572, %v5590
        %v5593 = vmul.f32 %v5586, %v5591
        %v5595 = vlaneseq
        %v5596 = vshrl.u32 %v5595, 7
        %v5597 = vsub.s32 0, %v5596
        %v5598 = vrot.slane %v5573, %v5597
        %v5600 = vadd.f32 %v5593, %v5598
        %5601 = vst.msk [vmem:[%s1114] sm:$0xff] %vm1230, %v5600
        %5602 = vst.msk [vmem:[%s1137] sm:$0xff] %vm2122, %v4444
        %5603 = vst.msk [vmem:[%s1137 + $0x8] sm:$0xff] %vm2122, %v4445
        %5604 = vst.msk [vmem:[%s1137 + $0x10] sm:$0xff] %vm2122, %v4446
        %5605 = vst.msk [vmem:[%s1137 + $0x18] sm:$0xff] %vm2122, %v4447
        %s5606 = sand.u32 %s846, 1
        %s5607 = scalar_lea.sflag [#allocation3], %s5606
        %s5608 = sand.u32 %s846, 1
        %s5609 = smul.addr %s5608, 8
        %s5610 = scalar_lea.vmem [#allocation2], %s5609
        %p5611 = scmp.lt.s32.totalorder %s88, 1
        %s5612 = scalar_select %p5611, %s88, 1
        %s5613 = smul.addr %s5612, 4
        %s5614 = smul.addr %s5613, 8
        %s5615 = scalar_lea.vmem %s73, %s5614
        // Predicated region
        $region161: #{time_transformer_decoder_layer.1} parent=159 // pred_check
          %p5616 = pneg %p856
        $region162: #{time_transformer_decoder_layer.1} parent=159 // pred_check_branch
          %5618 = sbr.rel (%p5616) target = $region164
        $region163: #{time_transformer_decoder_layer.1} parent=159 // pred_region
          %s5620 = ssub.s32 128, 128
          %5621 = vsyncadd %s5607, %s5620
          %s5622 = smul.addr %s88, 128
          %s5623 = scalar_lea.hbm %s71, %s5622
          %s5625 = sshll.u32 %s5610, 4
          %s5626 = int_to_ptr.vmem [resolvable:$true] %s5625
          %5628 = dma.vmem_to_hbm [thread:$0]  %s5626, 128, %s5623, %s5607
        $region164: #{time_transformer_decoder_layer.1} parent=159 // pred_fallthru
          _
        // Predicated region
        $region165: #{time_transformer_decoder_layer.1} parent=159 // pred_check
          %p5629 = pneg %p882
        $region166: #{time_transformer_decoder_layer.1} parent=159 // pred_check_branch
          %5631 = sbr.rel (%p5629) target = $region168
        $region167: #{time_transformer_decoder_layer.1} parent=159 // pred_region
          _
        $region168: #{time_transformer_decoder_layer.1} parent=159 // pred_fallthru
          _
      $region160: #{time_transformer_decoder_layer.1} parent=5 // pred_fallthru
        _
      %p5632 = scmp.le.s32.totalorder 2, %s83
      // Predicated region
      $region169: #{time_transformer_decoder_layer.1} parent=5 // pred_check
        %p5633 = pneg %p5632
      $region170: #{time_transformer_decoder_layer.1} parent=5 // pred_check_branch
        %5635 = sbr.rel (%p5633) target = $region172
      $region171: #{time_transformer_decoder_layer.1} parent=5 // pred_region
        %s5636 = ssub.s32 %s83, 2
        // Predicated region
        $region173: #{time_transformer_decoder_layer.1} parent=171 // pred_check
          %p5637 = pneg %p862
        $region174: #{time_transformer_decoder_layer.1} parent=171 // pred_check_branch
          %5639 = sbr.rel (%p5637) target = $region176
        $region175: #{time_transformer_decoder_layer.1} parent=171 // pred_region
          %s5640 = sand.u32 %s847, 1
          %s5641 = scalar_lea.sflag [#allocation3], %s5640
          %s5642 = sand.u32 %s847, 1
          %s5643 = smul.addr %s5642, 8
          %s5644 = scalar_lea.vmem [#allocation2], %s5643
          %5645 = dma.done %s5641, 128
        $region176: #{time_transformer_decoder_layer.1} parent=171 // pred_fallthru
          _
        // Predicated region
        $region177: #{time_transformer_decoder_layer.1} parent=171 // pred_check
          %p5646 = pneg %p888
        $region178: #{time_transformer_decoder_layer.1} parent=171 // pred_check_branch
          %5648 = sbr.rel (%p5646) target = $region180
        $region179: #{time_transformer_decoder_layer.1} parent=171 // pred_region
          %p5649 = scmp.lt.s32.totalorder %s89, 1
          %s5650 = scalar_select %p5649, %s89, 1
          %s5651 = smul.addr %s5650, 4
          %s5652 = smul.addr %s5651, 8
          %s5653 = scalar_lea.vmem %s73, %s5652
        $region180: #{time_transformer_decoder_layer.1} parent=171 // pred_fallthru
          _
      $region172: #{time_transformer_decoder_layer.1} parent=5 // pred_fallthru
        _
    $region6: #{time_transformer_decoder_layer.1} parent=1 // loop_footer
      %s87 = sadd.s32 1, %s83
    $region7: #{time_transformer_decoder_layer.1} parent=1 // loop_footer_branch
      %82 = sbr.rel target = $region3
    $region8: #{time_transformer_decoder_layer.1} parent=1 // loop_exit
      _
    %5654 = vsyncpa [#allocation3], 1
    %s5655 = scalar_lea.sflag [#allocation3], 1
    %5656 = vsyncpa %s5655, 1

</llo_original>
